<compile_context>
chip_gen: v5e
topology: v5e:2x2
jax: 0.10.0
libtpu: 0.0.40
codegen_flags: <defaults>
</compile_context>

<pallas_src>
import functools

import jax
import jax.numpy as jnp
from jax.experimental import pallas as pl
from jax.experimental.pallas import tpu as pltpu

LANE = 128                          # TPU vreg lane width
_VMEM_BUDGET = 12 * 1024 * 1024     # per-call tile budget, safe on v5e/v6e/v7x
_VMEM_LIMIT = 32 * 1024 * 1024      # explicit scoped-VMEM limit (don't rely on default)


def _round_up(x, m):
    return (x + m - 1) // m * m


# ----------------------------------------------------------------------------
# The single Pallas kernel: MXU matmul with fully fused epilogue
#   out = post_act( pre_act(a) @ b + bias [+ noise_row * noise_ch] )
# ----------------------------------------------------------------------------
def _fused_mm_kernel(pre_act, post_act, fuse_noise, *refs):
    if fuse_noise:
        a_ref, b_ref, bias_ref, nrow_ref, nch_ref, o_ref = refs
    else:
        a_ref, b_ref, bias_ref, o_ref = refs

    a = a_ref[...]                                   # bf16 patches tile
    if pre_act == "relu":                            # nn.ReLU on the conv input
        a = jnp.maximum(a, 0)
    elif pre_act == "lrelu":                         # nn.LeakyReLU(0.2) on the conv input
        # NOTE: bf16 slope (0.19921875); tolerance vs f32 PyTorch is the accepted trade.
        a = jnp.where(a >= 0, a, jnp.bfloat16(0.2) * a)

    y = jnp.dot(a, b_ref[...], preferred_element_type=jnp.float32)   # MXU, f32 acc
    y = y + bias_ref[...]
    if fuse_noise:                                   # ApplyNoise: + noise(h,w) * weight(c)
        y = y + nrow_ref[...] * nch_ref[...]
    if post_act == "relu":
        y = jnp.maximum(y, 0.0)
    elif post_act == "lrelu":
        y = jnp.where(y >= 0.0, y, 0.2 * y)
    o_ref[...] = y.astype(o_ref.dtype)               # bf16 store for intermediates


def _choose_tm(M, Kp, Np, out_bytes):
    """M-tile size: at least 2 parallel grid steps when possible (v7x has 2 TCs),
    capped at 512 rows and against an explicit VMEM budget
    (a double-buffered + resident weight + double-buffered out)."""
    mp16 = _round_up(M, 16)
    tm = _round_up(pl.cdiv(mp16, 2), 16) if mp16 >= 32 else mp16
    tm = min(tm, 512)

    def vmem_need(t):
        return (2 * t * Kp * 2            # a tile, bf16, double-buffered
                + 2 * Kp * Np * 2         # weight, bf16 (constant index, still 2 bufs)
                + 2 * t * Np * out_bytes)  # out tile, double-buffered

    while tm > 16 and vmem_need(tm) > _VMEM_BUDGET:
        tm = _round_up(tm // 2, 16)
    return tm


def fused_matmul(a, b, bias, *, pre_act=None, post_act=None,
                 noise_row=None, noise_ch=None, out_dtype=jnp.bfloat16):
    """post_act(pre_act(a) @ b + bias [+ noise_row*noise_ch]) -> (M, N) in out_dtype.

    a: (M, K), b: (K, N), bias: (N,).  MXU operands are bf16, accumulation is f32.
    N is padded to the 128-lane width (lane-dense stores) and sliced afterwards;
    K is padded to 128 when K <= 128 (dense loads), else to 16; only M is tiled.
    """
    M, K = a.shape
    N = b.shape[1]
    a = a.astype(jnp.bfloat16)
    b = b.astype(jnp.bfloat16)
    bias = bias.astype(jnp.float32)

    Kp = _round_up(K, LANE) if K <= LANE else _round_up(K, 16)
    if Kp != K:
        a = jnp.pad(a, ((0, 0), (0, Kp - K)))
        b = jnp.pad(b, ((0, Kp - K), (0, 0)))

    Np = _round_up(N, LANE)                 # lane-dense output slab
    if Np != N:
        b = jnp.pad(b, ((0, 0), (0, Np - N)))
        bias = jnp.pad(bias, (0, Np - N))

    out_bytes = jnp.dtype(out_dtype).itemsize
    tm = _choose_tm(M, Kp, Np, out_bytes)
    Mp = _round_up(M, tm)
    if Mp != M:
        a = jnp.pad(a, ((0, Mp - M), (0, 0)))

    bias2 = bias.reshape(1, Np)
    fuse_noise = noise_row is not None

    inputs = [a, b, bias2]
    in_specs = [
        pl.BlockSpec((tm, Kp), lambda i: (i, 0)),
        pl.BlockSpec((Kp, Np), lambda i: (0, 0)),
        pl.BlockSpec((1, Np), lambda i: (0, 0)),
    ]
    if fuse_noise:
        nrow = noise_row.astype(jnp.float32).reshape(M, 1)
        if Mp != M:
            nrow = jnp.pad(nrow, ((0, Mp - M), (0, 0)))
        nch = noise_ch.astype(jnp.float32).reshape(1, N)
        if Np != N:
            nch = jnp.pad(nch, ((0, 0), (0, Np - N)))
        inputs += [nrow, nch]
        in_specs += [pl.BlockSpec((tm, 1), lambda i: (i, 0)),
                     pl.BlockSpec((1, Np), lambda i: (0, 0))]

    out = pl.pallas_call(
        functools.partial(_fused_mm_kernel, pre_act, post_act, fuse_noise),
        out_shape=jax.ShapeDtypeStruct((Mp, Np), out_dtype),
        grid=(Mp // tm,),
        in_specs=in_specs,
        out_specs=pl.BlockSpec((tm, Np), lambda i: (i, 0)),
        compiler_params=pltpu.CompilerParams(
            dimension_semantics=("parallel",),
            vmem_limit_bytes=_VMEM_LIMIT),
    )(*inputs)
    if Mp != M or Np != N:
        out = out[:M, :N]
    return out


# ----------------------------------------------------------------------------
# Convolution glue (im2col in XLA; the hot path is the fused Pallas matmul)
# ----------------------------------------------------------------------------
def _im2col(xp, kh, kw, stride):
    """xp: (B, Hp, Wp, C) already padded -> bf16 patches (B*Ho*Wo, kh*kw*C).

    TODO(synk): this remains an XLA-side materialization (kh*kw read amplification);
    folding it into the kernel via an 'arbitrary' tap grid axis + f32 VMEM accumulator
    is the remaining large lever and is left as future work.
    """
    B, Hp, Wp, C = xp.shape
    Ho = (Hp - kh) // stride + 1
    Wo = (Wp - kw) // stride + 1
    cols = []
    for i in range(kh):
        for j in range(kw):
            cols.append(xp[:, i:i + stride * (Ho - 1) + 1:stride,
                            j:j + stride * (Wo - 1) + 1:stride, :])
    patches = jnp.stack(cols, axis=3).reshape(B * Ho * Wo, kh * kw * C)
    return patches, Ho, Wo


def conv2d(x, w_oihw, b, *, stride=1, pad=0, pad_mode="edge",
           pre_act=None, post_act=None, noise_row=None, noise_ch=None,
           out_dtype=jnp.bfloat16):
    """[pre_act ->] pad -> Conv2d(kh x kw, stride, p=0) [-> +ApplyNoise] [-> post_act].

    x is NHWC; w is PyTorch (Cout, Cin, kh, kw).  pre_act commutes with both replicate
    and zero padding (relu(0)=lrelu(0)=0), so applying it to the patches is exact.
    """
    B = x.shape[0]
    Cout, Cin, kh, kw = w_oihw.shape
    xb = x.astype(jnp.bfloat16)
    if pad:
        xb = jnp.pad(xb, ((0, 0), (pad, pad), (pad, pad), (0, 0)), mode=pad_mode)
    patches, Ho, Wo = _im2col(xb, kh, kw, stride)
    wm = jnp.transpose(w_oihw, (2, 3, 1, 0)).reshape(kh * kw * Cin, Cout)
    out = fused_matmul(patches, wm, b, pre_act=pre_act, post_act=post_act,
                       noise_row=noise_row, noise_ch=noise_ch, out_dtype=out_dtype)
    return out.reshape(B, Ho, Wo, Cout)


def _convT_phase_weight(w_iohw):
    """Pack ConvTranspose2d(k=4, s=2, p=1) into an equivalent 3x3-conv weight whose
    output axis holds the 4 sub-pixel phases: returns (9*Cin, 4*Cout)."""
    Cin, Cout = w_iohw.shape[0], w_iohw.shape[1]
    # phase p: {3x3 tap index -> transpose-conv kernel index}
    #   even output: y[2m]   = x[m-1]*w[3] + x[m]*w[1]
    #   odd  output: y[2m+1] = x[m]  *w[2] + x[m+1]*w[0]
    kmap = {0: {0: 3, 1: 1}, 1: {1: 2, 2: 0}}
    W = jnp.zeros((3, 3, Cin, 4 * Cout), jnp.float32)
    for po in (0, 1):
        for pw in (0, 1):
            pidx = po * 2 + pw
            for th, kh in kmap[po].items():
                for tw, kw in kmap[pw].items():
                    W = W.at[th, tw, :, pidx * Cout:(pidx + 1) * Cout].set(
                        w_iohw[:, :, kh, kw])
    return W.reshape(9 * Cin, 4 * Cout)


def conv_transpose4x4_s2(x, w_iohw, b, *, pre_act=None, post_act=None):
    """[pre_act ->] ConvTranspose2d(Cin, Cout, k=4, s=2, p=1) [-> post_act].
    Sub-pixel decomposition: one matmul over the undilated input, phases along N."""
    B, H, W, Cin = x.shape
    Cout = w_iohw.shape[1]
    xb = jnp.pad(x.astype(jnp.bfloat16), ((0, 0), (1, 1), (1, 1), (0, 0)))  # zero pad 1
    patches, _, _ = _im2col(xb, 3, 3, 1)                                    # (B*H*W, 9*Cin)
    wm = _convT_phase_weight(w_iohw)                                        # (9*Cin, 4*Cout)
    bias4 = jnp.tile(b, 4)                                                  # same bias per phase
    y = fused_matmul(patches, wm, bias4, pre_act=pre_act, post_act=post_act)
    # TODO(synk): fold this phase interleave into the next conv's im2col indexing to
    # remove one XLA read+write pass over the upsampled activation.
    y = y.reshape(B, H, W, 2, 2, Cout).transpose(0, 1, 3, 2, 4, 5)
    return y.reshape(B, 2 * H, 2 * W, Cout)


# ----------------------------------------------------------------------------
# UnetBlock parameters (deterministic, synthetic) and forward
# ----------------------------------------------------------------------------
def _nrm(key, shape, scale=0.05):
    return scale * jax.random.normal(key, shape, jnp.float32)


def init_unet_block(key, input_nc, outer_nc, inner_nc, kind, spatial,
                    sub=None, use_noise=False):
    ks = jax.random.split(key, 8)
    p = {"kind": kind, "sub": sub}
    # down: [LeakyReLU(0.2)] + ReplicationPad2d(1) + Conv2d(input_nc, inner_nc, 3, stride=2)
    p["down_w"] = _nrm(ks[0], (inner_nc, input_nc, 3, 3))
    p["down_b"] = _nrm(ks[1], (inner_nc,))
    # up: ReLU + ConvTranspose2d(up_in, up_mid, 4, 2, 1) + ReLU + pad + Conv2d(..., up2)
    up_in = inner_nc if kind == "inner" else inner_nc * 2
    up_mid = inner_nc if kind == "outer" else outer_nc
    p["upt_w"] = _nrm(ks[2], (up_in, up_mid, 4, 4))   # PyTorch ConvTranspose layout (Cin,Cout,4,4)
    p["upt_b"] = _nrm(ks[3], (up_mid,))
    if kind == "outer":
        p["up2_w"] = _nrm(ks[4], (outer_nc, inner_nc, 7, 7))   # ReplicationPad2d(3) + Conv2d(k=7)
    else:
        p["up2_w"] = _nrm(ks[4], (outer_nc, outer_nc, 3, 3))   # ReplicationPad2d(1) + Conv2d(k=3)
    p["up2_b"] = _nrm(ks[5], (outer_nc,))
    if use_noise and kind != "outer":
        # TODO(synk): ApplyNoise is referenced but not defined in the reference file; the
        # canonical StyleGAN ApplyNoise (x + weight[c] * noise(h, w)) is used here.
        p["noise_w"] = _nrm(ks[6], (outer_nc,))
        p["noise"] = jax.random.normal(ks[7], (1, 1, spatial, spatial), jnp.float32)
    else:
        p["noise"] = None
    return p


def unet_block_forward(p, x):
    """UnetBlock.forward.  x is NHWC (f32 at the outermost call, bf16 inside)."""
    kind = p["kind"]
    # down path: LeakyReLU(0.2) pre-activation fused into the conv for non-outermost.
    # For the innermost block the downconv output feeds only the up-path ReLU, so that
    # ReLU is fused into this conv's epilogue (producer side); elsewhere the raw output
    # is also needed (skip concat / submodule input) so the activation stays on the
    # consumer's patches.
    down_pre = None if kind == "outer" else "lrelu"
    down_post = "relu" if kind == "inner" else None
    x1 = conv2d(x, p["down_w"], p["down_b"], stride=2, pad=1, pad_mode="edge",
                pre_act=down_pre, post_act=down_post)
    mid = x1 if kind == "inner" else unet_block_forward(p["sub"], x1)
    # up path: ReLU -> ConvTranspose2d(4,2,1) -> ReLU -> ReplicationPad -> Conv2d
    h = conv_transpose4x4_s2(mid, p["upt_w"], p["upt_b"],
                             pre_act=None if kind == "inner" else "relu",
                             post_act="relu")
    if kind == "outer":
        # final network output stays f32
        return conv2d(h, p["up2_w"], p["up2_b"], stride=1, pad=3, pad_mode="edge",
                      out_dtype=jnp.float32)
    # ApplyNoise (if configured) fused into the final conv's epilogue
    nrow = nch = None
    if p["noise"] is not None:
        B, H, W, _ = x.shape                            # x2 has x's spatial size
        nrow = jnp.tile(p["noise"].reshape(H * W, 1), (B, 1))
        nch = p["noise_w"]
    x2 = conv2d(h, p["up2_w"], p["up2_b"], stride=1, pad=1, pad_mode="edge",
                noise_row=nrow, noise_ch=nch)
    return jnp.concatenate([x2, x.astype(x2.dtype)], axis=-1)   # torch.cat([x2, x], 1)


def build_unet(key, input_nc=4, output_nc=4, ngf=16, spatial=16):
    """outermost( middle( innermost ) ) stack of UnetBlocks."""
    k1, k2, k3 = jax.random.split(key, 3)
    inner = init_unet_block(k1, ngf * 2, ngf * 2, ngf * 4, "inner", spatial // 4,
                            use_noise=True)
    mid = init_unet_block(k2, ngf, ngf, ngf * 2, "mid", spatial // 2,
                          sub=inner, use_noise=True)
    outer = init_unet_block(k3, input_nc, output_nc, ngf, "outer", spatial, sub=mid)
    return outer


def unet_forward(params, x_nchw):
    x = jnp.transpose(x_nchw, (0, 2, 3, 1)).astype(jnp.float32)   # NCHW -> NHWC
    y = unet_block_forward(params, x)
    return jnp.transpose(y, (0, 3, 1, 2))                         # back to NCHW


# ----------------------------------------------------------------------------
if __name__ == "__main__":
    key = jax.random.PRNGKey(0)
    kp, kx = jax.random.split(key)

    input_nc, output_nc, ngf, spatial, batch = 4, 4, 16, 16, 2
    params = build_unet(kp, input_nc=input_nc, output_nc=output_nc,
                        ngf=ngf, spatial=spatial)

    x = jax.random.normal(kx, (batch, input_nc, spatial, spatial), jnp.float32)

    fwd = jax.jit(lambda xx: unet_forward(params, xx))
    out = fwd(x)
    jax.block_until_ready(out)

    assert out.shape == (batch, output_nc, spatial, spatial), out.shape
    assert out.dtype == jnp.float32
    assert bool(jnp.all(jnp.isfinite(out)))
    print("KERNEL_OK")
</pallas_src>

<mosaic_0001>
module attributes {stable_mosaic.version = 11 : i64} {
  func.func @_fused_mm_kernel(%arg0: i32, %arg1: memref<64x128xbf16, #tpu.memory_space<vmem>>, %arg2: memref<128x128xbf16, #tpu.memory_space<vmem>>, %arg3: memref<1x128xf32, #tpu.memory_space<vmem>>, %arg4: memref<64x128xbf16, #tpu.memory_space<vmem>>) attributes {dimension_semantics = [#tpu.dimension_semantics<parallel>], iteration_bounds = array<i64: 2>, scalar_prefetch = 0 : i64, scratch_operands = 0 : i64, tpu.core_type = #tpu.core_type<tc>, window_params = [{transform_indices = @transform_0, window_bounds = array<i64: 64, 128>}, {pipeline_mode = #tpu.pipeline_mode<synchronous>, transform_indices = @transform_1, window_bounds = array<i64: 128, 128>}, {pipeline_mode = #tpu.pipeline_mode<synchronous>, transform_indices = @transform_2, window_bounds = array<i64: 1, 128>}, {transform_indices = @transform_3, window_bounds = array<i64: 64, 128>}]} {
    %c0 = arith.constant 0 : index
    %c0_0 = arith.constant 0 : index
    %0 = vector.load %arg1[%c0, %c0_0] : memref<64x128xbf16, #tpu.memory_space<vmem>>, vector<64x128xbf16>
    %c0_1 = arith.constant 0 : index
    %c0_2 = arith.constant 0 : index
    %1 = vector.load %arg2[%c0_1, %c0_2] : memref<128x128xbf16, #tpu.memory_space<vmem>>, vector<128x128xbf16>
    %cst = arith.constant dense<0.000000e+00> : vector<64x128xf32>
    %2 = tpu.matmul %0, %1, %cst {dimension_numbers = #tpu.dot_dimension_numbers<[1], [0], [0], [1], [0, 0, 1, 1], [], []>} : vector<64x128xbf16>, vector<128x128xbf16>, vector<64x128xf32> -> vector<64x128xf32>
    %c0_3 = arith.constant 0 : index
    %c0_4 = arith.constant 0 : index
    %3 = vector.load %arg3[%c0_3, %c0_4] : memref<1x128xf32, #tpu.memory_space<vmem>>, vector<1x128xf32>
    %4 = vector.broadcast %3 : vector<1x128xf32> to vector<64x128xf32>
    %5 = arith.addf %2, %4 : vector<64x128xf32>
    %6 = arith.truncf %5 : vector<64x128xf32> to vector<64x128xbf16>
    %c0_5 = arith.constant 0 : index
    %c0_6 = arith.constant 0 : index
    %7 = vector.load %arg4[%c0_5, %c0_6] : memref<64x128xbf16, #tpu.memory_space<vmem>>, vector<64x128xbf16>
    tpu.vector_store %arg4[%c0_5, %c0_6], %6 {strides = array<i32>} : memref<64x128xbf16, #tpu.memory_space<vmem>>, vector<64x128xbf16>,
    return
  }
  func.func @transform_0(%arg0: i32) -> (i32, i32) {
    %c0_i32 = arith.constant 0 : i32
    %c0_i32_0 = arith.constant 0 : i32
    return %arg0, %c0_i32 : i32, i32
  }
  func.func @transform_1(%arg0: i32) -> (i32, i32) {
    %c0_i32 = arith.constant 0 : i32
    %c0_i32_0 = arith.constant 0 : i32
    %c0_i32_1 = arith.constant 0 : i32
    return %c0_i32, %c0_i32_0 : i32, i32
  }
  func.func @transform_2(%arg0: i32) -> (i32, i32) {
    %c0_i32 = arith.constant 0 : i32
    %c0_i32_0 = arith.constant 0 : i32
    %c0_i32_1 = arith.constant 0 : i32
    return %c0_i32, %c0_i32_0 : i32, i32
  }
  func.func @transform_3(%arg0: i32) -> (i32, i32) {
    %c0_i32 = arith.constant 0 : i32
    %c0_i32_0 = arith.constant 0 : i32
    return %arg0, %c0_i32 : i32, i32
  }
}

module attributes {stable_mosaic.version = 11 : i64} {
  func.func @_fused_mm_kernel(%arg0: i32, %arg1: memref<16x144xbf16, #tpu.memory_space<vmem>>, %arg2: memref<144x128xbf16, #tpu.memory_space<vmem>>, %arg3: memref<1x128xf32, #tpu.memory_space<vmem>>, %arg4: memref<16x128xbf16, #tpu.memory_space<vmem>>) attributes {dimension_semantics = [#tpu.dimension_semantics<parallel>], iteration_bounds = array<i64: 2>, scalar_prefetch = 0 : i64, scratch_operands = 0 : i64, tpu.core_type = #tpu.core_type<tc>, window_params = [{transform_indices = @transform_0, window_bounds = array<i64: 16, 144>}, {pipeline_mode = #tpu.pipeline_mode<synchronous>, transform_indices = @transform_1, window_bounds = array<i64: 144, 128>}, {pipeline_mode = #tpu.pipeline_mode<synchronous>, transform_indices = @transform_2, window_bounds = array<i64: 1, 128>}, {transform_indices = @transform_3, window_bounds = array<i64: 16, 128>}]} {
    %c0 = arith.constant 0 : index
    %c0_0 = arith.constant 0 : index
    %0 = vector.load %arg1[%c0, %c0_0] : memref<16x144xbf16, #tpu.memory_space<vmem>>, vector<16x144xbf16>
    %cst = arith.constant 0.000000e+00 : bf16
    %1 = vector.broadcast %cst : bf16 to vector<16x144xbf16>
    %2 = arith.cmpf oge, %0, %1 : vector<16x144xbf16>
    %cst_1 = arith.constant 2.001950e-01 : bf16
    %3 = vector.broadcast %cst_1 : bf16 to vector<16x144xbf16>
    %4 = arith.mulf %3, %0 : vector<16x144xbf16>
    %5 = arith.select %2, %0, %4 : vector<16x144xi1>, vector<16x144xbf16>
    %c0_2 = arith.constant 0 : index
    %c0_3 = arith.constant 0 : index
    %6 = vector.load %arg2[%c0_2, %c0_3] : memref<144x128xbf16, #tpu.memory_space<vmem>>, vector<144x128xbf16>
    %cst_4 = arith.constant dense<0.000000e+00> : vector<16x128xf32>
    %7 = tpu.matmul %5, %6, %cst_4 {dimension_numbers = #tpu.dot_dimension_numbers<[1], [0], [0], [1], [0, 0, 1, 1], [], []>} : vector<16x144xbf16>, vector<144x128xbf16>, vector<16x128xf32> -> vector<16x128xf32>
    %c0_5 = arith.constant 0 : index
    %c0_6 = arith.constant 0 : index
    %8 = vector.load %arg3[%c0_5, %c0_6] : memref<1x128xf32, #tpu.memory_space<vmem>>, vector<1x128xf32>
    %9 = vector.broadcast %8 : vector<1x128xf32> to vector<16x128xf32>
    %10 = arith.addf %7, %9 : vector<16x128xf32>
    %11 = arith.truncf %10 : vector<16x128xf32> to vector<16x128xbf16>
    %c0_7 = arith.constant 0 : index
    %c0_8 = arith.constant 0 : index
    %12 = vector.load %arg4[%c0_7, %c0_8] : memref<16x128xbf16, #tpu.memory_space<vmem>>, vector<16x128xbf16>
    tpu.vector_store %arg4[%c0_7, %c0_8], %11 {strides = array<i32>} : memref<16x128xbf16, #tpu.memory_space<vmem>>, vector<16x128xbf16>,
    return
  }
  func.func @transform_0(%arg0: i32) -> (i32, i32) {
    %c0_i32 = arith.constant 0 : i32
    %c0_i32_0 = arith.constant 0 : i32
    return %arg0, %c0_i32 : i32, i32
  }
  func.func @transform_1(%arg0: i32) -> (i32, i32) {
    %c0_i32 = arith.constant 0 : i32
    %c0_i32_0 = arith.constant 0 : i32
    %c0_i32_1 = arith.constant 0 : i32
    return %c0_i32, %c0_i32_0 : i32, i32
  }
  func.func @transform_2(%arg0: i32) -> (i32, i32) {
    %c0_i32 = arith.constant 0 : i32
    %c0_i32_0 = arith.constant 0 : i32
    %c0_i32_1 = arith.constant 0 : i32
    return %c0_i32, %c0_i32_0 : i32, i32
  }
  func.func @transform_3(%arg0: i32) -> (i32, i32) {
    %c0_i32 = arith.constant 0 : i32
    %c0_i32_0 = arith.constant 0 : i32
    return %arg0, %c0_i32 : i32, i32
  }
}

module attributes {stable_mosaic.version = 11 : i64} {
  func.func @_fused_mm_kernel(%arg0: i32, %arg1: memref<16x288xbf16, #tpu.memory_space<vmem>>, %arg2: memref<288x128xbf16, #tpu.memory_space<vmem>>, %arg3: memref<1x128xf32, #tpu.memory_space<vmem>>, %arg4: memref<16x128xbf16, #tpu.memory_space<vmem>>) attributes {dimension_semantics = [#tpu.dimension_semantics<parallel>], iteration_bounds = array<i64: 1>, scalar_prefetch = 0 : i64, scratch_operands = 0 : i64, tpu.core_type = #tpu.core_type<tc>, window_params = [{transform_indices = @transform_0, window_bounds = array<i64: 16, 288>}, {pipeline_mode = #tpu.pipeline_mode<synchronous>, transform_indices = @transform_1, window_bounds = array<i64: 288, 128>}, {pipeline_mode = #tpu.pipeline_mode<synchronous>, transform_indices = @transform_2, window_bounds = array<i64: 1, 128>}, {transform_indices = @transform_3, window_bounds = array<i64: 16, 128>}]} {
    %c0 = arith.constant 0 : index
    %c0_0 = arith.constant 0 : index
    %0 = vector.load %arg1[%c0, %c0_0] : memref<16x288xbf16, #tpu.memory_space<vmem>>, vector<16x288xbf16>
    %cst = arith.constant 0.000000e+00 : bf16
    %1 = vector.broadcast %cst : bf16 to vector<16x288xbf16>
    %2 = arith.cmpf oge, %0, %1 : vector<16x288xbf16>
    %cst_1 = arith.constant 2.001950e-01 : bf16
    %3 = vector.broadcast %cst_1 : bf16 to vector<16x288xbf16>
    %4 = arith.mulf %3, %0 : vector<16x288xbf16>
    %5 = arith.select %2, %0, %4 : vector<16x288xi1>, vector<16x288xbf16>
    %c0_2 = arith.constant 0 : index
    %c0_3 = arith.constant 0 : index
    %6 = vector.load %arg2[%c0_2, %c0_3] : memref<288x128xbf16, #tpu.memory_space<vmem>>, vector<288x128xbf16>
    %cst_4 = arith.constant dense<0.000000e+00> : vector<16x128xf32>
    %7 = tpu.matmul %5, %6, %cst_4 {dimension_numbers = #tpu.dot_dimension_numbers<[1], [0], [0], [1], [0, 0, 1, 1], [], []>} : vector<16x288xbf16>, vector<288x128xbf16>, vector<16x128xf32> -> vector<16x128xf32>
    %c0_5 = arith.constant 0 : index
    %c0_6 = arith.constant 0 : index
    %8 = vector.load %arg3[%c0_5, %c0_6] : memref<1x128xf32, #tpu.memory_space<vmem>>, vector<1x128xf32>
    %9 = vector.broadcast %8 : vector<1x128xf32> to vector<16x128xf32>
    %10 = arith.addf %7, %9 : vector<16x128xf32>
    %cst_7 = arith.constant 0.000000e+00 : f32
    %11 = vector.broadcast %cst_7 : f32 to vector<16x128xf32>
    %12 = arith.maximumf %10, %11 : vector<16x128xf32>
    %13 = arith.truncf %12 : vector<16x128xf32> to vector<16x128xbf16>
    %c0_8 = arith.constant 0 : index
    %c0_9 = arith.constant 0 : index
    %14 = vector.load %arg4[%c0_8, %c0_9] : memref<16x128xbf16, #tpu.memory_space<vmem>>, vector<16x128xbf16>
    tpu.vector_store %arg4[%c0_8, %c0_9], %13 {strides = array<i32>} : memref<16x128xbf16, #tpu.memory_space<vmem>>, vector<16x128xbf16>,
    return
  }
  func.func @transform_0(%arg0: i32) -> (i32, i32) {
    %c0_i32 = arith.constant 0 : i32
    %c0_i32_0 = arith.constant 0 : i32
    return %arg0, %c0_i32 : i32, i32
  }
  func.func @transform_1(%arg0: i32) -> (i32, i32) {
    %c0_i32 = arith.constant 0 : i32
    %c0_i32_0 = arith.constant 0 : i32
    %c0_i32_1 = arith.constant 0 : i32
    return %c0_i32, %c0_i32_0 : i32, i32
  }
  func.func @transform_2(%arg0: i32) -> (i32, i32) {
    %c0_i32 = arith.constant 0 : i32
    %c0_i32_0 = arith.constant 0 : i32
    %c0_i32_1 = arith.constant 0 : i32
    return %c0_i32, %c0_i32_0 : i32, i32
  }
  func.func @transform_3(%arg0: i32) -> (i32, i32) {
    %c0_i32 = arith.constant 0 : i32
    %c0_i32_0 = arith.constant 0 : i32
    return %arg0, %c0_i32 : i32, i32
  }
}

module attributes {stable_mosaic.version = 11 : i64} {
  func.func @_fused_mm_kernel(%arg0: i32, %arg1: memref<16x576xbf16, #tpu.memory_space<vmem>>, %arg2: memref<576x128xbf16, #tpu.memory_space<vmem>>, %arg3: memref<1x128xf32, #tpu.memory_space<vmem>>, %arg4: memref<16x128xbf16, #tpu.memory_space<vmem>>) attributes {dimension_semantics = [#tpu.dimension_semantics<parallel>], iteration_bounds = array<i64: 1>, scalar_prefetch = 0 : i64, scratch_operands = 0 : i64, tpu.core_type = #tpu.core_type<tc>, window_params = [{transform_indices = @transform_0, window_bounds = array<i64: 16, 576>}, {pipeline_mode = #tpu.pipeline_mode<synchronous>, transform_indices = @transform_1, window_bounds = array<i64: 576, 128>}, {pipeline_mode = #tpu.pipeline_mode<synchronous>, transform_indices = @transform_2, window_bounds = array<i64: 1, 128>}, {transform_indices = @transform_3, window_bounds = array<i64: 16, 128>}]} {
    %c0 = arith.constant 0 : index
    %c0_0 = arith.constant 0 : index
    %0 = vector.load %arg1[%c0, %c0_0] : memref<16x576xbf16, #tpu.memory_space<vmem>>, vector<16x576xbf16>
    %c0_1 = arith.constant 0 : index
    %c0_2 = arith.constant 0 : index
    %1 = vector.load %arg2[%c0_1, %c0_2] : memref<576x128xbf16, #tpu.memory_space<vmem>>, vector<576x128xbf16>
    %cst = arith.constant dense<0.000000e+00> : vector<16x128xf32>
    %2 = tpu.matmul %0, %1, %cst {dimension_numbers = #tpu.dot_dimension_numbers<[1], [0], [0], [1], [0, 0, 1, 1], [], []>} : vector<16x576xbf16>, vector<576x128xbf16>, vector<16x128xf32> -> vector<16x128xf32>
    %c0_3 = arith.constant 0 : index
    %c0_4 = arith.constant 0 : index
    %3 = vector.load %arg3[%c0_3, %c0_4] : memref<1x128xf32, #tpu.memory_space<vmem>>, vector<1x128xf32>
    %4 = vector.broadcast %3 : vector<1x128xf32> to vector<16x128xf32>
    %5 = arith.addf %2, %4 : vector<16x128xf32>
    %cst_5 = arith.constant 0.000000e+00 : f32
    %6 = vector.broadcast %cst_5 : f32 to vector<16x128xf32>
    %7 = arith.maximumf %5, %6 : vector<16x128xf32>
    %8 = arith.truncf %7 : vector<16x128xf32> to vector<16x128xbf16>
    %c0_6 = arith.constant 0 : index
    %c0_7 = arith.constant 0 : index
    %9 = vector.load %arg4[%c0_6, %c0_7] : memref<16x128xbf16, #tpu.memory_space<vmem>>, vector<16x128xbf16>
    tpu.vector_store %arg4[%c0_6, %c0_7], %8 {strides = array<i32>} : memref<16x128xbf16, #tpu.memory_space<vmem>>, vector<16x128xbf16>,
    return
  }
  func.func @transform_0(%arg0: i32) -> (i32, i32) {
    %c0_i32 = arith.constant 0 : i32
    %c0_i32_0 = arith.constant 0 : i32
    return %arg0, %c0_i32 : i32, i32
  }
  func.func @transform_1(%arg0: i32) -> (i32, i32) {
    %c0_i32 = arith.constant 0 : i32
    %c0_i32_0 = arith.constant 0 : i32
    %c0_i32_1 = arith.constant 0 : i32
    return %c0_i32, %c0_i32_0 : i32, i32
  }
  func.func @transform_2(%arg0: i32) -> (i32, i32) {
    %c0_i32 = arith.constant 0 : i32
    %c0_i32_0 = arith.constant 0 : i32
    %c0_i32_1 = arith.constant 0 : i32
    return %c0_i32, %c0_i32_0 : i32, i32
  }
  func.func @transform_3(%arg0: i32) -> (i32, i32) {
    %c0_i32 = arith.constant 0 : i32
    %c0_i32_0 = arith.constant 0 : i32
    return %arg0, %c0_i32 : i32, i32
  }
}

module attributes {stable_mosaic.version = 11 : i64} {
  func.func @_fused_mm_kernel(%arg0: i32, %arg1: memref<16x288xbf16, #tpu.memory_space<vmem>>, %arg2: memref<288x128xbf16, #tpu.memory_space<vmem>>, %arg3: memref<1x128xf32, #tpu.memory_space<vmem>>, %arg4: memref<16x1xf32, #tpu.memory_space<vmem>>, %arg5: memref<1x128xf32, #tpu.memory_space<vmem>>, %arg6: memref<16x128xbf16, #tpu.memory_space<vmem>>) attributes {dimension_semantics = [#tpu.dimension_semantics<parallel>], iteration_bounds = array<i64: 2>, scalar_prefetch = 0 : i64, scratch_operands = 0 : i64, tpu.core_type = #tpu.core_type<tc>, window_params = [{transform_indices = @transform_0, window_bounds = array<i64: 16, 288>}, {pipeline_mode = #tpu.pipeline_mode<synchronous>, transform_indices = @transform_1, window_bounds = array<i64: 288, 128>}, {pipeline_mode = #tpu.pipeline_mode<synchronous>, transform_indices = @transform_2, window_bounds = array<i64: 1, 128>}, {transform_indices = @transform_3, window_bounds = array<i64: 16, 1>}, {pipeline_mode = #tpu.pipeline_mode<synchronous>, transform_indices = @transform_4, window_bounds = array<i64: 1, 128>}, {transform_indices = @transform_5, window_bounds = array<i64: 16, 128>}]} {
    %c0 = arith.constant 0 : index
    %c0_0 = arith.constant 0 : index
    %0 = vector.load %arg1[%c0, %c0_0] : memref<16x288xbf16, #tpu.memory_space<vmem>>, vector<16x288xbf16>
    %c0_1 = arith.constant 0 : index
    %c0_2 = arith.constant 0 : index
    %1 = vector.load %arg2[%c0_1, %c0_2] : memref<288x128xbf16, #tpu.memory_space<vmem>>, vector<288x128xbf16>
    %cst = arith.constant dense<0.000000e+00> : vector<16x128xf32>
    %2 = tpu.matmul %0, %1, %cst {dimension_numbers = #tpu.dot_dimension_numbers<[1], [0], [0], [1], [0, 0, 1, 1], [], []>} : vector<16x288xbf16>, vector<288x128xbf16>, vector<16x128xf32> -> vector<16x128xf32>
    %c0_3 = arith.constant 0 : index
    %c0_4 = arith.constant 0 : index
    %3 = vector.load %arg3[%c0_3, %c0_4] : memref<1x128xf32, #tpu.memory_space<vmem>>, vector<1x128xf32>
    %4 = vector.broadcast %3 : vector<1x128xf32> to vector<16x128xf32>
    %5 = arith.addf %2, %4 : vector<16x128xf32>
    %c0_5 = arith.constant 0 : index
    %c0_6 = arith.constant 0 : index
    %6 = vector.load %arg4[%c0_5, %c0_6] : memref<16x1xf32, #tpu.memory_space<vmem>>, vector<16x1xf32>
    %c0_7 = arith.constant 0 : index
    %c0_8 = arith.constant 0 : index
    %7 = vector.load %arg5[%c0_7, %c0_8] : memref<1x128xf32, #tpu.memory_space<vmem>>, vector<1x128xf32>
    %8 = vector.broadcast %6 : vector<16x1xf32> to vector<16x128xf32>
    %9 = vector.broadcast %7 : vector<1x128xf32> to vector<16x128xf32>
    %10 = arith.mulf %8, %9 : vector<16x128xf32>
    %11 = arith.addf %5, %10 : vector<16x128xf32>
    %12 = arith.truncf %11 : vector<16x128xf32> to vector<16x128xbf16>
    %c0_9 = arith.constant 0 : index
    %c0_10 = arith.constant 0 : index
    %13 = vector.load %arg6[%c0_9, %c0_10] : memref<16x128xbf16, #tpu.memory_space<vmem>>, vector<16x128xbf16>
    tpu.vector_store %arg6[%c0_9, %c0_10], %12 {strides = array<i32>} : memref<16x128xbf16, #tpu.memory_space<vmem>>, vector<16x128xbf16>,
    return
  }
  func.func @transform_0(%arg0: i32) -> (i32, i32) {
    %c0_i32 = arith.constant 0 : i32
    %c0_i32_0 = arith.constant 0 : i32
    return %arg0, %c0_i32 : i32, i32
  }
  func.func @transform_1(%arg0: i32) -> (i32, i32) {
    %c0_i32 = arith.constant 0 : i32
    %c0_i32_0 = arith.constant 0 : i32
    %c0_i32_1 = arith.constant 0 : i32
    return %c0_i32, %c0_i32_0 : i32, i32
  }
  func.func @transform_2(%arg0: i32) -> (i32, i32) {
    %c0_i32 = arith.constant 0 : i32
    %c0_i32_0 = arith.constant 0 : i32
    %c0_i32_1 = arith.constant 0 : i32
    return %c0_i32, %c0_i32_0 : i32, i32
  }
  func.func @transform_3(%arg0: i32) -> (i32, i32) {
    %c0_i32 = arith.constant 0 : i32
    %c0_i32_0 = arith.constant 0 : i32
    return %arg0, %c0_i32 : i32, i32
  }
  func.func @transform_4(%arg0: i32) -> (i32, i32) {
    %c0_i32 = arith.constant 0 : i32
    %c0_i32_0 = arith.constant 0 : i32
    %c0_i32_1 = arith.constant 0 : i32
    return %c0_i32, %c0_i32_0 : i32, i32
  }
  func.func @transform_5(%arg0: i32) -> (i32, i32) {
    %c0_i32 = arith.constant 0 : i32
    %c0_i32_0 = arith.constant 0 : i32
    return %arg0, %c0_i32 : i32, i32
  }
}

module attributes {stable_mosaic.version = 11 : i64} {
  func.func @_fused_mm_kernel(%arg0: i32, %arg1: memref<16x576xbf16, #tpu.memory_space<vmem>>, %arg2: memref<576x128xbf16, #tpu.memory_space<vmem>>, %arg3: memref<1x128xf32, #tpu.memory_space<vmem>>, %arg4: memref<16x128xbf16, #tpu.memory_space<vmem>>) attributes {dimension_semantics = [#tpu.dimension_semantics<parallel>], iteration_bounds = array<i64: 2>, scalar_prefetch = 0 : i64, scratch_operands = 0 : i64, tpu.core_type = #tpu.core_type<tc>, window_params = [{transform_indices = @transform_0, window_bounds = array<i64: 16, 576>}, {pipeline_mode = #tpu.pipeline_mode<synchronous>, transform_indices = @transform_1, window_bounds = array<i64: 576, 128>}, {pipeline_mode = #tpu.pipeline_mode<synchronous>, transform_indices = @transform_2, window_bounds = array<i64: 1, 128>}, {transform_indices = @transform_3, window_bounds = array<i64: 16, 128>}]} {
    %c0 = arith.constant 0 : index
    %c0_0 = arith.constant 0 : index
    %0 = vector.load %arg1[%c0, %c0_0] : memref<16x576xbf16, #tpu.memory_space<vmem>>, vector<16x576xbf16>
    %cst = arith.constant 0.000000e+00 : bf16
    %1 = vector.broadcast %cst : bf16 to vector<16x576xbf16>
    %2 = arith.maximumf %0, %1 : vector<16x576xbf16>
    %c0_1 = arith.constant 0 : index
    %c0_2 = arith.constant 0 : index
    %3 = vector.load %arg2[%c0_1, %c0_2] : memref<576x128xbf16, #tpu.memory_space<vmem>>, vector<576x128xbf16>
    %cst_3 = arith.constant dense<0.000000e+00> : vector<16x128xf32>
    %4 = tpu.matmul %2, %3, %cst_3 {dimension_numbers = #tpu.dot_dimension_numbers<[1], [0], [0], [1], [0, 0, 1, 1], [], []>} : vector<16x576xbf16>, vector<576x128xbf16>, vector<16x128xf32> -> vector<16x128xf32>
    %c0_4 = arith.constant 0 : index
    %c0_5 = arith.constant 0 : index
    %5 = vector.load %arg3[%c0_4, %c0_5] : memref<1x128xf32, #tpu.memory_space<vmem>>, vector<1x128xf32>
    %6 = vector.broadcast %5 : vector<1x128xf32> to vector<16x128xf32>
    %7 = arith.addf %4, %6 : vector<16x128xf32>
    %cst_6 = arith.constant 0.000000e+00 : f32
    %8 = vector.broadcast %cst_6 : f32 to vector<16x128xf32>
    %9 = arith.maximumf %7, %8 : vector<16x128xf32>
    %10 = arith.truncf %9 : vector<16x128xf32> to vector<16x128xbf16>
    %c0_7 = arith.constant 0 : index
    %c0_8 = arith.constant 0 : index
    %11 = vector.load %arg4[%c0_7, %c0_8] : memref<16x128xbf16, #tpu.memory_space<vmem>>, vector<16x128xbf16>
    tpu.vector_store %arg4[%c0_7, %c0_8], %10 {strides = array<i32>} : memref<16x128xbf16, #tpu.memory_space<vmem>>, vector<16x128xbf16>,
    return
  }
  func.func @transform_0(%arg0: i32) -> (i32, i32) {
    %c0_i32 = arith.constant 0 : i32
    %c0_i32_0 = arith.constant 0 : i32
    return %arg0, %c0_i32 : i32, i32
  }
  func.func @transform_1(%arg0: i32) -> (i32, i32) {
    %c0_i32 = arith.constant 0 : i32
    %c0_i32_0 = arith.constant 0 : i32
    %c0_i32_1 = arith.constant 0 : i32
    return %c0_i32, %c0_i32_0 : i32, i32
  }
  func.func @transform_2(%arg0: i32) -> (i32, i32) {
    %c0_i32 = arith.constant 0 : i32
    %c0_i32_0 = arith.constant 0 : i32
    %c0_i32_1 = arith.constant 0 : i32
    return %c0_i32, %c0_i32_0 : i32, i32
  }
  func.func @transform_3(%arg0: i32) -> (i32, i32) {
    %c0_i32 = arith.constant 0 : i32
    %c0_i32_0 = arith.constant 0 : i32
    return %arg0, %c0_i32 : i32, i32
  }
}

module attributes {stable_mosaic.version = 11 : i64} {
  func.func @_fused_mm_kernel(%arg0: i32, %arg1: memref<64x144xbf16, #tpu.memory_space<vmem>>, %arg2: memref<144x128xbf16, #tpu.memory_space<vmem>>, %arg3: memref<1x128xf32, #tpu.memory_space<vmem>>, %arg4: memref<64x1xf32, #tpu.memory_space<vmem>>, %arg5: memref<1x128xf32, #tpu.memory_space<vmem>>, %arg6: memref<64x128xbf16, #tpu.memory_space<vmem>>) attributes {dimension_semantics = [#tpu.dimension_semantics<parallel>], iteration_bounds = array<i64: 2>, scalar_prefetch = 0 : i64, scratch_operands = 0 : i64, tpu.core_type = #tpu.core_type<tc>, window_params = [{transform_indices = @transform_0, window_bounds = array<i64: 64, 144>}, {pipeline_mode = #tpu.pipeline_mode<synchronous>, transform_indices = @transform_1, window_bounds = array<i64: 144, 128>}, {pipeline_mode = #tpu.pipeline_mode<synchronous>, transform_indices = @transform_2, window_bounds = array<i64: 1, 128>}, {transform_indices = @transform_3, window_bounds = array<i64: 64, 1>}, {pipeline_mode = #tpu.pipeline_mode<synchronous>, transform_indices = @transform_4, window_bounds = array<i64: 1, 128>}, {transform_indices = @transform_5, window_bounds = array<i64: 64, 128>}]} {
    %c0 = arith.constant 0 : index
    %c0_0 = arith.constant 0 : index
    %0 = vector.load %arg1[%c0, %c0_0] : memref<64x144xbf16, #tpu.memory_space<vmem>>, vector<64x144xbf16>
    %c0_1 = arith.constant 0 : index
    %c0_2 = arith.constant 0 : index
    %1 = vector.load %arg2[%c0_1, %c0_2] : memref<144x128xbf16, #tpu.memory_space<vmem>>, vector<144x128xbf16>
    %cst = arith.constant dense<0.000000e+00> : vector<64x128xf32>
    %2 = tpu.matmul %0, %1, %cst {dimension_numbers = #tpu.dot_dimension_numbers<[1], [0], [0], [1], [0, 0, 1, 1], [], []>} : vector<64x144xbf16>, vector<144x128xbf16>, vector<64x128xf32> -> vector<64x128xf32>
    %c0_3 = arith.constant 0 : index
    %c0_4 = arith.constant 0 : index
    %3 = vector.load %arg3[%c0_3, %c0_4] : memref<1x128xf32, #tpu.memory_space<vmem>>, vector<1x128xf32>
    %4 = vector.broadcast %3 : vector<1x128xf32> to vector<64x128xf32>
    %5 = arith.addf %2, %4 : vector<64x128xf32>
    %c0_5 = arith.constant 0 : index
    %c0_6 = arith.constant 0 : index
    %6 = vector.load %arg4[%c0_5, %c0_6] : memref<64x1xf32, #tpu.memory_space<vmem>>, vector<64x1xf32>
    %c0_7 = arith.constant 0 : index
    %c0_8 = arith.constant 0 : index
    %7 = vector.load %arg5[%c0_7, %c0_8] : memref<1x128xf32, #tpu.memory_space<vmem>>, vector<1x128xf32>
    %8 = vector.broadcast %6 : vector<64x1xf32> to vector<64x128xf32>
    %9 = vector.broadcast %7 : vector<1x128xf32> to vector<64x128xf32>
    %10 = arith.mulf %8, %9 : vector<64x128xf32>
    %11 = arith.addf %5, %10 : vector<64x128xf32>
    %12 = arith.truncf %11 : vector<64x128xf32> to vector<64x128xbf16>
    %c0_9 = arith.constant 0 : index
    %c0_10 = arith.constant 0 : index
    %13 = vector.load %arg6[%c0_9, %c0_10] : memref<64x128xbf16, #tpu.memory_space<vmem>>, vector<64x128xbf16>
    tpu.vector_store %arg6[%c0_9, %c0_10], %12 {strides = array<i32>} : memref<64x128xbf16, #tpu.memory_space<vmem>>, vector<64x128xbf16>,
    return
  }
  func.func @transform_0(%arg0: i32) -> (i32, i32) {
    %c0_i32 = arith.constant 0 : i32
    %c0_i32_0 = arith.constant 0 : i32
    return %arg0, %c0_i32 : i32, i32
  }
  func.func @transform_1(%arg0: i32) -> (i32, i32) {
    %c0_i32 = arith.constant 0 : i32
    %c0_i32_0 = arith.constant 0 : i32
    %c0_i32_1 = arith.constant 0 : i32
    return %c0_i32, %c0_i32_0 : i32, i32
  }
  func.func @transform_2(%arg0: i32) -> (i32, i32) {
    %c0_i32 = arith.constant 0 : i32
    %c0_i32_0 = arith.constant 0 : i32
    %c0_i32_1 = arith.constant 0 : i32
    return %c0_i32, %c0_i32_0 : i32, i32
  }
  func.func @transform_3(%arg0: i32) -> (i32, i32) {
    %c0_i32 = arith.constant 0 : i32
    %c0_i32_0 = arith.constant 0 : i32
    return %arg0, %c0_i32 : i32, i32
  }
  func.func @transform_4(%arg0: i32) -> (i32, i32) {
    %c0_i32 = arith.constant 0 : i32
    %c0_i32_0 = arith.constant 0 : i32
    %c0_i32_1 = arith.constant 0 : i32
    return %c0_i32, %c0_i32_0 : i32, i32
  }
  func.func @transform_5(%arg0: i32) -> (i32, i32) {
    %c0_i32 = arith.constant 0 : i32
    %c0_i32_0 = arith.constant 0 : i32
    return %arg0, %c0_i32 : i32, i32
  }
}

module attributes {stable_mosaic.version = 11 : i64} {
  func.func @_fused_mm_kernel(%arg0: i32, %arg1: memref<64x288xbf16, #tpu.memory_space<vmem>>, %arg2: memref<288x128xbf16, #tpu.memory_space<vmem>>, %arg3: memref<1x128xf32, #tpu.memory_space<vmem>>, %arg4: memref<64x128xbf16, #tpu.memory_space<vmem>>) attributes {dimension_semantics = [#tpu.dimension_semantics<parallel>], iteration_bounds = array<i64: 2>, scalar_prefetch = 0 : i64, scratch_operands = 0 : i64, tpu.core_type = #tpu.core_type<tc>, window_params = [{transform_indices = @transform_0, window_bounds = array<i64: 64, 288>}, {pipeline_mode = #tpu.pipeline_mode<synchronous>, transform_indices = @transform_1, window_bounds = array<i64: 288, 128>}, {pipeline_mode = #tpu.pipeline_mode<synchronous>, transform_indices = @transform_2, window_bounds = array<i64: 1, 128>}, {transform_indices = @transform_3, window_bounds = array<i64: 64, 128>}]} {
    %c0 = arith.constant 0 : index
    %c0_0 = arith.constant 0 : index
    %0 = vector.load %arg1[%c0, %c0_0] : memref<64x288xbf16, #tpu.memory_space<vmem>>, vector<64x288xbf16>
    %cst = arith.constant 0.000000e+00 : bf16
    %1 = vector.broadcast %cst : bf16 to vector<64x288xbf16>
    %2 = arith.maximumf %0, %1 : vector<64x288xbf16>
    %c0_1 = arith.constant 0 : index
    %c0_2 = arith.constant 0 : index
    %3 = vector.load %arg2[%c0_1, %c0_2] : memref<288x128xbf16, #tpu.memory_space<vmem>>, vector<288x128xbf16>
    %cst_3 = arith.constant dense<0.000000e+00> : vector<64x128xf32>
    %4 = tpu.matmul %2, %3, %cst_3 {dimension_numbers = #tpu.dot_dimension_numbers<[1], [0], [0], [1], [0, 0, 1, 1], [], []>} : vector<64x288xbf16>, vector<288x128xbf16>, vector<64x128xf32> -> vector<64x128xf32>
    %c0_4 = arith.constant 0 : index
    %c0_5 = arith.constant 0 : index
    %5 = vector.load %arg3[%c0_4, %c0_5] : memref<1x128xf32, #tpu.memory_space<vmem>>, vector<1x128xf32>
    %6 = vector.broadcast %5 : vector<1x128xf32> to vector<64x128xf32>
    %7 = arith.addf %4, %6 : vector<64x128xf32>
    %cst_6 = arith.constant 0.000000e+00 : f32
    %8 = vector.broadcast %cst_6 : f32 to vector<64x128xf32>
    %9 = arith.maximumf %7, %8 : vector<64x128xf32>
    %10 = arith.truncf %9 : vector<64x128xf32> to vector<64x128xbf16>
    %c0_7 = arith.constant 0 : index
    %c0_8 = arith.constant 0 : index
    %11 = vector.load %arg4[%c0_7, %c0_8] : memref<64x128xbf16, #tpu.memory_space<vmem>>, vector<64x128xbf16>
    tpu.vector_store %arg4[%c0_7, %c0_8], %10 {strides = array<i32>} : memref<64x128xbf16, #tpu.memory_space<vmem>>, vector<64x128xbf16>,
    return
  }
  func.func @transform_0(%arg0: i32) -> (i32, i32) {
    %c0_i32 = arith.constant 0 : i32
    %c0_i32_0 = arith.constant 0 : i32
    return %arg0, %c0_i32 : i32, i32
  }
  func.func @transform_1(%arg0: i32) -> (i32, i32) {
    %c0_i32 = arith.constant 0 : i32
    %c0_i32_0 = arith.constant 0 : i32
    %c0_i32_1 = arith.constant 0 : i32
    return %c0_i32, %c0_i32_0 : i32, i32
  }
  func.func @transform_2(%arg0: i32) -> (i32, i32) {
    %c0_i32 = arith.constant 0 : i32
    %c0_i32_0 = arith.constant 0 : i32
    %c0_i32_1 = arith.constant 0 : i32
    return %c0_i32, %c0_i32_0 : i32, i32
  }
  func.func @transform_3(%arg0: i32) -> (i32, i32) {
    %c0_i32 = arith.constant 0 : i32
    %c0_i32_0 = arith.constant 0 : i32
    return %arg0, %c0_i32 : i32, i32
  }
}

module attributes {stable_mosaic.version = 11 : i64} {
  func.func @_fused_mm_kernel(%arg0: i32, %arg1: memref<256x784xbf16, #tpu.memory_space<vmem>>, %arg2: memref<784x128xbf16, #tpu.memory_space<vmem>>, %arg3: memref<1x128xf32, #tpu.memory_space<vmem>>, %arg4: memref<256x128xf32, #tpu.memory_space<vmem>>) attributes {dimension_semantics = [#tpu.dimension_semantics<parallel>], iteration_bounds = array<i64: 2>, scalar_prefetch = 0 : i64, scratch_operands = 0 : i64, tpu.core_type = #tpu.core_type<tc>, window_params = [{transform_indices = @transform_0, window_bounds = array<i64: 256, 784>}, {pipeline_mode = #tpu.pipeline_mode<synchronous>, transform_indices = @transform_1, window_bounds = array<i64: 784, 128>}, {pipeline_mode = #tpu.pipeline_mode<synchronous>, transform_indices = @transform_2, window_bounds = array<i64: 1, 128>}, {transform_indices = @transform_3, window_bounds = array<i64: 256, 128>}]} {
    %c0 = arith.constant 0 : index
    %c0_0 = arith.constant 0 : index
    %0 = vector.load %arg1[%c0, %c0_0] : memref<256x784xbf16, #tpu.memory_space<vmem>>, vector<256x784xbf16>
    %c0_1 = arith.constant 0 : index
    %c0_2 = arith.constant 0 : index
    %1 = vector.load %arg2[%c0_1, %c0_2] : memref<784x128xbf16, #tpu.memory_space<vmem>>, vector<784x128xbf16>
    %cst = arith.constant dense<0.000000e+00> : vector<256x128xf32>
    %2 = tpu.matmul %0, %1, %cst {dimension_numbers = #tpu.dot_dimension_numbers<[1], [0], [0], [1], [0, 0, 1, 1], [], []>} : vector<256x784xbf16>, vector<784x128xbf16>, vector<256x128xf32> -> vector<256x128xf32>
    %c0_3 = arith.constant 0 : index
    %c0_4 = arith.constant 0 : index
    %3 = vector.load %arg3[%c0_3, %c0_4] : memref<1x128xf32, #tpu.memory_space<vmem>>, vector<1x128xf32>
    %4 = vector.broadcast %3 : vector<1x128xf32> to vector<256x128xf32>
    %5 = arith.addf %2, %4 : vector<256x128xf32>
    %c0_5 = arith.constant 0 : index
    %c0_6 = arith.constant 0 : index
    %6 = vector.load %arg4[%c0_5, %c0_6] : memref<256x128xf32, #tpu.memory_space<vmem>>, vector<256x128xf32>
    tpu.vector_store %arg4[%c0_5, %c0_6], %5 {strides = array<i32>} : memref<256x128xf32, #tpu.memory_space<vmem>>, vector<256x128xf32>,
    return
  }
  func.func @transform_0(%arg0: i32) -> (i32, i32) {
    %c0_i32 = arith.constant 0 : i32
    %c0_i32_0 = arith.constant 0 : i32
    return %arg0, %c0_i32 : i32, i32
  }
  func.func @transform_1(%arg0: i32) -> (i32, i32) {
    %c0_i32 = arith.constant 0 : i32
    %c0_i32_0 = arith.constant 0 : i32
    %c0_i32_1 = arith.constant 0 : i32
    return %c0_i32, %c0_i32_0 : i32, i32
  }
  func.func @transform_2(%arg0: i32) -> (i32, i32) {
    %c0_i32 = arith.constant 0 : i32
    %c0_i32_0 = arith.constant 0 : i32
    %c0_i32_1 = arith.constant 0 : i32
    return %c0_i32, %c0_i32_0 : i32, i32
  }
  func.func @transform_3(%arg0: i32) -> (i32, i32) {
    %c0_i32 = arith.constant 0 : i32
    %c0_i32_0 = arith.constant 0 : i32
    return %arg0, %c0_i32 : i32, i32
  }
}

</mosaic_0001>

<llo_original>
// kernel: tile.23
$region0: #{tile.23}
  %s0 = inlined_call_operand.vmem [shape: f32[4,32], index: 0, kind: input, shape index: {}]
  %s1 = inlined_call_operand.vmem [shape: f32[1,128], index: 1, kind: output, shape index: {}]
  $region1: #{tile.23} parent=0
    #allocation0 [shape = 'u8[4096]{0}', space=vmem, size = 0x1000, scoped, tag = 'scoped mem for output reshape']
    #allocation1 [shape = 'u8[4096]{0}', space=vmem, size = 0x1000, scoped, tag = 'scoped mem for input reshape']
    %s3 = ssub.s32 16, 1
    %v4 = vld [vmem:[%s0] sm:%s3]
    %5 = vst [vmem:[#allocation1] sm:%s3] %v4
    %v6 = vld [vmem:[#allocation1] sm:$0x1]
    %vm7 = vcmask 261120
    %8 = vst.msk [vmem:[#allocation0] sm:$0x1] %vm7, %v6
    %s9 = scalar_lea.vmem [#allocation1], 3
    %v10 = vld [vmem:[%s9] sm:$0x1]
    %11 = vrot.lane.b32.xlu0 %v10, 96
    %v12 = vpop.permute.xlu0 %11
    %vm13 = vcmask 1048320
    %14 = vst.msk [vmem:[#allocation0] sm:$0x1] %vm13, %v12
    %s15 = scalar_lea.vmem [#allocation1], 2
    %v16 = vld [vmem:[%s15] sm:$0x1]
    %17 = vrot.lane.b32.xlu0 %v16, 64
    %v18 = vpop.permute.xlu0 %17
    %vm19 = vcmask 785920
    %20 = vst.msk [vmem:[#allocation0] sm:$0x1] %vm19, %v18
    %s21 = scalar_lea.vmem [#allocation1], 1
    %v22 = vld [vmem:[%s21] sm:$0x1]
    %23 = vrot.lane.b32.xlu0 %v22, 32
    %v24 = vpop.permute.xlu0 %23
    %vm25 = vcmask 523520
    %26 = vst.msk [vmem:[#allocation0] sm:$0x1] %vm25, %v24
    %s28 = ssub.s32 2, 1
    %v29 = vld [vmem:[#allocation0] sm:%s28]
    %s31 = ssub.s32 2, 1
    %32 = vst [vmem:[%s1] sm:%s31] %v29

// kernel: tile.31
$region0: #{tile.31}
  %s0 = inlined_call_operand.vmem [shape: f32[4,16], index: 0, kind: input, shape index: {}]
  %s1 = inlined_call_operand.vmem [shape: f32[64], index: 1, kind: output, shape index: {}]
  $region1: #{tile.31} parent=0
    #allocation0 [shape = 'u8[4096]{0}', space=vmem, size = 0x1000, scoped, tag = 'scoped mem for output reshape']
    #allocation1 [shape = 'u8[4096]{0}', space=vmem, size = 0x1000, scoped, tag = 'scoped mem for input reshape']
    %s3 = ssub.s32 16, 1
    %v4 = vld [vmem:[%s0] sm:%s3]
    %5 = vst [vmem:[#allocation1] sm:%s3] %v4
    %v6 = vld [vmem:[#allocation1] sm:$0x1]
    %vm7 = vcmask 130048
    %8 = vst.msk [vmem:[#allocation0] sm:$0x1] %vm7, %v6
    %s9 = scalar_lea.vmem [#allocation1], 3
    %v10 = vld [vmem:[%s9] sm:$0x1]
    %11 = vrot.lane.b32.xlu0 %v10, 48
    %v12 = vpop.permute.xlu0 %11
    %vm13 = vcmask 523648
    %14 = vst.msk [vmem:[#allocation0] sm:$0x1] %vm13, %v12
    %s15 = scalar_lea.vmem [#allocation1], 2
    %v16 = vld [vmem:[%s15] sm:$0x1]
    %17 = vrot.lane.b32.xlu0 %v16, 32
    %v18 = vpop.permute.xlu0 %17
    %vm19 = vcmask 392448
    %20 = vst.msk [vmem:[#allocation0] sm:$0x1] %vm19, %v18
    %s21 = scalar_lea.vmem [#allocation1], 1
    %v22 = vld [vmem:[%s21] sm:$0x1]
    %23 = vrot.lane.b32.xlu0 %v22, 16
    %v24 = vpop.permute.xlu0 %23
    %vm25 = vcmask 261248
    %26 = vst.msk [vmem:[#allocation0] sm:$0x1] %vm25, %v24
    %s28 = ssub.s32 2, 1
    %v29 = vld [vmem:[#allocation0] sm:%s28]
    %s31 = ssub.s32 2, 1
    %32 = vst [vmem:[%s1] sm:%s31] %v29

// kernel: tile.22
$region0: #{tile.22}
  #allocation2 [shape = 's32[1]{0}', space=sflag, size = 0x4, scoped, tag = 'scoped memory for tile.22']
  %s0 = inlined_call_operand.hbm [shape: f32[32], index: 0, kind: input, shape index: {}]
  %s1 = inlined_call_operand.vmem [shape: f32[4,32], index: 1, kind: output, shape index: {}]
  $region1: #{tile.22} parent=0
    #allocation0 [shape = 'u8[512]{0}', space=vmem, size = 0x400, scoped, tag = 'operand span for operand 0']
    #allocation1 [shape = 's32[1]{0}', space=sflag, size = 0x4, scoped, tag = 'scoped memory for tile.22']
    %2 = vsyncpa [#allocation1], 0
    // Predicated region
    $region2: #{tile.22} parent=1 // pred_check
      _
    $region3: #{tile.22} parent=1 // pred_check_branch
      %4 = sbr.rel (0) target = $region5
    $region4: #{tile.22} parent=1 // pred_region
      %6 = vsyncadd [#allocation1], 0
      %s8 = sshll.u32 %s0, 4
      %s9 = int_to_ptr.hbm [resolvable:$true] %s8
      %s10 = sshll.u32 [#allocation0], 4
      %s11 = int_to_ptr.vmem [resolvable:$true] %s10
      %13 = dma.hbm_to_vmem [thread:$0]  %s9, 16, %s11, [#allocation1]
    $region5: #{tile.22} parent=1 // pred_fallthru
      _
    // Predicated region
    $region6: #{tile.22} parent=1 // pred_check
      _
    $region7: #{tile.22} parent=1 // pred_check_branch
      %15 = sbr.rel (0) target = $region9
    $region8: #{tile.22} parent=1 // pred_region
      %17 = dma.done [#allocation1], 16
    $region9: #{tile.22} parent=1 // pred_fallthru
      _
    %v18 = vld [vmem:[#allocation0] ss:$0 sm:$0xff]
    %19 = vst [vmem:[%s1] sm:$0xf] %v18
    %20 = vsyncpa [#allocation1], 1

// kernel: tile.30
$region0: #{tile.30}
  #allocation2 [shape = 's32[1]{0}', space=sflag, size = 0x4, scoped, tag = 'scoped memory for tile.30']
  %s0 = inlined_call_operand.hbm [shape: f32[16], index: 0, kind: input, shape index: {}]
  %s1 = inlined_call_operand.vmem [shape: f32[4,16], index: 1, kind: output, shape index: {}]
  $region1: #{tile.30} parent=0
    #allocation0 [shape = 'u8[512]{0}', space=vmem, size = 0x400, scoped, tag = 'operand span for operand 0']
    #allocation1 [shape = 's32[1]{0}', space=sflag, size = 0x4, scoped, tag = 'scoped memory for tile.30']
    %2 = vsyncpa [#allocation1], 0
    // Predicated region
    $region2: #{tile.30} parent=1 // pred_check
      _
    $region3: #{tile.30} parent=1 // pred_check_branch
      %4 = sbr.rel (0) target = $region5
    $region4: #{tile.30} parent=1 // pred_region
      %6 = vsyncadd [#allocation1], 0
      %s8 = sshll.u32 %s0, 4
      %s9 = int_to_ptr.hbm [resolvable:$true] %s8
      %s10 = sshll.u32 [#allocation0], 4
      %s11 = int_to_ptr.vmem [resolvable:$true] %s10
      %13 = dma.hbm_to_vmem [thread:$0]  %s9, 16, %s11, [#allocation1]
    $region5: #{tile.30} parent=1 // pred_fallthru
      _
    // Predicated region
    $region6: #{tile.30} parent=1 // pred_check
      _
    $region7: #{tile.30} parent=1 // pred_check_branch
      %15 = sbr.rel (0) target = $region9
    $region8: #{tile.30} parent=1 // pred_region
      %17 = dma.done [#allocation1], 16
    $region9: #{tile.30} parent=1 // pred_fallthru
      _
    %v18 = vld [vmem:[#allocation0] ss:$0 sm:$0xff]
    %19 = vst [vmem:[%s1] sm:$0xf] %v18
    %20 = vsyncpa [#allocation1], 1

// kernel: _lambda_.9
$region0: #{_lambda_.9}
  #allocation0 [shape = 'u32[]', space=smem, size = 0x4, offset = 0x4, fixed_abs, tag = 'smem constant byte address 0x4 - core index']
  #allocation1 [shape = 'u32[72,128]{1,0:T(1,128)}', space=vmem, size = 0x9000, scoped, tag = 'internal scratch']
  %s0 = inlined_call_operand.vmem [shape: bf16[128,128], index: 0, kind: input, shape index: {}]
  %s1 = inlined_call_operand.hbm [shape: bf16[128,128], index: 1, kind: input, shape index: {}]
  %s2 = inlined_call_operand.hbm [shape: f32[1,128], index: 2, kind: input, shape index: {}]
  %s3 = inlined_call_operand.vmem [shape: bf16[128,128], index: 3, kind: output, shape index: {}]
  %s4 = sld [smem:[#allocation0]]
  $region53: #{_lambda_.9} parent=0
    _
  %s6 = ssub.s32 1, %s4
  %s7 = scalar_select 0, %s6, %s4
  $region1: #{_lambda_.9} parent=0
    #allocation2 [shape = 'u8[32768]{0}', space=vmem, size = 0x8000, scoped, tag = 'input window, operand 1, single buffered']
    #allocation3 [shape = 's32[2]{0}', space=sflag, size = 0x8, scoped, tag = 'scoped memory for _lambda_.9']
    #allocation4 [shape = 'u8[512]{0}', space=vmem, size = 0x400, scoped, tag = 'input window, operand 2, single buffered']
    #allocation5 [shape = 's32[1]{0}', space=sflag, size = 0x4, scoped, tag = 'scoped memory for _lambda_.9']
    %8 = vsyncpa [#allocation3], 0
    %9 = vsyncpa [#allocation5], 0
    loop: start=0, step=1, limit=4
    $region2: #{_lambda_.9} parent=1 // loop_pre_header
      _
    $region3: #{_lambda_.9} parent=1 // loop_header
      %s11 = sphi 0, %s15
      %p12 = scmp.ge.s32.totalorder %s11, 4
      %s21 = sphi 0, %s23
      %s24 = sphi 0, %s21
      %s25 = sphi 0, %s24
      %s41 = sphi 0, %s25
      %s45 = sphi 0, %s45
      %s47 = sphi 0, %s45
      %s48 = sphi 0, %s47
      %s62 = sphi 0, %s48
      %s66 = sphi 0, %s66
      %s68 = sphi 0, %s66
      %s69 = sphi 0, %s68
      %s83 = sphi 0, %s69
      %s89 = sphi 0, %s91
      %s92 = sphi 0, %s89
      %s93 = sphi 0, %s92
      %s109 = sphi 0, %s93
    $region4: #{_lambda_.9} parent=1 // loop_header_branch
      %14 = sbr.rel (%p12) target = $region8
    $region5: #{_lambda_.9} parent=1 // loop_body
      %s16 = ssub.s32 %s11, 1
      %s17 = ssub.s32 %s11, 2
      %s18 = sadd.s32 %s11, 1
      %s19 = ssub.s32 %s11, %s18
      %p20 = scmp.eq.s32.totalorder %s19, 0
      %s22 = sadd.s32 %s21, 1
      %s23 = scalar_select %p20, %s21, %s22
      %p26 = pneg %p20
      %p27 = scmp.eq.s32.totalorder %s11, 1
      %p28 = por %p26, %p27
      %p29 = scmp.ne.s32.totalorder %s21, %s24
      %p30 = scmp.eq.s32.totalorder %s11, 0
      %p31 = por %p29, %p30
      %p32 = scmp.ne.s32.totalorder %s21, %s24
      %p33 = scmp.eq.s32.totalorder %s16, 1
      %p34 = por %p32, %p33
      %p35 = scmp.ne.s32.totalorder %s24, %s25
      %p36 = scmp.eq.s32.totalorder %s16, 0
      %p37 = por %p35, %p36
      %p38 = scmp.ne.s32.totalorder %s24, %s25
      %p39 = scmp.eq.s32.totalorder %s17, 1
      %p40 = por %p38, %p39
      %p42 = scmp.ne.s32.totalorder %s25, %s41
      %p43 = scmp.eq.s32.totalorder %s17, 0
      %p44 = por %p42, %p43
      %s46 = sadd.s32 %s45, 1
      %p49 = scmp.eq.s32.totalorder %s11, 1
      %p50 = scmp.ne.s32.totalorder %s45, %s47
      %p51 = scmp.eq.s32.totalorder %s11, 0
      %p52 = por %p50, %p51
      %p53 = scmp.ne.s32.totalorder %s45, %s47
      %p54 = scmp.eq.s32.totalorder %s16, 1
      %p55 = por %p53, %p54
      %p56 = scmp.ne.s32.totalorder %s47, %s48
      %p57 = scmp.eq.s32.totalorder %s16, 0
      %p58 = por %p56, %p57
      %p59 = scmp.ne.s32.totalorder %s47, %s48
      %p60 = scmp.eq.s32.totalorder %s17, 1
      %p61 = por %p59, %p60
      %p63 = scmp.ne.s32.totalorder %s48, %s62
      %p64 = scmp.eq.s32.totalorder %s17, 0
      %p65 = por %p63, %p64
      %s67 = sadd.s32 %s66, 1
      %p70 = scmp.eq.s32.totalorder %s11, 1
      %p71 = scmp.ne.s32.totalorder %s66, %s68
      %p72 = scmp.eq.s32.totalorder %s11, 0
      %p73 = por %p71, %p72
      %p74 = scmp.ne.s32.totalorder %s66, %s68
      %p75 = scmp.eq.s32.totalorder %s16, 1
      %p76 = por %p74, %p75
      %p77 = scmp.ne.s32.totalorder %s68, %s69
      %p78 = scmp.eq.s32.totalorder %s16, 0
      %p79 = por %p77, %p78
      %p80 = scmp.ne.s32.totalorder %s68, %s69
      %p81 = scmp.eq.s32.totalorder %s17, 1
      %p82 = por %p80, %p81
      %p84 = scmp.ne.s32.totalorder %s69, %s83
      %p85 = scmp.eq.s32.totalorder %s17, 0
      %p86 = por %p84, %p85
      %s87 = ssub.s32 %s11, %s18
      %p88 = scmp.eq.s32.totalorder %s87, 0
      %s90 = sadd.s32 %s89, 1
      %s91 = scalar_select %p88, %s89, %s90
      %p94 = pneg %p88
      %p95 = scmp.eq.s32.totalorder %s11, 1
      %p96 = por %p94, %p95
      %p97 = scmp.ne.s32.totalorder %s89, %s92
      %p98 = scmp.eq.s32.totalorder %s11, 0
      %p99 = por %p97, %p98
      %p100 = scmp.ne.s32.totalorder %s89, %s92
      %p101 = scmp.eq.s32.totalorder %s16, 1
      %p102 = por %p100, %p101
      %p103 = scmp.ne.s32.totalorder %s92, %s93
      %p104 = scmp.eq.s32.totalorder %s16, 0
      %p105 = por %p103, %p104
      %p106 = scmp.ne.s32.totalorder %s92, %s93
      %p107 = scmp.eq.s32.totalorder %s17, 1
      %p108 = por %p106, %p107
      %p110 = scmp.ne.s32.totalorder %s93, %s109
      %p111 = scmp.eq.s32.totalorder %s17, 0
      %p112 = por %p110, %p111
      %p113 = scmp.le.s32.totalorder 1, %s11
      %p114 = scmp.lt.s32.totalorder %s11, 3
      %p115 = pnand %p113, %p114
      %p116 = pneg %p115
      // Predicated region
      $region9: #{_lambda_.9} parent=5 // pred_check
        _
      $region10: #{_lambda_.9} parent=5 // pred_check_branch
        %118 = sbr.rel (%p115) target = $region12
      $region11: #{_lambda_.9} parent=5 // pred_region
        %s119 = ssub.s32 %s11, 1
        // Predicated region
        $region13: #{_lambda_.9} parent=11 // pred_check
          %p120 = pneg %p58
        $region14: #{_lambda_.9} parent=11 // pred_check_branch
          %122 = sbr.rel (%p120) target = $region16
        $region15: #{_lambda_.9} parent=11 // pred_region
          %124 = vsyncadd [#allocation3], 0
          %s125 = sshll.u32 %s1, 4
          %s126 = int_to_ptr.hbm [resolvable:$true] %s125
          %s127 = sshll.u32 [#allocation2], 4
          %s128 = int_to_ptr.vmem [resolvable:$true] %s127
          %133 = dma.hbm_to_vmem [thread:$0]  %s126, 1024, %s128, [#allocation3], 64, 64, 4
        $region16: #{_lambda_.9} parent=11 // pred_fallthru
          _
        // Predicated region
        $region17: #{_lambda_.9} parent=11 // pred_check
          %p134 = pneg %p79
        $region18: #{_lambda_.9} parent=11 // pred_check_branch
          %136 = sbr.rel (%p134) target = $region20
        $region19: #{_lambda_.9} parent=11 // pred_region
          %138 = vsyncadd [#allocation5], 0
          %s140 = sshll.u32 %s2, 4
          %s141 = int_to_ptr.hbm [resolvable:$true] %s140
          %s142 = sshll.u32 [#allocation4], 4
          %s143 = int_to_ptr.vmem [resolvable:$true] %s142
          %145 = dma.hbm_to_vmem [thread:$0]  %s141, 16, %s143, [#allocation5]
        $region20: #{_lambda_.9} parent=11 // pred_fallthru
          _
      $region12: #{_lambda_.9} parent=5 // pred_fallthru
        _
      %p146 = scmp.lt.s32.totalorder %s11, 2
      // Predicated region
      $region21: #{_lambda_.9} parent=5 // pred_check
        %p147 = pneg %p146
      $region22: #{_lambda_.9} parent=5 // pred_check_branch
        %149 = sbr.rel (%p147) target = $region24
      $region23: #{_lambda_.9} parent=5 // pred_region
        // Predicated region
        $region25: #{_lambda_.9} parent=23 // pred_check
          %p150 = pneg %p31
        $region26: #{_lambda_.9} parent=23 // pred_check_branch
          %152 = sbr.rel (%p150) target = $region28
        $region27: #{_lambda_.9} parent=23 // pred_region
          %s153 = smul.u32 8, %s11
          %p154 = scmp.lt.s32.totalorder %s153, 15
          %s155 = scalar_select %p154, %s153, 15
          %s156 = smul.addr %s155, 4
          %s157 = scalar_lea.vmem %s0, %s156
          %s158 = smul.u32 8, %s11
        $region28: #{_lambda_.9} parent=23 // pred_fallthru
          _
      $region24: #{_lambda_.9} parent=5 // pred_fallthru
        _
      %p159 = scmp.le.s32.totalorder 1, %s11
      %p160 = scmp.lt.s32.totalorder %s11, 3
      %p161 = pnand %p159, %p160
      %p162 = pneg %p161
      // Predicated region
      $region29: #{_lambda_.9} parent=5 // pred_check
        _
      $region30: #{_lambda_.9} parent=5 // pred_check_branch
        %164 = sbr.rel (%p161) target = $region32
      $region31: #{_lambda_.9} parent=5 // pred_region
        %s165 = ssub.s32 %s11, 1
        // Predicated region
        $region33: #{_lambda_.9} parent=31 // pred_check
          %p166 = pneg %p58
        $region34: #{_lambda_.9} parent=31 // pred_check_branch
          %168 = sbr.rel (%p166) target = $region36
        $region35: #{_lambda_.9} parent=31 // pred_region
          %170 = dma.done [#allocation3], 1024
        $region36: #{_lambda_.9} parent=31 // pred_fallthru
          _
        // Predicated region
        $region37: #{_lambda_.9} parent=31 // pred_check
          %p171 = pneg %p79
        $region38: #{_lambda_.9} parent=31 // pred_check_branch
          %173 = sbr.rel (%p171) target = $region40
        $region39: #{_lambda_.9} parent=31 // pred_region
          %175 = dma.done [#allocation5], 16
        $region40: #{_lambda_.9} parent=31 // pred_fallthru
          _
        %s176 = smul.u32 8, %s16
        %p177 = scmp.lt.s32.totalorder %s176, 15
        %s178 = scalar_select %p177, %s176, 15
        %s179 = smul.addr %s178, 4
        %s180 = scalar_lea.vmem %s0, %s179
        %p181 = pneg %p37
        %p182 = pneg %p34
        %p183 = pneg %p58
        %p184 = pneg %p55
        %p185 = pneg %p79
        %p186 = pneg %p76
        %p187 = pneg %p105
        %p188 = pneg %p102
        %s189 = smul.u32 8, %s16
        %p190 = scmp.lt.s32.totalorder %s189, 15
        %s191 = scalar_select %p190, %s189, 15
        %s192 = smul.addr %s191, 4
        %s193 = scalar_lea.vmem %s3, %s192
        %s194 = smul.u32 8, %s16
        %p195 = scmp.lt.s32.totalorder %s194, 15
        %s196 = scalar_select %p195, %s194, 15
        %s197 = smul.addr %s196, 4
        %s198 = scalar_lea.vmem %s0, %s197
        %s199 = smul.u32 8, %s16
        %s200 = smul.u32 8, %s16
        %p201 = scmp.lt.s32.totalorder %s200, 15
        %s202 = scalar_select %p201, %s200, 15
        %s203 = smul.addr %s202, 4
        %s204 = scalar_lea.vmem %s3, %s203
        %s205 = smul.u32 8, %s16
        %v206 = vld [vmem:[%s198] sm:$0xf]
        %v207 = vld [vmem:[%s198 + $0x4] sm:$0xf]
        %v208 = vld [vmem:[%s198 + $0x8] sm:$0xf]
        %v209 = vld [vmem:[%s198 + $0xc] sm:$0xf]
        %v210 = vld [vmem:[%s198 + $0x10] sm:$0xf]
        %v211 = vld [vmem:[%s198 + $0x14] sm:$0xf]
        %v212 = vld [vmem:[%s198 + $0x18] sm:$0xf]
        %v213 = vld [vmem:[%s198 + $0x1c] sm:$0xf]
        %v214 = vld [vmem:[#allocation2] sm:$0xf]
        %v215 = vld [vmem:[#allocation2 + $0x4] sm:$0xf]
        %v216 = vld [vmem:[#allocation2 + $0x8] sm:$0xf]
        %v217 = vld [vmem:[#allocation2 + $0xc] sm:$0xf]
        %v218 = vld [vmem:[#allocation2 + $0x10] sm:$0xf]
        %v219 = vld [vmem:[#allocation2 + $0x14] sm:$0xf]
        %v220 = vld [vmem:[#allocation2 + $0x18] sm:$0xf]
        %v221 = vld [vmem:[#allocation2 + $0x1c] sm:$0xf]
        %v222 = vld [vmem:[#allocation2 + $0x20] sm:$0xf]
        %v223 = vld [vmem:[#allocation2 + $0x24] sm:$0xf]
        %v224 = vld [vmem:[#allocation2 + $0x28] sm:$0xf]
        %v225 = vld [vmem:[#allocation2 + $0x2c] sm:$0xf]
        %v226 = vld [vmem:[#allocation2 + $0x30] sm:$0xf]
        %v227 = vld [vmem:[#allocation2 + $0x34] sm:$0xf]
        %v228 = vld [vmem:[#allocation2 + $0x38] sm:$0xf]
        %v229 = vld [vmem:[#allocation2 + $0x3c] sm:$0xf]
        %v230 = vld [vmem:[#allocation4] sm:$0x1]
        %v232 = vperm.slane %v230, 0
        %v242 = vunpack.c.l.b16 %v206
        %v243 = vunpack.c.l.b16 %v207
        %v244 = vunpack.c.l.b16 %v208
        %v245 = vunpack.c.l.b16 %v209
        %v246 = vunpack.c.l.b16 %v210
        %v247 = vunpack.c.l.b16 %v211
        %v248 = vunpack.c.l.b16 %v212
        %v249 = vunpack.c.l.b16 %v213
        %v250 = vpack.c.b16 %v243, %v242
        %v251 = vpack.c.b16 %v245, %v244
        %v252 = vpack.c.b16 %v247, %v246
        %v253 = vpack.c.b16 %v249, %v248
        %v274 = vunpack.c.l.b16 %v214
        %v275 = vunpack.c.l.b16 %v215
        %v276 = vunpack.c.l.b16 %v216
        %v277 = vunpack.c.l.b16 %v217
        %v278 = vunpack.c.l.b16 %v218
        %v279 = vunpack.c.l.b16 %v219
        %v280 = vunpack.c.l.b16 %v220
        %v281 = vunpack.c.l.b16 %v221
        %v282 = vunpack.c.l.b16 %v222
        %v283 = vunpack.c.l.b16 %v223
        %v284 = vunpack.c.l.b16 %v224
        %v285 = vunpack.c.l.b16 %v225
        %v286 = vunpack.c.l.b16 %v226
        %v287 = vunpack.c.l.b16 %v227
        %v288 = vunpack.c.l.b16 %v228
        %v289 = vunpack.c.l.b16 %v229
        %v290 = vpack.c.b16 %v275, %v274
        %v291 = vpack.c.b16 %v277, %v276
        %v292 = vpack.c.b16 %v279, %v278
        %v293 = vpack.c.b16 %v281, %v280
        %v294 = vpack.c.b16 %v283, %v282
        %v295 = vpack.c.b16 %v285, %v284
        %v296 = vpack.c.b16 %v287, %v286
        %v297 = vpack.c.b16 %v289, %v288
        %306 = vmatpush.bf16.msra.mxu0 %v297
        %307 = vmatpush.bf16.msra.mxu0 %v296
        %308 = vmatpush.bf16.msra.mxu0 %v295
        %309 = vmatpush.bf16.msra.mxu0 %v294
        %310 = vmatpush.bf16.msra.mxu0 %v293
        %311 = vmatpush.bf16.msra.mxu0 %v292
        %312 = vmatpush.bf16.msra.mxu0 %v291
        %313 = vmatpush.bf16.msra.mxu0 %v290
        %314 = vmatmul.bf16.gmra.mxu0 %v250
        %v315 = vpop.f32.mrf.mxu0
        %v316 = vadd.f32 %v232, %v315
        %v317 = vpop.f32.mrf.mxu0
        %v318 = vadd.f32 %v232, %v317
        %319 = vmatmul.bf16.gmra.mxu0 %v251
        %v320 = vpop.f32.mrf.mxu0
        %v321 = vadd.f32 %v232, %v320
        %v322 = vpop.f32.mrf.mxu0
        %v323 = vadd.f32 %v232, %v322
        %324 = vmatmul.bf16.gmra.mxu0 %v252
        %v325 = vpop.f32.mrf.mxu0
        %v326 = vadd.f32 %v232, %v325
        %v327 = vpop.f32.mrf.mxu0
        %v328 = vadd.f32 %v232, %v327
        %329 = vmatmul.bf16.gmra.mxu0 %v253
        %v330 = vpop.f32.mrf.mxu0
        %v331 = vadd.f32 %v232, %v330
        %v332 = vpop.f32.mrf.mxu0
        %v333 = vadd.f32 %v232, %v332
        %334 = vdwg.mxu0
        %v335 = vpack.c.bf16 %v316, %v316
        %v336 = vpack.c.bf16 %v318, %v318
        %v337 = vpack.c.bf16 %v321, %v321
        %v338 = vpack.c.bf16 %v323, %v323
        %v339 = vpack.c.bf16 %v326, %v326
        %v340 = vpack.c.bf16 %v328, %v328
        %v341 = vpack.c.bf16 %v331, %v331
        %v342 = vpack.c.bf16 %v333, %v333
        %343 = vst [vmem:[%s204] sm:$0xf] %v335
        %344 = vst [vmem:[%s204 + $0x4] sm:$0xf] %v336
        %345 = vst [vmem:[%s204 + $0x8] sm:$0xf] %v337
        %346 = vst [vmem:[%s204 + $0xc] sm:$0xf] %v338
        %347 = vst [vmem:[%s204 + $0x10] sm:$0xf] %v339
        %348 = vst [vmem:[%s204 + $0x14] sm:$0xf] %v340
        %349 = vst [vmem:[%s204 + $0x18] sm:$0xf] %v341
        %350 = vst [vmem:[%s204 + $0x1c] sm:$0xf] %v342
        %s351 = smul.u32 8, %s16
        %p352 = scmp.lt.s32.totalorder %s351, 15
        %s353 = scalar_select %p352, %s351, 15
        %s354 = smul.addr %s353, 4
        %s355 = scalar_lea.vmem %s3, %s354
        // Predicated region
        $region41: #{_lambda_.9} parent=31 // pred_check
          %p356 = pneg %p102
        $region42: #{_lambda_.9} parent=31 // pred_check_branch
          %358 = sbr.rel (%p356) target = $region44
        $region43: #{_lambda_.9} parent=31 // pred_region
          %s359 = smul.u32 8, %s16
        $region44: #{_lambda_.9} parent=31 // pred_fallthru
          _
      $region32: #{_lambda_.9} parent=5 // pred_fallthru
        _
      %p360 = scmp.le.s32.totalorder 2, %s11
      // Predicated region
      $region45: #{_lambda_.9} parent=5 // pred_check
        %p361 = pneg %p360
      $region46: #{_lambda_.9} parent=5 // pred_check_branch
        %363 = sbr.rel (%p361) target = $region48
      $region47: #{_lambda_.9} parent=5 // pred_region
        %s364 = ssub.s32 %s11, 2
        // Predicated region
        $region49: #{_lambda_.9} parent=47 // pred_check
          %p365 = pneg %p108
        $region50: #{_lambda_.9} parent=47 // pred_check_branch
          %367 = sbr.rel (%p365) target = $region52
        $region51: #{_lambda_.9} parent=47 // pred_region
          %s368 = smul.u32 8, %s17
          %p369 = scmp.lt.s32.totalorder %s368, 15
          %s370 = scalar_select %p369, %s368, 15
          %s371 = smul.addr %s370, 4
          %s372 = scalar_lea.vmem %s3, %s371
        $region52: #{_lambda_.9} parent=47 // pred_fallthru
          _
      $region48: #{_lambda_.9} parent=5 // pred_fallthru
        _
    $region6: #{_lambda_.9} parent=1 // loop_footer
      %s15 = sadd.s32 1, %s11
    $region7: #{_lambda_.9} parent=1 // loop_footer_branch
      %10 = sbr.rel target = $region3
    $region8: #{_lambda_.9} parent=1 // loop_exit
      _
    %373 = vsyncpa [#allocation3], 1
    %s374 = scalar_lea.sflag [#allocation3], 1
    %375 = vsyncpa %s374, 1
    %376 = vsyncpa [#allocation5], 1

// kernel: _lambda_.10
$region0: #{_lambda_.10}
  #allocation0 [shape = 'u32[]', space=smem, size = 0x4, offset = 0x4, fixed_abs, tag = 'smem constant byte address 0x4 - core index']
  #allocation1 [shape = 'u32[72,128]{1,0:T(1,128)}', space=vmem, size = 0x9000, scoped, tag = 'internal scratch']
  %s0 = inlined_call_operand.vmem [shape: bf16[32,144], index: 0, kind: input, shape index: {}]
  %s1 = inlined_call_operand.hbm [shape: bf16[144,128], index: 1, kind: input, shape index: {}]
  %s2 = inlined_call_operand.hbm [shape: f32[1,128], index: 2, kind: input, shape index: {}]
  %s3 = inlined_call_operand.vmem [shape: bf16[32,128], index: 3, kind: output, shape index: {}]
  %s4 = sld [smem:[#allocation0]]
  $region53: #{_lambda_.10} parent=0
    _
  %s6 = ssub.s32 1, %s4
  %s7 = scalar_select 0, %s6, %s4
  $region1: #{_lambda_.10} parent=0
    #allocation2 [shape = 'u8[36864]{0}', space=vmem, size = 0x9000, scoped, tag = 'input window, operand 1, single buffered']
    #allocation3 [shape = 's32[2]{0}', space=sflag, size = 0x8, scoped, tag = 'scoped memory for _lambda_.10']
    #allocation4 [shape = 'u8[512]{0}', space=vmem, size = 0x400, scoped, tag = 'input window, operand 2, single buffered']
    #allocation5 [shape = 's32[1]{0}', space=sflag, size = 0x4, scoped, tag = 'scoped memory for _lambda_.10']
    %8 = vsyncpa [#allocation3], 0
    %9 = vsyncpa [#allocation5], 0
    loop: start=0, step=1, limit=4
    $region2: #{_lambda_.10} parent=1 // loop_pre_header
      _
    $region3: #{_lambda_.10} parent=1 // loop_header
      %s11 = sphi 0, %s15
      %p12 = scmp.ge.s32.totalorder %s11, 4
      %s21 = sphi 0, %s23
      %s24 = sphi 0, %s21
      %s25 = sphi 0, %s24
      %s41 = sphi 0, %s25
      %s45 = sphi 0, %s45
      %s47 = sphi 0, %s45
      %s48 = sphi 0, %s47
      %s62 = sphi 0, %s48
      %s66 = sphi 0, %s66
      %s68 = sphi 0, %s66
      %s69 = sphi 0, %s68
      %s83 = sphi 0, %s69
      %s89 = sphi 0, %s91
      %s92 = sphi 0, %s89
      %s93 = sphi 0, %s92
      %s109 = sphi 0, %s93
    $region4: #{_lambda_.10} parent=1 // loop_header_branch
      %14 = sbr.rel (%p12) target = $region8
    $region5: #{_lambda_.10} parent=1 // loop_body
      %s16 = ssub.s32 %s11, 1
      %s17 = ssub.s32 %s11, 2
      %s18 = sadd.s32 %s11, 1
      %s19 = ssub.s32 %s11, %s18
      %p20 = scmp.eq.s32.totalorder %s19, 0
      %s22 = sadd.s32 %s21, 1
      %s23 = scalar_select %p20, %s21, %s22
      %p26 = pneg %p20
      %p27 = scmp.eq.s32.totalorder %s11, 1
      %p28 = por %p26, %p27
      %p29 = scmp.ne.s32.totalorder %s21, %s24
      %p30 = scmp.eq.s32.totalorder %s11, 0
      %p31 = por %p29, %p30
      %p32 = scmp.ne.s32.totalorder %s21, %s24
      %p33 = scmp.eq.s32.totalorder %s16, 1
      %p34 = por %p32, %p33
      %p35 = scmp.ne.s32.totalorder %s24, %s25
      %p36 = scmp.eq.s32.totalorder %s16, 0
      %p37 = por %p35, %p36
      %p38 = scmp.ne.s32.totalorder %s24, %s25
      %p39 = scmp.eq.s32.totalorder %s17, 1
      %p40 = por %p38, %p39
      %p42 = scmp.ne.s32.totalorder %s25, %s41
      %p43 = scmp.eq.s32.totalorder %s17, 0
      %p44 = por %p42, %p43
      %s46 = sadd.s32 %s45, 1
      %p49 = scmp.eq.s32.totalorder %s11, 1
      %p50 = scmp.ne.s32.totalorder %s45, %s47
      %p51 = scmp.eq.s32.totalorder %s11, 0
      %p52 = por %p50, %p51
      %p53 = scmp.ne.s32.totalorder %s45, %s47
      %p54 = scmp.eq.s32.totalorder %s16, 1
      %p55 = por %p53, %p54
      %p56 = scmp.ne.s32.totalorder %s47, %s48
      %p57 = scmp.eq.s32.totalorder %s16, 0
      %p58 = por %p56, %p57
      %p59 = scmp.ne.s32.totalorder %s47, %s48
      %p60 = scmp.eq.s32.totalorder %s17, 1
      %p61 = por %p59, %p60
      %p63 = scmp.ne.s32.totalorder %s48, %s62
      %p64 = scmp.eq.s32.totalorder %s17, 0
      %p65 = por %p63, %p64
      %s67 = sadd.s32 %s66, 1
      %p70 = scmp.eq.s32.totalorder %s11, 1
      %p71 = scmp.ne.s32.totalorder %s66, %s68
      %p72 = scmp.eq.s32.totalorder %s11, 0
      %p73 = por %p71, %p72
      %p74 = scmp.ne.s32.totalorder %s66, %s68
      %p75 = scmp.eq.s32.totalorder %s16, 1
      %p76 = por %p74, %p75
      %p77 = scmp.ne.s32.totalorder %s68, %s69
      %p78 = scmp.eq.s32.totalorder %s16, 0
      %p79 = por %p77, %p78
      %p80 = scmp.ne.s32.totalorder %s68, %s69
      %p81 = scmp.eq.s32.totalorder %s17, 1
      %p82 = por %p80, %p81
      %p84 = scmp.ne.s32.totalorder %s69, %s83
      %p85 = scmp.eq.s32.totalorder %s17, 0
      %p86 = por %p84, %p85
      %s87 = ssub.s32 %s11, %s18
      %p88 = scmp.eq.s32.totalorder %s87, 0
      %s90 = sadd.s32 %s89, 1
      %s91 = scalar_select %p88, %s89, %s90
      %p94 = pneg %p88
      %p95 = scmp.eq.s32.totalorder %s11, 1
      %p96 = por %p94, %p95
      %p97 = scmp.ne.s32.totalorder %s89, %s92
      %p98 = scmp.eq.s32.totalorder %s11, 0
      %p99 = por %p97, %p98
      %p100 = scmp.ne.s32.totalorder %s89, %s92
      %p101 = scmp.eq.s32.totalorder %s16, 1
      %p102 = por %p100, %p101
      %p103 = scmp.ne.s32.totalorder %s92, %s93
      %p104 = scmp.eq.s32.totalorder %s16, 0
      %p105 = por %p103, %p104
      %p106 = scmp.ne.s32.totalorder %s92, %s93
      %p107 = scmp.eq.s32.totalorder %s17, 1
      %p108 = por %p106, %p107
      %p110 = scmp.ne.s32.totalorder %s93, %s109
      %p111 = scmp.eq.s32.totalorder %s17, 0
      %p112 = por %p110, %p111
      %p113 = scmp.le.s32.totalorder 1, %s11
      %p114 = scmp.lt.s32.totalorder %s11, 3
      %p115 = pnand %p113, %p114
      %p116 = pneg %p115
      // Predicated region
      $region9: #{_lambda_.10} parent=5 // pred_check
        _
      $region10: #{_lambda_.10} parent=5 // pred_check_branch
        %118 = sbr.rel (%p115) target = $region12
      $region11: #{_lambda_.10} parent=5 // pred_region
        %s119 = ssub.s32 %s11, 1
        // Predicated region
        $region13: #{_lambda_.10} parent=11 // pred_check
          %p120 = pneg %p58
        $region14: #{_lambda_.10} parent=11 // pred_check_branch
          %122 = sbr.rel (%p120) target = $region16
        $region15: #{_lambda_.10} parent=11 // pred_region
          %124 = vsyncadd [#allocation3], 0
          %s125 = sshll.u32 %s1, 4
          %s126 = int_to_ptr.hbm [resolvable:$true] %s125
          %s127 = sshll.u32 [#allocation2], 4
          %s128 = int_to_ptr.vmem [resolvable:$true] %s127
          %133 = dma.hbm_to_vmem [thread:$0]  %s126, 1152, %s128, [#allocation3], 64, 64, 4
        $region16: #{_lambda_.10} parent=11 // pred_fallthru
          _
        // Predicated region
        $region17: #{_lambda_.10} parent=11 // pred_check
          %p134 = pneg %p79
        $region18: #{_lambda_.10} parent=11 // pred_check_branch
          %136 = sbr.rel (%p134) target = $region20
        $region19: #{_lambda_.10} parent=11 // pred_region
          %138 = vsyncadd [#allocation5], 0
          %s140 = sshll.u32 %s2, 4
          %s141 = int_to_ptr.hbm [resolvable:$true] %s140
          %s142 = sshll.u32 [#allocation4], 4
          %s143 = int_to_ptr.vmem [resolvable:$true] %s142
          %145 = dma.hbm_to_vmem [thread:$0]  %s141, 16, %s143, [#allocation5]
        $region20: #{_lambda_.10} parent=11 // pred_fallthru
          _
      $region12: #{_lambda_.10} parent=5 // pred_fallthru
        _
      %p146 = scmp.lt.s32.totalorder %s11, 2
      // Predicated region
      $region21: #{_lambda_.10} parent=5 // pred_check
        %p147 = pneg %p146
      $region22: #{_lambda_.10} parent=5 // pred_check_branch
        %149 = sbr.rel (%p147) target = $region24
      $region23: #{_lambda_.10} parent=5 // pred_region
        // Predicated region
        $region25: #{_lambda_.10} parent=23 // pred_check
          %p150 = pneg %p31
        $region26: #{_lambda_.10} parent=23 // pred_check_branch
          %152 = sbr.rel (%p150) target = $region28
        $region27: #{_lambda_.10} parent=23 // pred_region
          %s153 = smul.u32 2, %s11
          %p154 = scmp.lt.s32.totalorder %s153, 3
          %s155 = scalar_select %p154, %s153, 3
          %s156 = smul.addr %s155, 2
          %s157 = smul.addr %s156, 4
          %s158 = scalar_lea.vmem %s0, %s157
          %s159 = smul.u32 2, %s11
        $region28: #{_lambda_.10} parent=23 // pred_fallthru
          _
      $region24: #{_lambda_.10} parent=5 // pred_fallthru
        _
      %p160 = scmp.le.s32.totalorder 1, %s11
      %p161 = scmp.lt.s32.totalorder %s11, 3
      %p162 = pnand %p160, %p161
      %p163 = pneg %p162
      // Predicated region
      $region29: #{_lambda_.10} parent=5 // pred_check
        _
      $region30: #{_lambda_.10} parent=5 // pred_check_branch
        %165 = sbr.rel (%p162) target = $region32
      $region31: #{_lambda_.10} parent=5 // pred_region
        %s166 = ssub.s32 %s11, 1
        // Predicated region
        $region33: #{_lambda_.10} parent=31 // pred_check
          %p167 = pneg %p58
        $region34: #{_lambda_.10} parent=31 // pred_check_branch
          %169 = sbr.rel (%p167) target = $region36
        $region35: #{_lambda_.10} parent=31 // pred_region
          %171 = dma.done [#allocation3], 1152
        $region36: #{_lambda_.10} parent=31 // pred_fallthru
          _
        // Predicated region
        $region37: #{_lambda_.10} parent=31 // pred_check
          %p172 = pneg %p79
        $region38: #{_lambda_.10} parent=31 // pred_check_branch
          %174 = sbr.rel (%p172) target = $region40
        $region39: #{_lambda_.10} parent=31 // pred_region
          %176 = dma.done [#allocation5], 16
        $region40: #{_lambda_.10} parent=31 // pred_fallthru
          _
        %s177 = smul.u32 2, %s16
        %p178 = scmp.lt.s32.totalorder %s177, 3
        %s179 = scalar_select %p178, %s177, 3
        %s180 = smul.addr %s179, 2
        %s181 = smul.addr %s180, 4
        %s182 = scalar_lea.vmem %s0, %s181
        %p183 = pneg %p37
        %p184 = pneg %p34
        %p185 = pneg %p58
        %p186 = pneg %p55
        %p187 = pneg %p79
        %p188 = pneg %p76
        %p189 = pneg %p105
        %p190 = pneg %p102
        %s191 = smul.u32 2, %s16
        %p192 = scmp.lt.s32.totalorder %s191, 3
        %s193 = scalar_select %p192, %s191, 3
        %s194 = smul.addr %s193, 4
        %s195 = scalar_lea.vmem %s3, %s194
        %s196 = smul.u32 2, %s16
        %p197 = scmp.lt.s32.totalorder %s196, 3
        %s198 = scalar_select %p197, %s196, 3
        %s199 = smul.addr %s198, 2
        %s200 = smul.addr %s199, 4
        %s201 = scalar_lea.vmem %s0, %s200
        %s202 = smul.u32 2, %s16
        %s203 = smul.u32 2, %s16
        %p204 = scmp.lt.s32.totalorder %s203, 3
        %s205 = scalar_select %p204, %s203, 3
        %s206 = smul.addr %s205, 4
        %s207 = scalar_lea.vmem %s3, %s206
        %s208 = smul.u32 2, %s16
        %v210 = vld [vmem:[%s201] sm:$0xff]
        %v211 = vld [vmem:[%s201 + $0x8] sm:$0xff]
        %v212 = vunpack.c.l.bf16 %v210
        %v213 = vunpack.c.h.bf16 %v210
        %v214 = vunpack.c.l.bf16 %v211
        %v215 = vunpack.c.h.bf16 %v211
        %vm216 = vcmp.ge.f32.partialorder %v212, 0.0
        %vm217 = vcmp.ge.f32.partialorder %v213, 0.0
        %vm218 = vcmp.ge.f32.partialorder %v214, 0.0
        %vm219 = vcmp.ge.f32.partialorder %v215, 0.0
        %v220 = vmul.f32 %v212, 0.20019531
        %v221 = vmul.f32 %v213, 0.20019531
        %v222 = vmul.f32 %v214, 0.20019531
        %v223 = vmul.f32 %v215, 0.20019531
        %v224 = vpack.c.bf16 %v221, %v220
        %v225 = vpack.c.bf16 %v223, %v222
        %vm226 = vmpackc.low %vm217, %vm216
        %vm227 = vmpackc.low %vm219, %vm218
        %v228 = vsel %vm226, %v210, %v224
        %v229 = vsel %vm227, %v211, %v225
        %v230 = vld [vmem:[#allocation2] sm:$0xf]
        %v231 = vld [vmem:[#allocation2 + $0x4] sm:$0xf]
        %v232 = vld [vmem:[#allocation2 + $0x8] sm:$0xf]
        %v233 = vld [vmem:[#allocation2 + $0xc] sm:$0xf]
        %v234 = vld [vmem:[#allocation2 + $0x10] sm:$0xf]
        %v235 = vld [vmem:[#allocation2 + $0x14] sm:$0xf]
        %v236 = vld [vmem:[#allocation2 + $0x18] sm:$0xf]
        %v237 = vld [vmem:[#allocation2 + $0x1c] sm:$0xf]
        %v238 = vld [vmem:[#allocation2 + $0x20] sm:$0xf]
        %v239 = vld [vmem:[#allocation2 + $0x24] sm:$0xf]
        %v240 = vld [vmem:[#allocation2 + $0x28] sm:$0xf]
        %v241 = vld [vmem:[#allocation2 + $0x2c] sm:$0xf]
        %v242 = vld [vmem:[#allocation2 + $0x30] sm:$0xf]
        %v243 = vld [vmem:[#allocation2 + $0x34] sm:$0xf]
        %v244 = vld [vmem:[#allocation2 + $0x38] sm:$0xf]
        %v245 = vld [vmem:[#allocation2 + $0x3c] sm:$0xf]
        %v246 = vld [vmem:[#allocation2 + $0x40] sm:$0xf]
        %v247 = vld [vmem:[#allocation2 + $0x44] sm:$0xf]
        %v248 = vld [vmem:[#allocation4] sm:$0x1]
        %v250 = vperm.slane %v248, 0
        %v254 = vunpack.c.l.b16 %v228
        %v255 = vunpack.c.h.b16 %v228
        %v256 = vunpack.c.l.b16 %v229
        %v257 = vunpack.c.h.b16 %v229
        %v258 = vpack.c.b16 %v256, %v254
        %v259 = vpack.c.b16 %v257, %v255
        %v279 = vunpack.c.l.b16 %v230
        %v280 = vunpack.c.l.b16 %v231
        %v281 = vunpack.c.l.b16 %v232
        %v282 = vunpack.c.l.b16 %v233
        %v283 = vunpack.c.l.b16 %v234
        %v284 = vunpack.c.l.b16 %v235
        %v285 = vunpack.c.l.b16 %v236
        %v286 = vunpack.c.l.b16 %v237
        %v287 = vunpack.c.l.b16 %v238
        %v288 = vunpack.c.l.b16 %v239
        %v289 = vunpack.c.l.b16 %v240
        %v290 = vunpack.c.l.b16 %v241
        %v291 = vunpack.c.l.b16 %v242
        %v292 = vunpack.c.l.b16 %v243
        %v293 = vunpack.c.l.b16 %v244
        %v294 = vunpack.c.l.b16 %v245
        %v295 = vunpack.c.l.b16 %v246
        %v296 = vunpack.c.l.b16 %v247
        %v297 = vpack.c.b16 %v280, %v279
        %v298 = vpack.c.b16 %v282, %v281
        %v299 = vpack.c.b16 %v284, %v283
        %v300 = vpack.c.b16 %v286, %v285
        %v301 = vpack.c.b16 %v288, %v287
        %v302 = vpack.c.b16 %v290, %v289
        %v303 = vpack.c.b16 %v292, %v291
        %v304 = vpack.c.b16 %v294, %v293
        %v305 = vpack.c.b16 %v296, %v295
        %vm315 = vcmask 130048
        %v317 = vsel %vm315, %v259, 0
        %319 = vmatpush.bf16.msra.mxu0 %v304
        %320 = vmatpush.bf16.msra.mxu0 %v303
        %321 = vmatpush.bf16.msra.mxu0 %v302
        %322 = vmatpush.bf16.msra.mxu0 %v301
        %323 = vmatpush.bf16.msra.mxu0 %v300
        %324 = vmatpush.bf16.msra.mxu0 %v299
        %325 = vmatpush.bf16.msra.mxu0 %v298
        %326 = vmatpush.bf16.msra.mxu0 %v297
        %327 = vmatmul.bf16.gmra.mxu0 %v258
        %v328 = vpop.f32.mrf.mxu0
        %v329 = vadd.f32 %v250, %v328
        %v330 = vpop.f32.mrf.mxu0
        %v331 = vadd.f32 %v250, %v330
        %332 = vdwg.mxu0
        %333 = vmatpush.bf16.msra.mxu0 0
        %334 = vmatpush.bf16.msra.mxu0 0
        %335 = vmatpush.bf16.msra.mxu0 0
        %336 = vmatpush.bf16.msra.mxu0 0
        %337 = vmatpush.bf16.msra.mxu0 0
        %338 = vmatpush.bf16.msra.mxu0 0
        %339 = vmatpush.bf16.msra.mxu0 0
        %340 = vmatpush.bf16.msra.mxu0 %v305
        %341 = vmatmul.bf16.gmra.mxu0 %v317
        %v342 = vpop.f32.mrf.mxu0
        %v343 = vadd.f32 %v329, %v342
        %v344 = vpop.f32.mrf.mxu0
        %v345 = vadd.f32 %v331, %v344
        %346 = vdwg.mxu0
        %v347 = vpack.c.bf16 %v343, %v343
        %v348 = vpack.c.bf16 %v345, %v345
        %349 = vst [vmem:[%s207] sm:$0xf] %v347
        %350 = vst [vmem:[%s207 + $0x4] sm:$0xf] %v348
        %s351 = smul.u32 2, %s16
        %p352 = scmp.lt.s32.totalorder %s351, 3
        %s353 = scalar_select %p352, %s351, 3
        %s354 = smul.addr %s353, 4
        %s355 = scalar_lea.vmem %s3, %s354
        // Predicated region
        $region41: #{_lambda_.10} parent=31 // pred_check
          %p356 = pneg %p102
        $region42: #{_lambda_.10} parent=31 // pred_check_branch
          %358 = sbr.rel (%p356) target = $region44
        $region43: #{_lambda_.10} parent=31 // pred_region
          %s359 = smul.u32 2, %s16
        $region44: #{_lambda_.10} parent=31 // pred_fallthru
          _
      $region32: #{_lambda_.10} parent=5 // pred_fallthru
        _
      %p360 = scmp.le.s32.totalorder 2, %s11
      // Predicated region
      $region45: #{_lambda_.10} parent=5 // pred_check
        %p361 = pneg %p360
      $region46: #{_lambda_.10} parent=5 // pred_check_branch
        %363 = sbr.rel (%p361) target = $region48
      $region47: #{_lambda_.10} parent=5 // pred_region
        %s364 = ssub.s32 %s11, 2
        // Predicated region
        $region49: #{_lambda_.10} parent=47 // pred_check
          %p365 = pneg %p108
        $region50: #{_lambda_.10} parent=47 // pred_check_branch
          %367 = sbr.rel (%p365) target = $region52
        $region51: #{_lambda_.10} parent=47 // pred_region
          %s368 = smul.u32 2, %s17
          %p369 = scmp.lt.s32.totalorder %s368, 3
          %s370 = scalar_select %p369, %s368, 3
          %s371 = smul.addr %s370, 4
          %s372 = scalar_lea.vmem %s3, %s371
        $region52: #{_lambda_.10} parent=47 // pred_fallthru
          _
      $region48: #{_lambda_.10} parent=5 // pred_fallthru
        _
    $region6: #{_lambda_.10} parent=1 // loop_footer
      %s15 = sadd.s32 1, %s11
    $region7: #{_lambda_.10} parent=1 // loop_footer_branch
      %10 = sbr.rel target = $region3
    $region8: #{_lambda_.10} parent=1 // loop_exit
      _
    %373 = vsyncpa [#allocation3], 1
    %s374 = scalar_lea.sflag [#allocation3], 1
    %375 = vsyncpa %s374, 1
    %376 = vsyncpa [#allocation5], 1

// kernel: _lambda_.11
$region0: #{_lambda_.11}
  #allocation0 [shape = 'u32[]', space=smem, size = 0x4, offset = 0x4, fixed_abs, tag = 'smem constant byte address 0x4 - core index']
  #allocation1 [shape = 'u32[72,128]{1,0:T(1,128)}', space=vmem, size = 0x9000, scoped, tag = 'internal scratch']
  %s0 = inlined_call_operand.vmem [shape: bf16[16,288], index: 0, kind: input, shape index: {}]
  %s1 = inlined_call_operand.hbm [shape: bf16[288,128], index: 1, kind: input, shape index: {}]
  %s2 = inlined_call_operand.hbm [shape: f32[1,128], index: 2, kind: input, shape index: {}]
  %s3 = inlined_call_operand.vmem [shape: bf16[16,128], index: 3, kind: output, shape index: {}]
  %s4 = sld [smem:[#allocation0]]
  $region30: #{_lambda_.11} parent=0
    _
  %s6 = ssub.s32 1, %s4
  %s7 = scalar_select 0, %s6, %s4
  $region1: #{_lambda_.11} parent=0
    #allocation2 [shape = 'u8[73728]{0}', space=vmem, size = 0x12000, scoped, tag = 'input window, operand 1, single buffered']
    #allocation3 [shape = 's32[1]{0}', space=sflag, size = 0x4, scoped, tag = 'scoped memory for _lambda_.11']
    #allocation4 [shape = 'u8[512]{0}', space=vmem, size = 0x400, scoped, tag = 'input window, operand 2, single buffered']
    #allocation5 [shape = 's32[1]{0}', space=sflag, size = 0x4, scoped, tag = 'scoped memory for _lambda_.11']
    %8 = vsyncpa [#allocation3], 0
    %9 = vsyncpa [#allocation5], 0
    // Predicated region
    $region2: #{_lambda_.11} parent=1 // pred_check
      _
    $region3: #{_lambda_.11} parent=1 // pred_check_branch
      %11 = sbr.rel (0) target = $region5
    $region4: #{_lambda_.11} parent=1 // pred_region
      _
    $region5: #{_lambda_.11} parent=1 // pred_fallthru
      _
    // Predicated region
    $region6: #{_lambda_.11} parent=1 // pred_check
      _
    $region7: #{_lambda_.11} parent=1 // pred_check_branch
      %13 = sbr.rel (0) target = $region9
    $region8: #{_lambda_.11} parent=1 // pred_region
      %15 = vsyncadd [#allocation3], 0
      %s16 = sshll.u32 %s1, 4
      %s17 = int_to_ptr.hbm [resolvable:$true] %s16
      %s18 = sshll.u32 [#allocation2], 4
      %s19 = int_to_ptr.vmem [resolvable:$true] %s18
      %24 = dma.hbm_to_vmem [thread:$0]  %s17, 2304, %s19, [#allocation3], 64, 64, 4
    $region9: #{_lambda_.11} parent=1 // pred_fallthru
      _
    // Predicated region
    $region10: #{_lambda_.11} parent=1 // pred_check
      _
    $region11: #{_lambda_.11} parent=1 // pred_check_branch
      %26 = sbr.rel (0) target = $region13
    $region12: #{_lambda_.11} parent=1 // pred_region
      %28 = vsyncadd [#allocation5], 0
      %s30 = sshll.u32 %s2, 4
      %s31 = int_to_ptr.hbm [resolvable:$true] %s30
      %s32 = sshll.u32 [#allocation4], 4
      %s33 = int_to_ptr.vmem [resolvable:$true] %s32
      %35 = dma.hbm_to_vmem [thread:$0]  %s31, 16, %s33, [#allocation5]
    $region13: #{_lambda_.11} parent=1 // pred_fallthru
      _
    // Predicated region
    $region14: #{_lambda_.11} parent=1 // pred_check
      _
    $region15: #{_lambda_.11} parent=1 // pred_check_branch
      %37 = sbr.rel (0) target = $region17
    $region16: #{_lambda_.11} parent=1 // pred_region
      %39 = dma.done [#allocation3], 2304
    $region17: #{_lambda_.11} parent=1 // pred_fallthru
      _
    // Predicated region
    $region18: #{_lambda_.11} parent=1 // pred_check
      _
    $region19: #{_lambda_.11} parent=1 // pred_check_branch
      %41 = sbr.rel (0) target = $region21
    $region20: #{_lambda_.11} parent=1 // pred_region
      %43 = dma.done [#allocation5], 16
    $region21: #{_lambda_.11} parent=1 // pred_fallthru
      _
    %v45 = vld [vmem:[%s0] sm:$0xff]
    %v46 = vld [vmem:[%s0 + $0x8] sm:$0xf]
    %v47 = vld [vmem:[%s0 + $0xc] sm:$0xff]
    %v48 = vld [vmem:[%s0 + $0x14] sm:$0xf]
    %v49 = vunpack.c.l.bf16 %v45
    %v50 = vunpack.c.h.bf16 %v45
    %v51 = vunpack.c.l.bf16 %v46
    %v52 = vunpack.c.l.bf16 %v47
    %v53 = vunpack.c.h.bf16 %v47
    %v54 = vunpack.c.l.bf16 %v48
    %vm55 = vcmp.ge.f32.partialorder %v49, 0.0
    %vm56 = vcmp.ge.f32.partialorder %v50, 0.0
    %vm57 = vcmp.ge.f32.partialorder %v51, 0.0
    %vm58 = vcmp.ge.f32.partialorder %v52, 0.0
    %vm59 = vcmp.ge.f32.partialorder %v53, 0.0
    %vm60 = vcmp.ge.f32.partialorder %v54, 0.0
    %v61 = vmul.f32 %v49, 0.20019531
    %v62 = vmul.f32 %v50, 0.20019531
    %v63 = vmul.f32 %v51, 0.20019531
    %v64 = vmul.f32 %v52, 0.20019531
    %v65 = vmul.f32 %v53, 0.20019531
    %v66 = vmul.f32 %v54, 0.20019531
    %v67 = vpack.c.bf16 %v62, %v61
    %v68 = vpack.c.bf16 %v63, %v63
    %v69 = vpack.c.bf16 %v65, %v64
    %v70 = vpack.c.bf16 %v66, %v66
    %vm71 = vmpackc.low %vm56, %vm55
    %vm72 = vmpackc.low %vm57, %vm57
    %vm73 = vmpackc.low %vm59, %vm58
    %vm74 = vmpackc.low %vm60, %vm60
    %v75 = vsel %vm71, %v45, %v67
    %v76 = vsel %vm72, %v46, %v68
    %v77 = vsel %vm73, %v47, %v69
    %v78 = vsel %vm74, %v48, %v70
    %v79 = vld [vmem:[#allocation2] sm:$0xf]
    %v80 = vld [vmem:[#allocation2 + $0x4] sm:$0xf]
    %v81 = vld [vmem:[#allocation2 + $0x8] sm:$0xf]
    %v82 = vld [vmem:[#allocation2 + $0xc] sm:$0xf]
    %v83 = vld [vmem:[#allocation2 + $0x10] sm:$0xf]
    %v84 = vld [vmem:[#allocation2 + $0x14] sm:$0xf]
    %v85 = vld [vmem:[#allocation2 + $0x18] sm:$0xf]
    %v86 = vld [vmem:[#allocation2 + $0x1c] sm:$0xf]
    %v87 = vld [vmem:[#allocation2 + $0x20] sm:$0xf]
    %v88 = vld [vmem:[#allocation2 + $0x24] sm:$0xf]
    %v89 = vld [vmem:[#allocation2 + $0x28] sm:$0xf]
    %v90 = vld [vmem:[#allocation2 + $0x2c] sm:$0xf]
    %v91 = vld [vmem:[#allocation2 + $0x30] sm:$0xf]
    %v92 = vld [vmem:[#allocation2 + $0x34] sm:$0xf]
    %v93 = vld [vmem:[#allocation2 + $0x38] sm:$0xf]
    %v94 = vld [vmem:[#allocation2 + $0x3c] sm:$0xf]
    %v95 = vld [vmem:[#allocation2 + $0x40] sm:$0xf]
    %v96 = vld [vmem:[#allocation2 + $0x44] sm:$0xf]
    %v97 = vld [vmem:[#allocation2 + $0x48] sm:$0xf]
    %v98 = vld [vmem:[#allocation2 + $0x4c] sm:$0xf]
    %v99 = vld [vmem:[#allocation2 + $0x50] sm:$0xf]
    %v100 = vld [vmem:[#allocation2 + $0x54] sm:$0xf]
    %v101 = vld [vmem:[#allocation2 + $0x58] sm:$0xf]
    %v102 = vld [vmem:[#allocation2 + $0x5c] sm:$0xf]
    %v103 = vld [vmem:[#allocation2 + $0x60] sm:$0xf]
    %v104 = vld [vmem:[#allocation2 + $0x64] sm:$0xf]
    %v105 = vld [vmem:[#allocation2 + $0x68] sm:$0xf]
    %v106 = vld [vmem:[#allocation2 + $0x6c] sm:$0xf]
    %v107 = vld [vmem:[#allocation2 + $0x70] sm:$0xf]
    %v108 = vld [vmem:[#allocation2 + $0x74] sm:$0xf]
    %v109 = vld [vmem:[#allocation2 + $0x78] sm:$0xf]
    %v110 = vld [vmem:[#allocation2 + $0x7c] sm:$0xf]
    %v111 = vld [vmem:[#allocation2 + $0x80] sm:$0xf]
    %v112 = vld [vmem:[#allocation2 + $0x84] sm:$0xf]
    %v113 = vld [vmem:[#allocation2 + $0x88] sm:$0xf]
    %v114 = vld [vmem:[#allocation2 + $0x8c] sm:$0xf]
    %v115 = vld [vmem:[#allocation4] sm:$0x1]
    %v117 = vperm.slane %v115, 0
    %v123 = vunpack.c.l.b16 %v75
    %v124 = vunpack.c.h.b16 %v75
    %v125 = vunpack.c.l.b16 %v76
    %v126 = vunpack.c.l.b16 %v77
    %v127 = vunpack.c.h.b16 %v77
    %v128 = vunpack.c.l.b16 %v78
    %v129 = vpack.c.b16 %v126, %v123
    %v130 = vpack.c.b16 %v127, %v124
    %v131 = vpack.c.b16 %v128, %v125
    %v170 = vunpack.c.l.b16 %v79
    %v171 = vunpack.c.l.b16 %v80
    %v172 = vunpack.c.l.b16 %v81
    %v173 = vunpack.c.l.b16 %v82
    %v174 = vunpack.c.l.b16 %v83
    %v175 = vunpack.c.l.b16 %v84
    %v176 = vunpack.c.l.b16 %v85
    %v177 = vunpack.c.l.b16 %v86
    %v178 = vunpack.c.l.b16 %v87
    %v179 = vunpack.c.l.b16 %v88
    %v180 = vunpack.c.l.b16 %v89
    %v181 = vunpack.c.l.b16 %v90
    %v182 = vunpack.c.l.b16 %v91
    %v183 = vunpack.c.l.b16 %v92
    %v184 = vunpack.c.l.b16 %v93
    %v185 = vunpack.c.l.b16 %v94
    %v186 = vunpack.c.l.b16 %v95
    %v187 = vunpack.c.l.b16 %v96
    %v188 = vunpack.c.l.b16 %v97
    %v189 = vunpack.c.l.b16 %v98
    %v190 = vunpack.c.l.b16 %v99
    %v191 = vunpack.c.l.b16 %v100
    %v192 = vunpack.c.l.b16 %v101
    %v193 = vunpack.c.l.b16 %v102
    %v194 = vunpack.c.l.b16 %v103
    %v195 = vunpack.c.l.b16 %v104
    %v196 = vunpack.c.l.b16 %v105
    %v197 = vunpack.c.l.b16 %v106
    %v198 = vunpack.c.l.b16 %v107
    %v199 = vunpack.c.l.b16 %v108
    %v200 = vunpack.c.l.b16 %v109
    %v201 = vunpack.c.l.b16 %v110
    %v202 = vunpack.c.l.b16 %v111
    %v203 = vunpack.c.l.b16 %v112
    %v204 = vunpack.c.l.b16 %v113
    %v205 = vunpack.c.l.b16 %v114
    %v206 = vpack.c.b16 %v171, %v170
    %v207 = vpack.c.b16 %v173, %v172
    %v208 = vpack.c.b16 %v175, %v174
    %v209 = vpack.c.b16 %v177, %v176
    %v210 = vpack.c.b16 %v179, %v178
    %v211 = vpack.c.b16 %v181, %v180
    %v212 = vpack.c.b16 %v183, %v182
    %v213 = vpack.c.b16 %v185, %v184
    %v214 = vpack.c.b16 %v187, %v186
    %v215 = vpack.c.b16 %v189, %v188
    %v216 = vpack.c.b16 %v191, %v190
    %v217 = vpack.c.b16 %v193, %v192
    %v218 = vpack.c.b16 %v195, %v194
    %v219 = vpack.c.b16 %v197, %v196
    %v220 = vpack.c.b16 %v199, %v198
    %v221 = vpack.c.b16 %v201, %v200
    %v222 = vpack.c.b16 %v203, %v202
    %v223 = vpack.c.b16 %v205, %v204
    %vm242 = vcmask 261120
    %v244 = vsel %vm242, %v131, 0
    %246 = vmatpush.bf16.msra.mxu0 %v213
    %247 = vmatpush.bf16.msra.mxu0 %v212
    %248 = vmatpush.bf16.msra.mxu0 %v211
    %249 = vmatpush.bf16.msra.mxu0 %v210
    %250 = vmatpush.bf16.msra.mxu0 %v209
    %251 = vmatpush.bf16.msra.mxu0 %v208
    %252 = vmatpush.bf16.msra.mxu0 %v207
    %253 = vmatpush.bf16.msra.mxu0 %v206
    %254 = vmatmul.bf16.gmra.mxu0 %v129
    %v255 = vpop.f32.mrf.mxu0
    %v256 = vadd.f32 %v117, %v255
    %v257 = vpop.f32.mrf.mxu0
    %v258 = vadd.f32 %v117, %v257
    %259 = vdwg.mxu0
    %260 = vmatpush.bf16.msra.mxu0 %v221
    %261 = vmatpush.bf16.msra.mxu0 %v220
    %262 = vmatpush.bf16.msra.mxu0 %v219
    %263 = vmatpush.bf16.msra.mxu0 %v218
    %264 = vmatpush.bf16.msra.mxu0 %v217
    %265 = vmatpush.bf16.msra.mxu0 %v216
    %266 = vmatpush.bf16.msra.mxu0 %v215
    %267 = vmatpush.bf16.msra.mxu0 %v214
    %268 = vmatmul.bf16.gmra.mxu0 %v130
    %v269 = vpop.f32.mrf.mxu0
    %v270 = vadd.f32 %v256, %v269
    %v271 = vpop.f32.mrf.mxu0
    %v272 = vadd.f32 %v258, %v271
    %273 = vdwg.mxu0
    %274 = vmatpush.bf16.msra.mxu0 0
    %275 = vmatpush.bf16.msra.mxu0 0
    %276 = vmatpush.bf16.msra.mxu0 0
    %277 = vmatpush.bf16.msra.mxu0 0
    %278 = vmatpush.bf16.msra.mxu0 0
    %279 = vmatpush.bf16.msra.mxu0 0
    %280 = vmatpush.bf16.msra.mxu0 %v223
    %281 = vmatpush.bf16.msra.mxu0 %v222
    %282 = vmatmul.bf16.gmra.mxu0 %v244
    %v283 = vpop.f32.mrf.mxu0
    %v284 = vadd.f32 %v270, %v283
    %v285 = vpop.f32.mrf.mxu0
    %v286 = vadd.f32 %v272, %v285
    %287 = vdwg.mxu0
    %v288 = vmax.f32 %v284, 0.0
    %v289 = vmax.f32 %v286, 0.0
    %v290 = vpack.c.bf16 %v288, %v288
    %v291 = vpack.c.bf16 %v289, %v289
    %292 = vst [vmem:[%s3] sm:$0xf] %v290
    %293 = vst [vmem:[%s3 + $0x4] sm:$0xf] %v291
    // Predicated region
    $region22: #{_lambda_.11} parent=1 // pred_check
      _
    $region23: #{_lambda_.11} parent=1 // pred_check_branch
      %295 = sbr.rel (0) target = $region25
    $region24: #{_lambda_.11} parent=1 // pred_region
      _
    $region25: #{_lambda_.11} parent=1 // pred_fallthru
      _
    // Predicated region
    $region26: #{_lambda_.11} parent=1 // pred_check
      _
    $region27: #{_lambda_.11} parent=1 // pred_check_branch
      %297 = sbr.rel (0) target = $region29
    $region28: #{_lambda_.11} parent=1 // pred_region
      _
    $region29: #{_lambda_.11} parent=1 // pred_fallthru
      _
    %298 = vsyncpa [#allocation3], 1
    %299 = vsyncpa [#allocation5], 1

// kernel: _lambda_.12
$region0: #{_lambda_.12}
  #allocation0 [shape = 'u32[]', space=smem, size = 0x4, offset = 0x4, fixed_abs, tag = 'smem constant byte address 0x4 - core index']
  #allocation1 [shape = 'u32[72,128]{1,0:T(1,128)}', space=vmem, size = 0x9000, scoped, tag = 'internal scratch']
  %s0 = inlined_call_operand.vmem [shape: bf16[16,576], index: 0, kind: input, shape index: {}]
  %s1 = inlined_call_operand.hbm [shape: bf16[576,128], index: 1, kind: input, shape index: {}]
  %s2 = inlined_call_operand.vmem [shape: f32[1,128], index: 2, kind: input, shape index: {}]
  %s3 = inlined_call_operand.vmem [shape: bf16[16,128], index: 3, kind: output, shape index: {}]
  %s4 = sld [smem:[#allocation0]]
  $region26: #{_lambda_.12} parent=0
    _
  %s6 = ssub.s32 1, %s4
  %s7 = scalar_select 0, %s6, %s4
  $region1: #{_lambda_.12} parent=0
    #allocation2 [shape = 'u8[147456]{0}', space=vmem, size = 0x24000, scoped, tag = 'input window, operand 1, single buffered']
    #allocation3 [shape = 's32[1]{0}', space=sflag, size = 0x4, scoped, tag = 'scoped memory for _lambda_.12']
    %8 = vsyncpa [#allocation3], 0
    // Predicated region
    $region2: #{_lambda_.12} parent=1 // pred_check
      _
    $region3: #{_lambda_.12} parent=1 // pred_check_branch
      %10 = sbr.rel (0) target = $region5
    $region4: #{_lambda_.12} parent=1 // pred_region
      _
    $region5: #{_lambda_.12} parent=1 // pred_fallthru
      _
    // Predicated region
    $region6: #{_lambda_.12} parent=1 // pred_check
      _
    $region7: #{_lambda_.12} parent=1 // pred_check_branch
      %12 = sbr.rel (0) target = $region9
    $region8: #{_lambda_.12} parent=1 // pred_region
      %14 = vsyncadd [#allocation3], 0
      %s15 = sshll.u32 %s1, 4
      %s16 = int_to_ptr.hbm [resolvable:$true] %s15
      %s17 = sshll.u32 [#allocation2], 4
      %s18 = int_to_ptr.vmem [resolvable:$true] %s17
      %23 = dma.hbm_to_vmem [thread:$0]  %s16, 4608, %s18, [#allocation3], 64, 64, 4
    $region9: #{_lambda_.12} parent=1 // pred_fallthru
      _
    // Predicated region
    $region10: #{_lambda_.12} parent=1 // pred_check
      _
    $region11: #{_lambda_.12} parent=1 // pred_check_branch
      %25 = sbr.rel (0) target = $region13
    $region12: #{_lambda_.12} parent=1 // pred_region
      _
    $region13: #{_lambda_.12} parent=1 // pred_fallthru
      _
    // Predicated region
    $region14: #{_lambda_.12} parent=1 // pred_check
      _
    $region15: #{_lambda_.12} parent=1 // pred_check_branch
      %27 = sbr.rel (0) target = $region17
    $region16: #{_lambda_.12} parent=1 // pred_region
      %29 = dma.done [#allocation3], 4608
    $region17: #{_lambda_.12} parent=1 // pred_fallthru
      _
    %v31 = vld [vmem:[%s0] sm:$0xff]
    %v32 = vld [vmem:[%s0 + $0x8] sm:$0xff]
    %v33 = vld [vmem:[%s0 + $0x10] sm:$0xf]
    %v34 = vld [vmem:[%s0 + $0x14] sm:$0xff]
    %v35 = vld [vmem:[%s0 + $0x1c] sm:$0xff]
    %v36 = vld [vmem:[%s0 + $0x24] sm:$0xf]
    %v37 = vld [vmem:[#allocation2] sm:$0xf]
    %v38 = vld [vmem:[#allocation2 + $0x4] sm:$0xf]
    %v39 = vld [vmem:[#allocation2 + $0x8] sm:$0xf]
    %v40 = vld [vmem:[#allocation2 + $0xc] sm:$0xf]
    %v41 = vld [vmem:[#allocation2 + $0x10] sm:$0xf]
    %v42 = vld [vmem:[#allocation2 + $0x14] sm:$0xf]
    %v43 = vld [vmem:[#allocation2 + $0x18] sm:$0xf]
    %v44 = vld [vmem:[#allocation2 + $0x1c] sm:$0xf]
    %v45 = vld [vmem:[#allocation2 + $0x20] sm:$0xf]
    %v46 = vld [vmem:[#allocation2 + $0x24] sm:$0xf]
    %v47 = vld [vmem:[#allocation2 + $0x28] sm:$0xf]
    %v48 = vld [vmem:[#allocation2 + $0x2c] sm:$0xf]
    %v49 = vld [vmem:[#allocation2 + $0x30] sm:$0xf]
    %v50 = vld [vmem:[#allocation2 + $0x34] sm:$0xf]
    %v51 = vld [vmem:[#allocation2 + $0x38] sm:$0xf]
    %v52 = vld [vmem:[#allocation2 + $0x3c] sm:$0xf]
    %v53 = vld [vmem:[#allocation2 + $0x40] sm:$0xf]
    %v54 = vld [vmem:[#allocation2 + $0x44] sm:$0xf]
    %v55 = vld [vmem:[#allocation2 + $0x48] sm:$0xf]
    %v56 = vld [vmem:[#allocation2 + $0x4c] sm:$0xf]
    %v57 = vld [vmem:[#allocation2 + $0x50] sm:$0xf]
    %v58 = vld [vmem:[#allocation2 + $0x54] sm:$0xf]
    %v59 = vld [vmem:[#allocation2 + $0x58] sm:$0xf]
    %v60 = vld [vmem:[#allocation2 + $0x5c] sm:$0xf]
    %v61 = vld [vmem:[#allocation2 + $0x60] sm:$0xf]
    %v62 = vld [vmem:[#allocation2 + $0x64] sm:$0xf]
    %v63 = vld [vmem:[#allocation2 + $0x68] sm:$0xf]
    %v64 = vld [vmem:[#allocation2 + $0x6c] sm:$0xf]
    %v65 = vld [vmem:[#allocation2 + $0x70] sm:$0xf]
    %v66 = vld [vmem:[#allocation2 + $0x74] sm:$0xf]
    %v67 = vld [vmem:[#allocation2 + $0x78] sm:$0xf]
    %v68 = vld [vmem:[#allocation2 + $0x7c] sm:$0xf]
    %v69 = vld [vmem:[#allocation2 + $0x80] sm:$0xf]
    %v70 = vld [vmem:[#allocation2 + $0x84] sm:$0xf]
    %v71 = vld [vmem:[#allocation2 + $0x88] sm:$0xf]
    %v72 = vld [vmem:[#allocation2 + $0x8c] sm:$0xf]
    %v73 = vld [vmem:[#allocation2 + $0x90] sm:$0xf]
    %v74 = vld [vmem:[#allocation2 + $0x94] sm:$0xf]
    %v75 = vld [vmem:[#allocation2 + $0x98] sm:$0xf]
    %v76 = vld [vmem:[#allocation2 + $0x9c] sm:$0xf]
    %v77 = vld [vmem:[#allocation2 + $0xa0] sm:$0xf]
    %v78 = vld [vmem:[#allocation2 + $0xa4] sm:$0xf]
    %v79 = vld [vmem:[#allocation2 + $0xa8] sm:$0xf]
    %v80 = vld [vmem:[#allocation2 + $0xac] sm:$0xf]
    %v81 = vld [vmem:[#allocation2 + $0xb0] sm:$0xf]
    %v82 = vld [vmem:[#allocation2 + $0xb4] sm:$0xf]
    %v83 = vld [vmem:[#allocation2 + $0xb8] sm:$0xf]
    %v84 = vld [vmem:[#allocation2 + $0xbc] sm:$0xf]
    %v85 = vld [vmem:[#allocation2 + $0xc0] sm:$0xf]
    %v86 = vld [vmem:[#allocation2 + $0xc4] sm:$0xf]
    %v87 = vld [vmem:[#allocation2 + $0xc8] sm:$0xf]
    %v88 = vld [vmem:[#allocation2 + $0xcc] sm:$0xf]
    %v89 = vld [vmem:[#allocation2 + $0xd0] sm:$0xf]
    %v90 = vld [vmem:[#allocation2 + $0xd4] sm:$0xf]
    %v91 = vld [vmem:[#allocation2 + $0xd8] sm:$0xf]
    %v92 = vld [vmem:[#allocation2 + $0xdc] sm:$0xf]
    %v93 = vld [vmem:[#allocation2 + $0xe0] sm:$0xf]
    %v94 = vld [vmem:[#allocation2 + $0xe4] sm:$0xf]
    %v95 = vld [vmem:[#allocation2 + $0xe8] sm:$0xf]
    %v96 = vld [vmem:[#allocation2 + $0xec] sm:$0xf]
    %v97 = vld [vmem:[#allocation2 + $0xf0] sm:$0xf]
    %v98 = vld [vmem:[#allocation2 + $0xf4] sm:$0xf]
    %v99 = vld [vmem:[#allocation2 + $0xf8] sm:$0xf]
    %v100 = vld [vmem:[#allocation2 + $0xfc] sm:$0xf]
    %v101 = vld [vmem:[#allocation2 + $0x100] sm:$0xf]
    %v102 = vld [vmem:[#allocation2 + $0x104] sm:$0xf]
    %v103 = vld [vmem:[#allocation2 + $0x108] sm:$0xf]
    %v104 = vld [vmem:[#allocation2 + $0x10c] sm:$0xf]
    %v105 = vld [vmem:[#allocation2 + $0x110] sm:$0xf]
    %v106 = vld [vmem:[#allocation2 + $0x114] sm:$0xf]
    %v107 = vld [vmem:[#allocation2 + $0x118] sm:$0xf]
    %v108 = vld [vmem:[#allocation2 + $0x11c] sm:$0xf]
    %v109 = vld [vmem:[%s2] sm:$0x1]
    %v111 = vperm.slane %v109, 0
    %v119 = vunpack.c.l.b16 %v31
    %v120 = vunpack.c.h.b16 %v31
    %v121 = vunpack.c.l.b16 %v32
    %v122 = vunpack.c.h.b16 %v32
    %v123 = vunpack.c.l.b16 %v33
    %v124 = vunpack.c.l.b16 %v34
    %v125 = vunpack.c.h.b16 %v34
    %v126 = vunpack.c.l.b16 %v35
    %v127 = vunpack.c.h.b16 %v35
    %v128 = vunpack.c.l.b16 %v36
    %v129 = vpack.c.b16 %v124, %v119
    %v130 = vpack.c.b16 %v125, %v120
    %v131 = vpack.c.b16 %v126, %v121
    %v132 = vpack.c.b16 %v127, %v122
    %v133 = vpack.c.b16 %v128, %v123
    %v210 = vunpack.c.l.b16 %v37
    %v211 = vunpack.c.l.b16 %v38
    %v212 = vunpack.c.l.b16 %v39
    %v213 = vunpack.c.l.b16 %v40
    %v214 = vunpack.c.l.b16 %v41
    %v215 = vunpack.c.l.b16 %v42
    %v216 = vunpack.c.l.b16 %v43
    %v217 = vunpack.c.l.b16 %v44
    %v218 = vunpack.c.l.b16 %v45
    %v219 = vunpack.c.l.b16 %v46
    %v220 = vunpack.c.l.b16 %v47
    %v221 = vunpack.c.l.b16 %v48
    %v222 = vunpack.c.l.b16 %v49
    %v223 = vunpack.c.l.b16 %v50
    %v224 = vunpack.c.l.b16 %v51
    %v225 = vunpack.c.l.b16 %v52
    %v226 = vunpack.c.l.b16 %v53
    %v227 = vunpack.c.l.b16 %v54
    %v228 = vunpack.c.l.b16 %v55
    %v229 = vunpack.c.l.b16 %v56
    %v230 = vunpack.c.l.b16 %v57
    %v231 = vunpack.c.l.b16 %v58
    %v232 = vunpack.c.l.b16 %v59
    %v233 = vunpack.c.l.b16 %v60
    %v234 = vunpack.c.l.b16 %v61
    %v235 = vunpack.c.l.b16 %v62
    %v236 = vunpack.c.l.b16 %v63
    %v237 = vunpack.c.l.b16 %v64
    %v238 = vunpack.c.l.b16 %v65
    %v239 = vunpack.c.l.b16 %v66
    %v240 = vunpack.c.l.b16 %v67
    %v241 = vunpack.c.l.b16 %v68
    %v242 = vunpack.c.l.b16 %v69
    %v243 = vunpack.c.l.b16 %v70
    %v244 = vunpack.c.l.b16 %v71
    %v245 = vunpack.c.l.b16 %v72
    %v246 = vunpack.c.l.b16 %v73
    %v247 = vunpack.c.l.b16 %v74
    %v248 = vunpack.c.l.b16 %v75
    %v249 = vunpack.c.l.b16 %v76
    %v250 = vunpack.c.l.b16 %v77
    %v251 = vunpack.c.l.b16 %v78
    %v252 = vunpack.c.l.b16 %v79
    %v253 = vunpack.c.l.b16 %v80
    %v254 = vunpack.c.l.b16 %v81
    %v255 = vunpack.c.l.b16 %v82
    %v256 = vunpack.c.l.b16 %v83
    %v257 = vunpack.c.l.b16 %v84
    %v258 = vunpack.c.l.b16 %v85
    %v259 = vunpack.c.l.b16 %v86
    %v260 = vunpack.c.l.b16 %v87
    %v261 = vunpack.c.l.b16 %v88
    %v262 = vunpack.c.l.b16 %v89
    %v263 = vunpack.c.l.b16 %v90
    %v264 = vunpack.c.l.b16 %v91
    %v265 = vunpack.c.l.b16 %v92
    %v266 = vunpack.c.l.b16 %v93
    %v267 = vunpack.c.l.b16 %v94
    %v268 = vunpack.c.l.b16 %v95
    %v269 = vunpack.c.l.b16 %v96
    %v270 = vunpack.c.l.b16 %v97
    %v271 = vunpack.c.l.b16 %v98
    %v272 = vunpack.c.l.b16 %v99
    %v273 = vunpack.c.l.b16 %v100
    %v274 = vunpack.c.l.b16 %v101
    %v275 = vunpack.c.l.b16 %v102
    %v276 = vunpack.c.l.b16 %v103
    %v277 = vunpack.c.l.b16 %v104
    %v278 = vunpack.c.l.b16 %v105
    %v279 = vunpack.c.l.b16 %v106
    %v280 = vunpack.c.l.b16 %v107
    %v281 = vunpack.c.l.b16 %v108
    %v282 = vpack.c.b16 %v211, %v210
    %v283 = vpack.c.b16 %v213, %v212
    %v284 = vpack.c.b16 %v215, %v214
    %v285 = vpack.c.b16 %v217, %v216
    %v286 = vpack.c.b16 %v219, %v218
    %v287 = vpack.c.b16 %v221, %v220
    %v288 = vpack.c.b16 %v223, %v222
    %v289 = vpack.c.b16 %v225, %v224
    %v290 = vpack.c.b16 %v227, %v226
    %v291 = vpack.c.b16 %v229, %v228
    %v292 = vpack.c.b16 %v231, %v230
    %v293 = vpack.c.b16 %v233, %v232
    %v294 = vpack.c.b16 %v235, %v234
    %v295 = vpack.c.b16 %v237, %v236
    %v296 = vpack.c.b16 %v239, %v238
    %v297 = vpack.c.b16 %v241, %v240
    %v298 = vpack.c.b16 %v243, %v242
    %v299 = vpack.c.b16 %v245, %v244
    %v300 = vpack.c.b16 %v247, %v246
    %v301 = vpack.c.b16 %v249, %v248
    %v302 = vpack.c.b16 %v251, %v250
    %v303 = vpack.c.b16 %v253, %v252
    %v304 = vpack.c.b16 %v255, %v254
    %v305 = vpack.c.b16 %v257, %v256
    %v306 = vpack.c.b16 %v259, %v258
    %v307 = vpack.c.b16 %v261, %v260
    %v308 = vpack.c.b16 %v263, %v262
    %v309 = vpack.c.b16 %v265, %v264
    %v310 = vpack.c.b16 %v267, %v266
    %v311 = vpack.c.b16 %v269, %v268
    %v312 = vpack.c.b16 %v271, %v270
    %v313 = vpack.c.b16 %v273, %v272
    %v314 = vpack.c.b16 %v275, %v274
    %v315 = vpack.c.b16 %v277, %v276
    %v316 = vpack.c.b16 %v279, %v278
    %v317 = vpack.c.b16 %v281, %v280
    %vm354 = vcmask 523264
    %v356 = vsel %vm354, %v133, 0
    %358 = vmatpush.bf16.msra.mxu0 %v289
    %359 = vmatpush.bf16.msra.mxu0 %v288
    %360 = vmatpush.bf16.msra.mxu0 %v287
    %361 = vmatpush.bf16.msra.mxu0 %v286
    %362 = vmatpush.bf16.msra.mxu0 %v285
    %363 = vmatpush.bf16.msra.mxu0 %v284
    %364 = vmatpush.bf16.msra.mxu0 %v283
    %365 = vmatpush.bf16.msra.mxu0 %v282
    %366 = vmatmul.bf16.gmra.mxu0 %v129
    %v367 = vpop.f32.mrf.mxu0
    %v368 = vadd.f32 %v111, %v367
    %v369 = vpop.f32.mrf.mxu0
    %v370 = vadd.f32 %v111, %v369
    %371 = vdwg.mxu0
    %372 = vmatpush.bf16.msra.mxu0 %v297
    %373 = vmatpush.bf16.msra.mxu0 %v296
    %374 = vmatpush.bf16.msra.mxu0 %v295
    %375 = vmatpush.bf16.msra.mxu0 %v294
    %376 = vmatpush.bf16.msra.mxu0 %v293
    %377 = vmatpush.bf16.msra.mxu0 %v292
    %378 = vmatpush.bf16.msra.mxu0 %v291
    %379 = vmatpush.bf16.msra.mxu0 %v290
    %380 = vmatmul.bf16.gmra.mxu0 %v130
    %v381 = vpop.f32.mrf.mxu0
    %v382 = vadd.f32 %v368, %v381
    %v383 = vpop.f32.mrf.mxu0
    %v384 = vadd.f32 %v370, %v383
    %385 = vdwg.mxu0
    %386 = vmatpush.bf16.msra.mxu0 %v305
    %387 = vmatpush.bf16.msra.mxu0 %v304
    %388 = vmatpush.bf16.msra.mxu0 %v303
    %389 = vmatpush.bf16.msra.mxu0 %v302
    %390 = vmatpush.bf16.msra.mxu0 %v301
    %391 = vmatpush.bf16.msra.mxu0 %v300
    %392 = vmatpush.bf16.msra.mxu0 %v299
    %393 = vmatpush.bf16.msra.mxu0 %v298
    %394 = vmatmul.bf16.gmra.mxu0 %v131
    %v395 = vpop.f32.mrf.mxu0
    %v396 = vadd.f32 %v382, %v395
    %v397 = vpop.f32.mrf.mxu0
    %v398 = vadd.f32 %v384, %v397
    %399 = vdwg.mxu0
    %400 = vmatpush.bf16.msra.mxu0 %v313
    %401 = vmatpush.bf16.msra.mxu0 %v312
    %402 = vmatpush.bf16.msra.mxu0 %v311
    %403 = vmatpush.bf16.msra.mxu0 %v310
    %404 = vmatpush.bf16.msra.mxu0 %v309
    %405 = vmatpush.bf16.msra.mxu0 %v308
    %406 = vmatpush.bf16.msra.mxu0 %v307
    %407 = vmatpush.bf16.msra.mxu0 %v306
    %408 = vmatmul.bf16.gmra.mxu0 %v132
    %v409 = vpop.f32.mrf.mxu0
    %v410 = vadd.f32 %v396, %v409
    %v411 = vpop.f32.mrf.mxu0
    %v412 = vadd.f32 %v398, %v411
    %413 = vdwg.mxu0
    %414 = vmatpush.bf16.msra.mxu0 0
    %415 = vmatpush.bf16.msra.mxu0 0
    %416 = vmatpush.bf16.msra.mxu0 0
    %417 = vmatpush.bf16.msra.mxu0 0
    %418 = vmatpush.bf16.msra.mxu0 %v317
    %419 = vmatpush.bf16.msra.mxu0 %v316
    %420 = vmatpush.bf16.msra.mxu0 %v315
    %421 = vmatpush.bf16.msra.mxu0 %v314
    %422 = vmatmul.bf16.gmra.mxu0 %v356
    %v423 = vpop.f32.mrf.mxu0
    %v424 = vadd.f32 %v410, %v423
    %v425 = vpop.f32.mrf.mxu0
    %v426 = vadd.f32 %v412, %v425
    %427 = vdwg.mxu0
    %v428 = vmax.f32 %v424, 0.0
    %v429 = vmax.f32 %v426, 0.0
    %v430 = vpack.c.bf16 %v428, %v428
    %v431 = vpack.c.bf16 %v429, %v429
    %432 = vst [vmem:[%s3] sm:$0xf] %v430
    %433 = vst [vmem:[%s3 + $0x4] sm:$0xf] %v431
    // Predicated region
    $region18: #{_lambda_.12} parent=1 // pred_check
      _
    $region19: #{_lambda_.12} parent=1 // pred_check_branch
      %435 = sbr.rel (0) target = $region21
    $region20: #{_lambda_.12} parent=1 // pred_region
      _
    $region21: #{_lambda_.12} parent=1 // pred_fallthru
      _
    // Predicated region
    $region22: #{_lambda_.12} parent=1 // pred_check
      _
    $region23: #{_lambda_.12} parent=1 // pred_check_branch
      %437 = sbr.rel (0) target = $region25
    $region24: #{_lambda_.12} parent=1 // pred_region
      _
    $region25: #{_lambda_.12} parent=1 // pred_fallthru
      _
    %438 = vsyncpa [#allocation3], 1

// kernel: _lambda_.13
$region0: #{_lambda_.13}
  #allocation0 [shape = 'u32[]', space=smem, size = 0x4, offset = 0x4, fixed_abs, tag = 'smem constant byte address 0x4 - core index']
  #allocation1 [shape = 'u32[72,128]{1,0:T(1,128)}', space=vmem, size = 0x9000, scoped, tag = 'internal scratch']
  %s0 = inlined_call_operand.vmem [shape: bf16[32,288], index: 0, kind: input, shape index: {}]
  %s1 = inlined_call_operand.hbm [shape: bf16[288,128], index: 1, kind: input, shape index: {}]
  %s2 = inlined_call_operand.hbm [shape: f32[1,128], index: 2, kind: input, shape index: {}]
  %s3 = inlined_call_operand.vmem [shape: f32[32,1], index: 3, kind: input, shape index: {}]
  %s4 = inlined_call_operand.hbm [shape: f32[1,128], index: 4, kind: input, shape index: {}]
  %s5 = inlined_call_operand.vmem [shape: bf16[32,128], index: 5, kind: output, shape index: {}]
  %s6 = sld [smem:[#allocation0]]
  $region65: #{_lambda_.13} parent=0
    _
  %s8 = ssub.s32 1, %s6
  %s9 = scalar_select 0, %s8, %s6
  $region1: #{_lambda_.13} parent=0
    #allocation2 [shape = 'u8[73728]{0}', space=vmem, size = 0x12000, scoped, tag = 'input window, operand 1, single buffered']
    #allocation3 [shape = 's32[2]{0}', space=sflag, size = 0x8, scoped, tag = 'scoped memory for _lambda_.13']
    #allocation4 [shape = 'u8[512]{0}', space=vmem, size = 0x400, scoped, tag = 'input window, operand 2, single buffered']
    #allocation5 [shape = 's32[1]{0}', space=sflag, size = 0x4, scoped, tag = 'scoped memory for _lambda_.13']
    #allocation6 [shape = 'u8[512]{0}', space=vmem, size = 0x400, scoped, tag = 'input window, operand 4, single buffered']
    %10 = vsyncpa [#allocation3], 0
    %11 = vsyncpa [#allocation5], 0
    loop: start=0, step=1, limit=4
    $region2: #{_lambda_.13} parent=1 // loop_pre_header
      _
    $region3: #{_lambda_.13} parent=1 // loop_header
      %s13 = sphi 0, %s17
      %p14 = scmp.ge.s32.totalorder %s13, 4
      %s23 = sphi 0, %s25
      %s26 = sphi 0, %s23
      %s27 = sphi 0, %s26
      %s43 = sphi 0, %s27
      %s47 = sphi 0, %s47
      %s49 = sphi 0, %s47
      %s50 = sphi 0, %s49
      %s64 = sphi 0, %s50
      %s68 = sphi 0, %s68
      %s70 = sphi 0, %s68
      %s71 = sphi 0, %s70
      %s85 = sphi 0, %s71
      %s91 = sphi 0, %s93
      %s94 = sphi 0, %s91
      %s95 = sphi 0, %s94
      %s111 = sphi 0, %s95
      %s115 = sphi 0, %s115
      %s117 = sphi 0, %s115
      %s118 = sphi 0, %s117
      %s132 = sphi 0, %s118
      %s138 = sphi 0, %s140
      %s141 = sphi 0, %s138
      %s142 = sphi 0, %s141
      %s158 = sphi 0, %s142
    $region4: #{_lambda_.13} parent=1 // loop_header_branch
      %16 = sbr.rel (%p14) target = $region8
    $region5: #{_lambda_.13} parent=1 // loop_body
      %s18 = ssub.s32 %s13, 1
      %s19 = ssub.s32 %s13, 2
      %s20 = sadd.s32 %s13, 1
      %s21 = ssub.s32 %s13, %s20
      %p22 = scmp.eq.s32.totalorder %s21, 0
      %s24 = sadd.s32 %s23, 1
      %s25 = scalar_select %p22, %s23, %s24
      %p28 = pneg %p22
      %p29 = scmp.eq.s32.totalorder %s13, 1
      %p30 = por %p28, %p29
      %p31 = scmp.ne.s32.totalorder %s23, %s26
      %p32 = scmp.eq.s32.totalorder %s13, 0
      %p33 = por %p31, %p32
      %p34 = scmp.ne.s32.totalorder %s23, %s26
      %p35 = scmp.eq.s32.totalorder %s18, 1
      %p36 = por %p34, %p35
      %p37 = scmp.ne.s32.totalorder %s26, %s27
      %p38 = scmp.eq.s32.totalorder %s18, 0
      %p39 = por %p37, %p38
      %p40 = scmp.ne.s32.totalorder %s26, %s27
      %p41 = scmp.eq.s32.totalorder %s19, 1
      %p42 = por %p40, %p41
      %p44 = scmp.ne.s32.totalorder %s27, %s43
      %p45 = scmp.eq.s32.totalorder %s19, 0
      %p46 = por %p44, %p45
      %s48 = sadd.s32 %s47, 1
      %p51 = scmp.eq.s32.totalorder %s13, 1
      %p52 = scmp.ne.s32.totalorder %s47, %s49
      %p53 = scmp.eq.s32.totalorder %s13, 0
      %p54 = por %p52, %p53
      %p55 = scmp.ne.s32.totalorder %s47, %s49
      %p56 = scmp.eq.s32.totalorder %s18, 1
      %p57 = por %p55, %p56
      %p58 = scmp.ne.s32.totalorder %s49, %s50
      %p59 = scmp.eq.s32.totalorder %s18, 0
      %p60 = por %p58, %p59
      %p61 = scmp.ne.s32.totalorder %s49, %s50
      %p62 = scmp.eq.s32.totalorder %s19, 1
      %p63 = por %p61, %p62
      %p65 = scmp.ne.s32.totalorder %s50, %s64
      %p66 = scmp.eq.s32.totalorder %s19, 0
      %p67 = por %p65, %p66
      %s69 = sadd.s32 %s68, 1
      %p72 = scmp.eq.s32.totalorder %s13, 1
      %p73 = scmp.ne.s32.totalorder %s68, %s70
      %p74 = scmp.eq.s32.totalorder %s13, 0
      %p75 = por %p73, %p74
      %p76 = scmp.ne.s32.totalorder %s68, %s70
      %p77 = scmp.eq.s32.totalorder %s18, 1
      %p78 = por %p76, %p77
      %p79 = scmp.ne.s32.totalorder %s70, %s71
      %p80 = scmp.eq.s32.totalorder %s18, 0
      %p81 = por %p79, %p80
      %p82 = scmp.ne.s32.totalorder %s70, %s71
      %p83 = scmp.eq.s32.totalorder %s19, 1
      %p84 = por %p82, %p83
      %p86 = scmp.ne.s32.totalorder %s71, %s85
      %p87 = scmp.eq.s32.totalorder %s19, 0
      %p88 = por %p86, %p87
      %s89 = ssub.s32 %s13, %s20
      %p90 = scmp.eq.s32.totalorder %s89, 0
      %s92 = sadd.s32 %s91, 1
      %s93 = scalar_select %p90, %s91, %s92
      %p96 = pneg %p90
      %p97 = scmp.eq.s32.totalorder %s13, 1
      %p98 = por %p96, %p97
      %p99 = scmp.ne.s32.totalorder %s91, %s94
      %p100 = scmp.eq.s32.totalorder %s13, 0
      %p101 = por %p99, %p100
      %p102 = scmp.ne.s32.totalorder %s91, %s94
      %p103 = scmp.eq.s32.totalorder %s18, 1
      %p104 = por %p102, %p103
      %p105 = scmp.ne.s32.totalorder %s94, %s95
      %p106 = scmp.eq.s32.totalorder %s18, 0
      %p107 = por %p105, %p106
      %p108 = scmp.ne.s32.totalorder %s94, %s95
      %p109 = scmp.eq.s32.totalorder %s19, 1
      %p110 = por %p108, %p109
      %p112 = scmp.ne.s32.totalorder %s95, %s111
      %p113 = scmp.eq.s32.totalorder %s19, 0
      %p114 = por %p112, %p113
      %s116 = sadd.s32 %s115, 1
      %p119 = scmp.eq.s32.totalorder %s13, 1
      %p120 = scmp.ne.s32.totalorder %s115, %s117
      %p121 = scmp.eq.s32.totalorder %s13, 0
      %p122 = por %p120, %p121
      %p123 = scmp.ne.s32.totalorder %s115, %s117
      %p124 = scmp.eq.s32.totalorder %s18, 1
      %p125 = por %p123, %p124
      %p126 = scmp.ne.s32.totalorder %s117, %s118
      %p127 = scmp.eq.s32.totalorder %s18, 0
      %p128 = por %p126, %p127
      %p129 = scmp.ne.s32.totalorder %s117, %s118
      %p130 = scmp.eq.s32.totalorder %s19, 1
      %p131 = por %p129, %p130
      %p133 = scmp.ne.s32.totalorder %s118, %s132
      %p134 = scmp.eq.s32.totalorder %s19, 0
      %p135 = por %p133, %p134
      %s136 = ssub.s32 %s13, %s20
      %p137 = scmp.eq.s32.totalorder %s136, 0
      %s139 = sadd.s32 %s138, 1
      %s140 = scalar_select %p137, %s138, %s139
      %p143 = pneg %p137
      %p144 = scmp.eq.s32.totalorder %s13, 1
      %p145 = por %p143, %p144
      %p146 = scmp.ne.s32.totalorder %s138, %s141
      %p147 = scmp.eq.s32.totalorder %s13, 0
      %p148 = por %p146, %p147
      %p149 = scmp.ne.s32.totalorder %s138, %s141
      %p150 = scmp.eq.s32.totalorder %s18, 1
      %p151 = por %p149, %p150
      %p152 = scmp.ne.s32.totalorder %s141, %s142
      %p153 = scmp.eq.s32.totalorder %s18, 0
      %p154 = por %p152, %p153
      %p155 = scmp.ne.s32.totalorder %s141, %s142
      %p156 = scmp.eq.s32.totalorder %s19, 1
      %p157 = por %p155, %p156
      %p159 = scmp.ne.s32.totalorder %s142, %s158
      %p160 = scmp.eq.s32.totalorder %s19, 0
      %p161 = por %p159, %p160
      %p162 = scmp.le.s32.totalorder 1, %s13
      %p163 = scmp.lt.s32.totalorder %s13, 3
      %p164 = pnand %p162, %p163
      %p165 = pneg %p164
      // Predicated region
      $region9: #{_lambda_.13} parent=5 // pred_check
        _
      $region10: #{_lambda_.13} parent=5 // pred_check_branch
        %167 = sbr.rel (%p164) target = $region12
      $region11: #{_lambda_.13} parent=5 // pred_region
        %s168 = ssub.s32 %s13, 1
        // Predicated region
        $region13: #{_lambda_.13} parent=11 // pred_check
          %p169 = pneg %p60
        $region14: #{_lambda_.13} parent=11 // pred_check_branch
          %171 = sbr.rel (%p169) target = $region16
        $region15: #{_lambda_.13} parent=11 // pred_region
          %173 = vsyncadd [#allocation3], 0
          %s174 = sshll.u32 %s1, 4
          %s175 = int_to_ptr.hbm [resolvable:$true] %s174
          %s176 = sshll.u32 [#allocation2], 4
          %s177 = int_to_ptr.vmem [resolvable:$true] %s176
          %182 = dma.hbm_to_vmem [thread:$0]  %s175, 2304, %s177, [#allocation3], 64, 64, 4
        $region16: #{_lambda_.13} parent=11 // pred_fallthru
          _
        // Predicated region
        $region17: #{_lambda_.13} parent=11 // pred_check
          %p183 = pneg %p81
        $region18: #{_lambda_.13} parent=11 // pred_check_branch
          %185 = sbr.rel (%p183) target = $region20
        $region19: #{_lambda_.13} parent=11 // pred_region
          %187 = vsyncadd [#allocation5], 0
          %s189 = sshll.u32 %s2, 4
          %s190 = int_to_ptr.hbm [resolvable:$true] %s189
          %s191 = sshll.u32 [#allocation4], 4
          %s192 = int_to_ptr.vmem [resolvable:$true] %s191
          %194 = dma.hbm_to_vmem [thread:$0]  %s190, 16, %s192, [#allocation5]
        $region20: #{_lambda_.13} parent=11 // pred_fallthru
          _
        // Predicated region
        $region21: #{_lambda_.13} parent=11 // pred_check
          %p195 = pneg %p128
        $region22: #{_lambda_.13} parent=11 // pred_check_branch
          %197 = sbr.rel (%p195) target = $region24
        $region23: #{_lambda_.13} parent=11 // pred_region
          %199 = vsyncadd [#allocation5], 0
          %s201 = sshll.u32 %s4, 4
          %s202 = int_to_ptr.hbm [resolvable:$true] %s201
          %s203 = sshll.u32 [#allocation6], 4
          %s204 = int_to_ptr.vmem [resolvable:$true] %s203
          %206 = dma.hbm_to_vmem [thread:$0]  %s202, 16, %s204, [#allocation5]
        $region24: #{_lambda_.13} parent=11 // pred_fallthru
          _
      $region12: #{_lambda_.13} parent=5 // pred_fallthru
        _
      %p207 = scmp.lt.s32.totalorder %s13, 2
      // Predicated region
      $region25: #{_lambda_.13} parent=5 // pred_check
        %p208 = pneg %p207
      $region26: #{_lambda_.13} parent=5 // pred_check_branch
        %210 = sbr.rel (%p208) target = $region28
      $region27: #{_lambda_.13} parent=5 // pred_region
        // Predicated region
        $region29: #{_lambda_.13} parent=27 // pred_check
          %p211 = pneg %p33
        $region30: #{_lambda_.13} parent=27 // pred_check_branch
          %213 = sbr.rel (%p211) target = $region32
        $region31: #{_lambda_.13} parent=27 // pred_region
          %s214 = smul.u32 2, %s13
          %p215 = scmp.lt.s32.totalorder %s214, 3
          %s216 = scalar_select %p215, %s214, 3
          %s217 = smul.addr %s216, 3
          %s218 = smul.addr %s217, 4
          %s219 = scalar_lea.vmem %s0, %s218
          %s220 = smul.u32 2, %s13
        $region32: #{_lambda_.13} parent=27 // pred_fallthru
          _
        // Predicated region
        $region33: #{_lambda_.13} parent=27 // pred_check
          %p221 = pneg %p101
        $region34: #{_lambda_.13} parent=27 // pred_check_branch
          %223 = sbr.rel (%p221) target = $region36
        $region35: #{_lambda_.13} parent=27 // pred_region
          %s224 = smul.u32 2, %s13
          %p225 = scmp.lt.s32.totalorder %s224, 3
          %s226 = scalar_select %p225, %s224, 3
          %s227 = smul.addr %s226, 8
          %s228 = scalar_lea.vmem %s3, %s227
          %s229 = smul.u32 2, %s13
        $region36: #{_lambda_.13} parent=27 // pred_fallthru
          _
      $region28: #{_lambda_.13} parent=5 // pred_fallthru
        _
      %p230 = scmp.le.s32.totalorder 1, %s13
      %p231 = scmp.lt.s32.totalorder %s13, 3
      %p232 = pnand %p230, %p231
      %p233 = pneg %p232
      // Predicated region
      $region37: #{_lambda_.13} parent=5 // pred_check
        _
      $region38: #{_lambda_.13} parent=5 // pred_check_branch
        %235 = sbr.rel (%p232) target = $region40
      $region39: #{_lambda_.13} parent=5 // pred_region
        %s236 = ssub.s32 %s13, 1
        // Predicated region
        $region41: #{_lambda_.13} parent=39 // pred_check
          %p237 = pneg %p60
        $region42: #{_lambda_.13} parent=39 // pred_check_branch
          %239 = sbr.rel (%p237) target = $region44
        $region43: #{_lambda_.13} parent=39 // pred_region
          %241 = dma.done [#allocation3], 2304
        $region44: #{_lambda_.13} parent=39 // pred_fallthru
          _
        // Predicated region
        $region45: #{_lambda_.13} parent=39 // pred_check
          %p242 = pneg %p81
        $region46: #{_lambda_.13} parent=39 // pred_check_branch
          %244 = sbr.rel (%p242) target = $region48
        $region47: #{_lambda_.13} parent=39 // pred_region
          %246 = dma.done [#allocation5], 16
        $region48: #{_lambda_.13} parent=39 // pred_fallthru
          _
        // Predicated region
        $region49: #{_lambda_.13} parent=39 // pred_check
          %p247 = pneg %p128
        $region50: #{_lambda_.13} parent=39 // pred_check_branch
          %249 = sbr.rel (%p247) target = $region52
        $region51: #{_lambda_.13} parent=39 // pred_region
          %251 = dma.done [#allocation5], 16
        $region52: #{_lambda_.13} parent=39 // pred_fallthru
          _
        %s252 = smul.u32 2, %s18
        %p253 = scmp.lt.s32.totalorder %s252, 3
        %s254 = scalar_select %p253, %s252, 3
        %s255 = smul.addr %s254, 3
        %s256 = smul.addr %s255, 4
        %s257 = scalar_lea.vmem %s0, %s256
        %p258 = pneg %p39
        %p259 = pneg %p36
        %p260 = pneg %p60
        %p261 = pneg %p57
        %p262 = pneg %p81
        %p263 = pneg %p78
        %s264 = smul.u32 2, %s18
        %p265 = scmp.lt.s32.totalorder %s264, 3
        %s266 = scalar_select %p265, %s264, 3
        %s267 = smul.addr %s266, 8
        %s268 = scalar_lea.vmem %s3, %s267
        %p269 = pneg %p107
        %p270 = pneg %p104
        %p271 = pneg %p128
        %p272 = pneg %p125
        %p273 = pneg %p154
        %p274 = pneg %p151
        %s275 = smul.u32 2, %s18
        %p276 = scmp.lt.s32.totalorder %s275, 3
        %s277 = scalar_select %p276, %s275, 3
        %s278 = smul.addr %s277, 4
        %s279 = scalar_lea.vmem %s5, %s278
        %s280 = smul.u32 2, %s18
        %p281 = scmp.lt.s32.totalorder %s280, 3
        %s282 = scalar_select %p281, %s280, 3
        %s283 = smul.addr %s282, 3
        %s284 = smul.addr %s283, 4
        %s285 = scalar_lea.vmem %s0, %s284
        %s286 = smul.u32 2, %s18
        %s287 = smul.u32 2, %s18
        %p288 = scmp.lt.s32.totalorder %s287, 3
        %s289 = scalar_select %p288, %s287, 3
        %s290 = smul.addr %s289, 8
        %s291 = scalar_lea.vmem %s3, %s290
        %s292 = smul.u32 2, %s18
        %s293 = smul.u32 2, %s18
        %p294 = scmp.lt.s32.totalorder %s293, 3
        %s295 = scalar_select %p294, %s293, 3
        %s296 = smul.addr %s295, 4
        %s297 = scalar_lea.vmem %s5, %s296
        %s298 = smul.u32 2, %s18
        %v300 = vld [vmem:[%s285] sm:$0xff]
        %v301 = vld [vmem:[%s285 + $0x8] sm:$0xf]
        %v302 = vld [vmem:[%s285 + $0xc] sm:$0xff]
        %v303 = vld [vmem:[%s285 + $0x14] sm:$0xf]
        %v304 = vld [vmem:[#allocation2] sm:$0xf]
        %v305 = vld [vmem:[#allocation2 + $0x4] sm:$0xf]
        %v306 = vld [vmem:[#allocation2 + $0x8] sm:$0xf]
        %v307 = vld [vmem:[#allocation2 + $0xc] sm:$0xf]
        %v308 = vld [vmem:[#allocation2 + $0x10] sm:$0xf]
        %v309 = vld [vmem:[#allocation2 + $0x14] sm:$0xf]
        %v310 = vld [vmem:[#allocation2 + $0x18] sm:$0xf]
        %v311 = vld [vmem:[#allocation2 + $0x1c] sm:$0xf]
        %v312 = vld [vmem:[#allocation2 + $0x20] sm:$0xf]
        %v313 = vld [vmem:[#allocation2 + $0x24] sm:$0xf]
        %v314 = vld [vmem:[#allocation2 + $0x28] sm:$0xf]
        %v315 = vld [vmem:[#allocation2 + $0x2c] sm:$0xf]
        %v316 = vld [vmem:[#allocation2 + $0x30] sm:$0xf]
        %v317 = vld [vmem:[#allocation2 + $0x34] sm:$0xf]
        %v318 = vld [vmem:[#allocation2 + $0x38] sm:$0xf]
        %v319 = vld [vmem:[#allocation2 + $0x3c] sm:$0xf]
        %v320 = vld [vmem:[#allocation2 + $0x40] sm:$0xf]
        %v321 = vld [vmem:[#allocation2 + $0x44] sm:$0xf]
        %v322 = vld [vmem:[#allocation2 + $0x48] sm:$0xf]
        %v323 = vld [vmem:[#allocation2 + $0x4c] sm:$0xf]
        %v324 = vld [vmem:[#allocation2 + $0x50] sm:$0xf]
        %v325 = vld [vmem:[#allocation2 + $0x54] sm:$0xf]
        %v326 = vld [vmem:[#allocation2 + $0x58] sm:$0xf]
        %v327 = vld [vmem:[#allocation2 + $0x5c] sm:$0xf]
        %v328 = vld [vmem:[#allocation2 + $0x60] sm:$0xf]
        %v329 = vld [vmem:[#allocation2 + $0x64] sm:$0xf]
        %v330 = vld [vmem:[#allocation2 + $0x68] sm:$0xf]
        %v331 = vld [vmem:[#allocation2 + $0x6c] sm:$0xf]
        %v332 = vld [vmem:[#allocation2 + $0x70] sm:$0xf]
        %v333 = vld [vmem:[#allocation2 + $0x74] sm:$0xf]
        %v334 = vld [vmem:[#allocation2 + $0x78] sm:$0xf]
        %v335 = vld [vmem:[#allocation2 + $0x7c] sm:$0xf]
        %v336 = vld [vmem:[#allocation2 + $0x80] sm:$0xf]
        %v337 = vld [vmem:[#allocation2 + $0x84] sm:$0xf]
        %v338 = vld [vmem:[#allocation2 + $0x88] sm:$0xf]
        %v339 = vld [vmem:[#allocation2 + $0x8c] sm:$0xf]
        %v340 = vld [vmem:[#allocation4] sm:$0x1]
        %v342 = vperm.slane %v340, 0
        %v348 = vunpack.c.l.b16 %v300
        %v349 = vunpack.c.h.b16 %v300
        %v350 = vunpack.c.l.b16 %v301
        %v351 = vunpack.c.l.b16 %v302
        %v352 = vunpack.c.h.b16 %v302
        %v353 = vunpack.c.l.b16 %v303
        %v354 = vpack.c.b16 %v351, %v348
        %v355 = vpack.c.b16 %v352, %v349
        %v356 = vpack.c.b16 %v353, %v350
        %v395 = vunpack.c.l.b16 %v304
        %v396 = vunpack.c.l.b16 %v305
        %v397 = vunpack.c.l.b16 %v306
        %v398 = vunpack.c.l.b16 %v307
        %v399 = vunpack.c.l.b16 %v308
        %v400 = vunpack.c.l.b16 %v309
        %v401 = vunpack.c.l.b16 %v310
        %v402 = vunpack.c.l.b16 %v311
        %v403 = vunpack.c.l.b16 %v312
        %v404 = vunpack.c.l.b16 %v313
        %v405 = vunpack.c.l.b16 %v314
        %v406 = vunpack.c.l.b16 %v315
        %v407 = vunpack.c.l.b16 %v316
        %v408 = vunpack.c.l.b16 %v317
        %v409 = vunpack.c.l.b16 %v318
        %v410 = vunpack.c.l.b16 %v319
        %v411 = vunpack.c.l.b16 %v320
        %v412 = vunpack.c.l.b16 %v321
        %v413 = vunpack.c.l.b16 %v322
        %v414 = vunpack.c.l.b16 %v323
        %v415 = vunpack.c.l.b16 %v324
        %v416 = vunpack.c.l.b16 %v325
        %v417 = vunpack.c.l.b16 %v326
        %v418 = vunpack.c.l.b16 %v327
        %v419 = vunpack.c.l.b16 %v328
        %v420 = vunpack.c.l.b16 %v329
        %v421 = vunpack.c.l.b16 %v330
        %v422 = vunpack.c.l.b16 %v331
        %v423 = vunpack.c.l.b16 %v332
        %v424 = vunpack.c.l.b16 %v333
        %v425 = vunpack.c.l.b16 %v334
        %v426 = vunpack.c.l.b16 %v335
        %v427 = vunpack.c.l.b16 %v336
        %v428 = vunpack.c.l.b16 %v337
        %v429 = vunpack.c.l.b16 %v338
        %v430 = vunpack.c.l.b16 %v339
        %v431 = vpack.c.b16 %v396, %v395
        %v432 = vpack.c.b16 %v398, %v397
        %v433 = vpack.c.b16 %v400, %v399
        %v434 = vpack.c.b16 %v402, %v401
        %v435 = vpack.c.b16 %v404, %v403
        %v436 = vpack.c.b16 %v406, %v405
        %v437 = vpack.c.b16 %v408, %v407
        %v438 = vpack.c.b16 %v410, %v409
        %v439 = vpack.c.b16 %v412, %v411
        %v440 = vpack.c.b16 %v414, %v413
        %v441 = vpack.c.b16 %v416, %v415
        %v442 = vpack.c.b16 %v418, %v417
        %v443 = vpack.c.b16 %v420, %v419
        %v444 = vpack.c.b16 %v422, %v421
        %v445 = vpack.c.b16 %v424, %v423
        %v446 = vpack.c.b16 %v426, %v425
        %v447 = vpack.c.b16 %v428, %v427
        %v448 = vpack.c.b16 %v430, %v429
        %vm467 = vcmask 261120
        %v469 = vsel %vm467, %v356, 0
        %471 = vmatpush.bf16.msra.mxu0 %v438
        %472 = vmatpush.bf16.msra.mxu0 %v437
        %473 = vmatpush.bf16.msra.mxu0 %v436
        %474 = vmatpush.bf16.msra.mxu0 %v435
        %475 = vmatpush.bf16.msra.mxu0 %v434
        %476 = vmatpush.bf16.msra.mxu0 %v433
        %477 = vmatpush.bf16.msra.mxu0 %v432
        %478 = vmatpush.bf16.msra.mxu0 %v431
        %479 = vmatmul.bf16.gmra.mxu0 %v354
        %v480 = vpop.f32.mrf.mxu0
        %v481 = vadd.f32 %v342, %v480
        %v482 = vpop.f32.mrf.mxu0
        %v483 = vadd.f32 %v342, %v482
        %484 = vdwg.mxu0
        %485 = vmatpush.bf16.msra.mxu0 %v446
        %486 = vmatpush.bf16.msra.mxu0 %v445
        %487 = vmatpush.bf16.msra.mxu0 %v444
        %488 = vmatpush.bf16.msra.mxu0 %v443
        %489 = vmatpush.bf16.msra.mxu0 %v442
        %490 = vmatpush.bf16.msra.mxu0 %v441
        %491 = vmatpush.bf16.msra.mxu0 %v440
        %492 = vmatpush.bf16.msra.mxu0 %v439
        %493 = vmatmul.bf16.gmra.mxu0 %v355
        %v494 = vpop.f32.mrf.mxu0
        %v495 = vadd.f32 %v481, %v494
        %v496 = vpop.f32.mrf.mxu0
        %v497 = vadd.f32 %v483, %v496
        %498 = vdwg.mxu0
        %499 = vmatpush.bf16.msra.mxu0 0
        %500 = vmatpush.bf16.msra.mxu0 0
        %501 = vmatpush.bf16.msra.mxu0 0
        %502 = vmatpush.bf16.msra.mxu0 0
        %503 = vmatpush.bf16.msra.mxu0 0
        %504 = vmatpush.bf16.msra.mxu0 0
        %505 = vmatpush.bf16.msra.mxu0 %v448
        %506 = vmatpush.bf16.msra.mxu0 %v447
        %507 = vmatmul.bf16.gmra.mxu0 %v469
        %v508 = vpop.f32.mrf.mxu0
        %v509 = vadd.f32 %v495, %v508
        %v510 = vpop.f32.mrf.mxu0
        %v511 = vadd.f32 %v497, %v510
        %512 = vdwg.mxu0
        %v513 = vld [vmem:[%s291] sm:$0xff]
        %v514 = vld [vmem:[%s291 + $0x8] sm:$0xff]
        %v515 = vld [vmem:[#allocation6] sm:$0x1]
        %517 = vset.pattern.permute.xlu0 0
        %518 = vperm.xlu0 %517, %v513
        %v519 = vpop.permute.xlu0 %518
        %522 = vset.pattern.permute.xlu0 0
        %523 = vperm.xlu0 %522, %v514
        %v524 = vpop.permute.xlu0 %523
        %v527 = vperm.slane %v515, 0
        %v529 = vmul.f32 %v519, %v527
        %v530 = vmul.f32 %v524, %v527
        %v531 = vadd.f32 %v509, %v529
        %v532 = vadd.f32 %v511, %v530
        %v533 = vpack.c.bf16 %v531, %v531
        %v534 = vpack.c.bf16 %v532, %v532
        %535 = vst [vmem:[%s297] sm:$0xf] %v533
        %536 = vst [vmem:[%s297 + $0x4] sm:$0xf] %v534
        %s537 = smul.u32 2, %s18
        %p538 = scmp.lt.s32.totalorder %s537, 3
        %s539 = scalar_select %p538, %s537, 3
        %s540 = smul.addr %s539, 4
        %s541 = scalar_lea.vmem %s5, %s540
        // Predicated region
        $region53: #{_lambda_.13} parent=39 // pred_check
          %p542 = pneg %p151
        $region54: #{_lambda_.13} parent=39 // pred_check_branch
          %544 = sbr.rel (%p542) target = $region56
        $region55: #{_lambda_.13} parent=39 // pred_region
          %s545 = smul.u32 2, %s18
        $region56: #{_lambda_.13} parent=39 // pred_fallthru
          _
      $region40: #{_lambda_.13} parent=5 // pred_fallthru
        _
      %p546 = scmp.le.s32.totalorder 2, %s13
      // Predicated region
      $region57: #{_lambda_.13} parent=5 // pred_check
        %p547 = pneg %p546
      $region58: #{_lambda_.13} parent=5 // pred_check_branch
        %549 = sbr.rel (%p547) target = $region60
      $region59: #{_lambda_.13} parent=5 // pred_region
        %s550 = ssub.s32 %s13, 2
        // Predicated region
        $region61: #{_lambda_.13} parent=59 // pred_check
          %p551 = pneg %p157
        $region62: #{_lambda_.13} parent=59 // pred_check_branch
          %553 = sbr.rel (%p551) target = $region64
        $region63: #{_lambda_.13} parent=59 // pred_region
          %s554 = smul.u32 2, %s19
          %p555 = scmp.lt.s32.totalorder %s554, 3
          %s556 = scalar_select %p555, %s554, 3
          %s557 = smul.addr %s556, 4
          %s558 = scalar_lea.vmem %s5, %s557
        $region64: #{_lambda_.13} parent=59 // pred_fallthru
          _
      $region60: #{_lambda_.13} parent=5 // pred_fallthru
        _
    $region6: #{_lambda_.13} parent=1 // loop_footer
      %s17 = sadd.s32 1, %s13
    $region7: #{_lambda_.13} parent=1 // loop_footer_branch
      %12 = sbr.rel target = $region3
    $region8: #{_lambda_.13} parent=1 // loop_exit
      _
    %559 = vsyncpa [#allocation3], 1
    %s560 = scalar_lea.sflag [#allocation3], 1
    %561 = vsyncpa %s560, 1
    %562 = vsyncpa [#allocation5], 1

// kernel: _lambda_.14
$region0: #{_lambda_.14}
  #allocation0 [shape = 'u32[]', space=smem, size = 0x4, offset = 0x4, fixed_abs, tag = 'smem constant byte address 0x4 - core index']
  #allocation1 [shape = 'u32[72,128]{1,0:T(1,128)}', space=vmem, size = 0x9000, scoped, tag = 'internal scratch']
  %s0 = inlined_call_operand.vmem [shape: bf16[32,576], index: 0, kind: input, shape index: {}]
  %s1 = inlined_call_operand.hbm [shape: bf16[576,128], index: 1, kind: input, shape index: {}]
  %s2 = inlined_call_operand.vmem [shape: f32[1,128], index: 2, kind: input, shape index: {}]
  %s3 = inlined_call_operand.vmem [shape: bf16[32,128], index: 3, kind: output, shape index: {}]
  %s4 = sld [smem:[#allocation0]]
  $region49: #{_lambda_.14} parent=0
    _
  %s6 = ssub.s32 1, %s4
  %s7 = scalar_select 0, %s6, %s4
  $region1: #{_lambda_.14} parent=0
    #allocation2 [shape = 'u8[147456]{0}', space=vmem, size = 0x24000, scoped, tag = 'input window, operand 1, single buffered']
    #allocation3 [shape = 's32[2]{0}', space=sflag, size = 0x8, scoped, tag = 'scoped memory for _lambda_.14']
    %8 = vsyncpa [#allocation3], 0
    loop: start=0, step=1, limit=4
    $region2: #{_lambda_.14} parent=1 // loop_pre_header
      _
    $region3: #{_lambda_.14} parent=1 // loop_header
      %s10 = sphi 0, %s14
      %p11 = scmp.ge.s32.totalorder %s10, 4
      %s20 = sphi 0, %s22
      %s23 = sphi 0, %s20
      %s24 = sphi 0, %s23
      %s40 = sphi 0, %s24
      %s44 = sphi 0, %s44
      %s46 = sphi 0, %s44
      %s47 = sphi 0, %s46
      %s61 = sphi 0, %s47
      %s65 = sphi 0, %s65
      %s67 = sphi 0, %s65
      %s68 = sphi 0, %s67
      %s82 = sphi 0, %s68
      %s88 = sphi 0, %s90
      %s91 = sphi 0, %s88
      %s92 = sphi 0, %s91
      %s108 = sphi 0, %s92
    $region4: #{_lambda_.14} parent=1 // loop_header_branch
      %13 = sbr.rel (%p11) target = $region8
    $region5: #{_lambda_.14} parent=1 // loop_body
      %s15 = ssub.s32 %s10, 1
      %s16 = ssub.s32 %s10, 2
      %s17 = sadd.s32 %s10, 1
      %s18 = ssub.s32 %s10, %s17
      %p19 = scmp.eq.s32.totalorder %s18, 0
      %s21 = sadd.s32 %s20, 1
      %s22 = scalar_select %p19, %s20, %s21
      %p25 = pneg %p19
      %p26 = scmp.eq.s32.totalorder %s10, 1
      %p27 = por %p25, %p26
      %p28 = scmp.ne.s32.totalorder %s20, %s23
      %p29 = scmp.eq.s32.totalorder %s10, 0
      %p30 = por %p28, %p29
      %p31 = scmp.ne.s32.totalorder %s20, %s23
      %p32 = scmp.eq.s32.totalorder %s15, 1
      %p33 = por %p31, %p32
      %p34 = scmp.ne.s32.totalorder %s23, %s24
      %p35 = scmp.eq.s32.totalorder %s15, 0
      %p36 = por %p34, %p35
      %p37 = scmp.ne.s32.totalorder %s23, %s24
      %p38 = scmp.eq.s32.totalorder %s16, 1
      %p39 = por %p37, %p38
      %p41 = scmp.ne.s32.totalorder %s24, %s40
      %p42 = scmp.eq.s32.totalorder %s16, 0
      %p43 = por %p41, %p42
      %s45 = sadd.s32 %s44, 1
      %p48 = scmp.eq.s32.totalorder %s10, 1
      %p49 = scmp.ne.s32.totalorder %s44, %s46
      %p50 = scmp.eq.s32.totalorder %s10, 0
      %p51 = por %p49, %p50
      %p52 = scmp.ne.s32.totalorder %s44, %s46
      %p53 = scmp.eq.s32.totalorder %s15, 1
      %p54 = por %p52, %p53
      %p55 = scmp.ne.s32.totalorder %s46, %s47
      %p56 = scmp.eq.s32.totalorder %s15, 0
      %p57 = por %p55, %p56
      %p58 = scmp.ne.s32.totalorder %s46, %s47
      %p59 = scmp.eq.s32.totalorder %s16, 1
      %p60 = por %p58, %p59
      %p62 = scmp.ne.s32.totalorder %s47, %s61
      %p63 = scmp.eq.s32.totalorder %s16, 0
      %p64 = por %p62, %p63
      %s66 = sadd.s32 %s65, 1
      %p69 = scmp.eq.s32.totalorder %s10, 1
      %p70 = scmp.ne.s32.totalorder %s65, %s67
      %p71 = scmp.eq.s32.totalorder %s10, 0
      %p72 = por %p70, %p71
      %p73 = scmp.ne.s32.totalorder %s65, %s67
      %p74 = scmp.eq.s32.totalorder %s15, 1
      %p75 = por %p73, %p74
      %p76 = scmp.ne.s32.totalorder %s67, %s68
      %p77 = scmp.eq.s32.totalorder %s15, 0
      %p78 = por %p76, %p77
      %p79 = scmp.ne.s32.totalorder %s67, %s68
      %p80 = scmp.eq.s32.totalorder %s16, 1
      %p81 = por %p79, %p80
      %p83 = scmp.ne.s32.totalorder %s68, %s82
      %p84 = scmp.eq.s32.totalorder %s16, 0
      %p85 = por %p83, %p84
      %s86 = ssub.s32 %s10, %s17
      %p87 = scmp.eq.s32.totalorder %s86, 0
      %s89 = sadd.s32 %s88, 1
      %s90 = scalar_select %p87, %s88, %s89
      %p93 = pneg %p87
      %p94 = scmp.eq.s32.totalorder %s10, 1
      %p95 = por %p93, %p94
      %p96 = scmp.ne.s32.totalorder %s88, %s91
      %p97 = scmp.eq.s32.totalorder %s10, 0
      %p98 = por %p96, %p97
      %p99 = scmp.ne.s32.totalorder %s88, %s91
      %p100 = scmp.eq.s32.totalorder %s15, 1
      %p101 = por %p99, %p100
      %p102 = scmp.ne.s32.totalorder %s91, %s92
      %p103 = scmp.eq.s32.totalorder %s15, 0
      %p104 = por %p102, %p103
      %p105 = scmp.ne.s32.totalorder %s91, %s92
      %p106 = scmp.eq.s32.totalorder %s16, 1
      %p107 = por %p105, %p106
      %p109 = scmp.ne.s32.totalorder %s92, %s108
      %p110 = scmp.eq.s32.totalorder %s16, 0
      %p111 = por %p109, %p110
      %p112 = scmp.le.s32.totalorder 1, %s10
      %p113 = scmp.lt.s32.totalorder %s10, 3
      %p114 = pnand %p112, %p113
      %p115 = pneg %p114
      // Predicated region
      $region9: #{_lambda_.14} parent=5 // pred_check
        _
      $region10: #{_lambda_.14} parent=5 // pred_check_branch
        %117 = sbr.rel (%p114) target = $region12
      $region11: #{_lambda_.14} parent=5 // pred_region
        %s118 = ssub.s32 %s10, 1
        // Predicated region
        $region13: #{_lambda_.14} parent=11 // pred_check
          %p119 = pneg %p57
        $region14: #{_lambda_.14} parent=11 // pred_check_branch
          %121 = sbr.rel (%p119) target = $region16
        $region15: #{_lambda_.14} parent=11 // pred_region
          %123 = vsyncadd [#allocation3], 0
          %s124 = sshll.u32 %s1, 4
          %s125 = int_to_ptr.hbm [resolvable:$true] %s124
          %s126 = sshll.u32 [#allocation2], 4
          %s127 = int_to_ptr.vmem [resolvable:$true] %s126
          %132 = dma.hbm_to_vmem [thread:$0]  %s125, 4608, %s127, [#allocation3], 64, 64, 4
        $region16: #{_lambda_.14} parent=11 // pred_fallthru
          _
        // Predicated region
        $region17: #{_lambda_.14} parent=11 // pred_check
          %p133 = pneg %p78
        $region18: #{_lambda_.14} parent=11 // pred_check_branch
          %135 = sbr.rel (%p133) target = $region20
        $region19: #{_lambda_.14} parent=11 // pred_region
          _
        $region20: #{_lambda_.14} parent=11 // pred_fallthru
          _
      $region12: #{_lambda_.14} parent=5 // pred_fallthru
        _
      %p136 = scmp.lt.s32.totalorder %s10, 2
      // Predicated region
      $region21: #{_lambda_.14} parent=5 // pred_check
        %p137 = pneg %p136
      $region22: #{_lambda_.14} parent=5 // pred_check_branch
        %139 = sbr.rel (%p137) target = $region24
      $region23: #{_lambda_.14} parent=5 // pred_region
        // Predicated region
        $region25: #{_lambda_.14} parent=23 // pred_check
          %p140 = pneg %p30
        $region26: #{_lambda_.14} parent=23 // pred_check_branch
          %142 = sbr.rel (%p140) target = $region28
        $region27: #{_lambda_.14} parent=23 // pred_region
          %s143 = smul.u32 2, %s10
          %p144 = scmp.lt.s32.totalorder %s143, 3
          %s145 = scalar_select %p144, %s143, 3
          %s146 = smul.addr %s145, 5
          %s147 = smul.addr %s146, 4
          %s148 = scalar_lea.vmem %s0, %s147
          %s149 = smul.u32 2, %s10
        $region28: #{_lambda_.14} parent=23 // pred_fallthru
          _
      $region24: #{_lambda_.14} parent=5 // pred_fallthru
        _
      %p150 = scmp.le.s32.totalorder 1, %s10
      %p151 = scmp.lt.s32.totalorder %s10, 3
      %p152 = pnand %p150, %p151
      %p153 = pneg %p152
      // Predicated region
      $region29: #{_lambda_.14} parent=5 // pred_check
        _
      $region30: #{_lambda_.14} parent=5 // pred_check_branch
        %155 = sbr.rel (%p152) target = $region32
      $region31: #{_lambda_.14} parent=5 // pred_region
        %s156 = ssub.s32 %s10, 1
        // Predicated region
        $region33: #{_lambda_.14} parent=31 // pred_check
          %p157 = pneg %p57
        $region34: #{_lambda_.14} parent=31 // pred_check_branch
          %159 = sbr.rel (%p157) target = $region36
        $region35: #{_lambda_.14} parent=31 // pred_region
          %161 = dma.done [#allocation3], 4608
        $region36: #{_lambda_.14} parent=31 // pred_fallthru
          _
        %s162 = smul.u32 2, %s15
        %p163 = scmp.lt.s32.totalorder %s162, 3
        %s164 = scalar_select %p163, %s162, 3
        %s165 = smul.addr %s164, 5
        %s166 = smul.addr %s165, 4
        %s167 = scalar_lea.vmem %s0, %s166
        %p168 = pneg %p36
        %p169 = pneg %p33
        %p170 = pneg %p57
        %p171 = pneg %p54
        %p172 = pneg %p78
        %p173 = pneg %p75
        %p174 = pneg %p104
        %p175 = pneg %p101
        %s176 = smul.u32 2, %s15
        %p177 = scmp.lt.s32.totalorder %s176, 3
        %s178 = scalar_select %p177, %s176, 3
        %s179 = smul.addr %s178, 4
        %s180 = scalar_lea.vmem %s3, %s179
        %s181 = smul.u32 2, %s15
        %p182 = scmp.lt.s32.totalorder %s181, 3
        %s183 = scalar_select %p182, %s181, 3
        %s184 = smul.addr %s183, 5
        %s185 = smul.addr %s184, 4
        %s186 = scalar_lea.vmem %s0, %s185
        %s187 = smul.u32 2, %s15
        %s188 = smul.u32 2, %s15
        %p189 = scmp.lt.s32.totalorder %s188, 3
        %s190 = scalar_select %p189, %s188, 3
        %s191 = smul.addr %s190, 4
        %s192 = scalar_lea.vmem %s3, %s191
        %s193 = smul.u32 2, %s15
        %v195 = vld [vmem:[%s186] sm:$0xff]
        %v196 = vld [vmem:[%s186 + $0x8] sm:$0xff]
        %v197 = vld [vmem:[%s186 + $0x10] sm:$0xf]
        %v198 = vld [vmem:[%s186 + $0x14] sm:$0xff]
        %v199 = vld [vmem:[%s186 + $0x1c] sm:$0xff]
        %v200 = vld [vmem:[%s186 + $0x24] sm:$0xf]
        %v201 = vunpack.c.l.bf16 %v195
        %v202 = vunpack.c.h.bf16 %v195
        %v203 = vunpack.c.l.bf16 %v196
        %v204 = vunpack.c.h.bf16 %v196
        %v205 = vunpack.c.l.bf16 %v197
        %v206 = vunpack.c.l.bf16 %v198
        %v207 = vunpack.c.h.bf16 %v198
        %v208 = vunpack.c.l.bf16 %v199
        %v209 = vunpack.c.h.bf16 %v199
        %v210 = vunpack.c.l.bf16 %v200
        %v211 = vmax.f32 %v201, 0.0
        %v212 = vmax.f32 %v202, 0.0
        %v213 = vmax.f32 %v203, 0.0
        %v214 = vmax.f32 %v204, 0.0
        %v215 = vmax.f32 %v205, 0.0
        %v216 = vmax.f32 %v206, 0.0
        %v217 = vmax.f32 %v207, 0.0
        %v218 = vmax.f32 %v208, 0.0
        %v219 = vmax.f32 %v209, 0.0
        %v220 = vmax.f32 %v210, 0.0
        %v221 = vpack.c.bf16 %v216, %v211
        %v222 = vpack.c.bf16 %v217, %v212
        %v223 = vpack.c.bf16 %v218, %v213
        %v224 = vpack.c.bf16 %v219, %v214
        %v225 = vpack.c.bf16 %v220, %v215
        %v226 = vld [vmem:[#allocation2] sm:$0xf]
        %v227 = vld [vmem:[#allocation2 + $0x4] sm:$0xf]
        %v228 = vld [vmem:[#allocation2 + $0x8] sm:$0xf]
        %v229 = vld [vmem:[#allocation2 + $0xc] sm:$0xf]
        %v230 = vld [vmem:[#allocation2 + $0x10] sm:$0xf]
        %v231 = vld [vmem:[#allocation2 + $0x14] sm:$0xf]
        %v232 = vld [vmem:[#allocation2 + $0x18] sm:$0xf]
        %v233 = vld [vmem:[#allocation2 + $0x1c] sm:$0xf]
        %v234 = vld [vmem:[#allocation2 + $0x20] sm:$0xf]
        %v235 = vld [vmem:[#allocation2 + $0x24] sm:$0xf]
        %v236 = vld [vmem:[#allocation2 + $0x28] sm:$0xf]
        %v237 = vld [vmem:[#allocation2 + $0x2c] sm:$0xf]
        %v238 = vld [vmem:[#allocation2 + $0x30] sm:$0xf]
        %v239 = vld [vmem:[#allocation2 + $0x34] sm:$0xf]
        %v240 = vld [vmem:[#allocation2 + $0x38] sm:$0xf]
        %v241 = vld [vmem:[#allocation2 + $0x3c] sm:$0xf]
        %v242 = vld [vmem:[#allocation2 + $0x40] sm:$0xf]
        %v243 = vld [vmem:[#allocation2 + $0x44] sm:$0xf]
        %v244 = vld [vmem:[#allocation2 + $0x48] sm:$0xf]
        %v245 = vld [vmem:[#allocation2 + $0x4c] sm:$0xf]
        %v246 = vld [vmem:[#allocation2 + $0x50] sm:$0xf]
        %v247 = vld [vmem:[#allocation2 + $0x54] sm:$0xf]
        %v248 = vld [vmem:[#allocation2 + $0x58] sm:$0xf]
        %v249 = vld [vmem:[#allocation2 + $0x5c] sm:$0xf]
        %v250 = vld [vmem:[#allocation2 + $0x60] sm:$0xf]
        %v251 = vld [vmem:[#allocation2 + $0x64] sm:$0xf]
        %v252 = vld [vmem:[#allocation2 + $0x68] sm:$0xf]
        %v253 = vld [vmem:[#allocation2 + $0x6c] sm:$0xf]
        %v254 = vld [vmem:[#allocation2 + $0x70] sm:$0xf]
        %v255 = vld [vmem:[#allocation2 + $0x74] sm:$0xf]
        %v256 = vld [vmem:[#allocation2 + $0x78] sm:$0xf]
        %v257 = vld [vmem:[#allocation2 + $0x7c] sm:$0xf]
        %v258 = vld [vmem:[#allocation2 + $0x80] sm:$0xf]
        %v259 = vld [vmem:[#allocation2 + $0x84] sm:$0xf]
        %v260 = vld [vmem:[#allocation2 + $0x88] sm:$0xf]
        %v261 = vld [vmem:[#allocation2 + $0x8c] sm:$0xf]
        %v262 = vld [vmem:[#allocation2 + $0x90] sm:$0xf]
        %v263 = vld [vmem:[#allocation2 + $0x94] sm:$0xf]
        %v264 = vld [vmem:[#allocation2 + $0x98] sm:$0xf]
        %v265 = vld [vmem:[#allocation2 + $0x9c] sm:$0xf]
        %v266 = vld [vmem:[#allocation2 + $0xa0] sm:$0xf]
        %v267 = vld [vmem:[#allocation2 + $0xa4] sm:$0xf]
        %v268 = vld [vmem:[#allocation2 + $0xa8] sm:$0xf]
        %v269 = vld [vmem:[#allocation2 + $0xac] sm:$0xf]
        %v270 = vld [vmem:[#allocation2 + $0xb0] sm:$0xf]
        %v271 = vld [vmem:[#allocation2 + $0xb4] sm:$0xf]
        %v272 = vld [vmem:[#allocation2 + $0xb8] sm:$0xf]
        %v273 = vld [vmem:[#allocation2 + $0xbc] sm:$0xf]
        %v274 = vld [vmem:[#allocation2 + $0xc0] sm:$0xf]
        %v275 = vld [vmem:[#allocation2 + $0xc4] sm:$0xf]
        %v276 = vld [vmem:[#allocation2 + $0xc8] sm:$0xf]
        %v277 = vld [vmem:[#allocation2 + $0xcc] sm:$0xf]
        %v278 = vld [vmem:[#allocation2 + $0xd0] sm:$0xf]
        %v279 = vld [vmem:[#allocation2 + $0xd4] sm:$0xf]
        %v280 = vld [vmem:[#allocation2 + $0xd8] sm:$0xf]
        %v281 = vld [vmem:[#allocation2 + $0xdc] sm:$0xf]
        %v282 = vld [vmem:[#allocation2 + $0xe0] sm:$0xf]
        %v283 = vld [vmem:[#allocation2 + $0xe4] sm:$0xf]
        %v284 = vld [vmem:[#allocation2 + $0xe8] sm:$0xf]
        %v285 = vld [vmem:[#allocation2 + $0xec] sm:$0xf]
        %v286 = vld [vmem:[#allocation2 + $0xf0] sm:$0xf]
        %v287 = vld [vmem:[#allocation2 + $0xf4] sm:$0xf]
        %v288 = vld [vmem:[#allocation2 + $0xf8] sm:$0xf]
        %v289 = vld [vmem:[#allocation2 + $0xfc] sm:$0xf]
        %v290 = vld [vmem:[#allocation2 + $0x100] sm:$0xf]
        %v291 = vld [vmem:[#allocation2 + $0x104] sm:$0xf]
        %v292 = vld [vmem:[#allocation2 + $0x108] sm:$0xf]
        %v293 = vld [vmem:[#allocation2 + $0x10c] sm:$0xf]
        %v294 = vld [vmem:[#allocation2 + $0x110] sm:$0xf]
        %v295 = vld [vmem:[#allocation2 + $0x114] sm:$0xf]
        %v296 = vld [vmem:[#allocation2 + $0x118] sm:$0xf]
        %v297 = vld [vmem:[#allocation2 + $0x11c] sm:$0xf]
        %v298 = vld [vmem:[%s2] sm:$0x1]
        %v300 = vperm.slane %v298, 0
        %v374 = vunpack.c.l.b16 %v226
        %v375 = vunpack.c.l.b16 %v227
        %v376 = vunpack.c.l.b16 %v228
        %v377 = vunpack.c.l.b16 %v229
        %v378 = vunpack.c.l.b16 %v230
        %v379 = vunpack.c.l.b16 %v231
        %v380 = vunpack.c.l.b16 %v232
        %v381 = vunpack.c.l.b16 %v233
        %v382 = vunpack.c.l.b16 %v234
        %v383 = vunpack.c.l.b16 %v235
        %v384 = vunpack.c.l.b16 %v236
        %v385 = vunpack.c.l.b16 %v237
        %v386 = vunpack.c.l.b16 %v238
        %v387 = vunpack.c.l.b16 %v239
        %v388 = vunpack.c.l.b16 %v240
        %v389 = vunpack.c.l.b16 %v241
        %v390 = vunpack.c.l.b16 %v242
        %v391 = vunpack.c.l.b16 %v243
        %v392 = vunpack.c.l.b16 %v244
        %v393 = vunpack.c.l.b16 %v245
        %v394 = vunpack.c.l.b16 %v246
        %v395 = vunpack.c.l.b16 %v247
        %v396 = vunpack.c.l.b16 %v248
        %v397 = vunpack.c.l.b16 %v249
        %v398 = vunpack.c.l.b16 %v250
        %v399 = vunpack.c.l.b16 %v251
        %v400 = vunpack.c.l.b16 %v252
        %v401 = vunpack.c.l.b16 %v253
        %v402 = vunpack.c.l.b16 %v254
        %v403 = vunpack.c.l.b16 %v255
        %v404 = vunpack.c.l.b16 %v256
        %v405 = vunpack.c.l.b16 %v257
        %v406 = vunpack.c.l.b16 %v258
        %v407 = vunpack.c.l.b16 %v259
        %v408 = vunpack.c.l.b16 %v260
        %v409 = vunpack.c.l.b16 %v261
        %v410 = vunpack.c.l.b16 %v262
        %v411 = vunpack.c.l.b16 %v263
        %v412 = vunpack.c.l.b16 %v264
        %v413 = vunpack.c.l.b16 %v265
        %v414 = vunpack.c.l.b16 %v266
        %v415 = vunpack.c.l.b16 %v267
        %v416 = vunpack.c.l.b16 %v268
        %v417 = vunpack.c.l.b16 %v269
        %v418 = vunpack.c.l.b16 %v270
        %v419 = vunpack.c.l.b16 %v271
        %v420 = vunpack.c.l.b16 %v272
        %v421 = vunpack.c.l.b16 %v273
        %v422 = vunpack.c.l.b16 %v274
        %v423 = vunpack.c.l.b16 %v275
        %v424 = vunpack.c.l.b16 %v276
        %v425 = vunpack.c.l.b16 %v277
        %v426 = vunpack.c.l.b16 %v278
        %v427 = vunpack.c.l.b16 %v279
        %v428 = vunpack.c.l.b16 %v280
        %v429 = vunpack.c.l.b16 %v281
        %v430 = vunpack.c.l.b16 %v282
        %v431 = vunpack.c.l.b16 %v283
        %v432 = vunpack.c.l.b16 %v284
        %v433 = vunpack.c.l.b16 %v285
        %v434 = vunpack.c.l.b16 %v286
        %v435 = vunpack.c.l.b16 %v287
        %v436 = vunpack.c.l.b16 %v288
        %v437 = vunpack.c.l.b16 %v289
        %v438 = vunpack.c.l.b16 %v290
        %v439 = vunpack.c.l.b16 %v291
        %v440 = vunpack.c.l.b16 %v292
        %v441 = vunpack.c.l.b16 %v293
        %v442 = vunpack.c.l.b16 %v294
        %v443 = vunpack.c.l.b16 %v295
        %v444 = vunpack.c.l.b16 %v296
        %v445 = vunpack.c.l.b16 %v297
        %v446 = vpack.c.b16 %v375, %v374
        %v447 = vpack.c.b16 %v377, %v376
        %v448 = vpack.c.b16 %v379, %v378
        %v449 = vpack.c.b16 %v381, %v380
        %v450 = vpack.c.b16 %v383, %v382
        %v451 = vpack.c.b16 %v385, %v384
        %v452 = vpack.c.b16 %v387, %v386
        %v453 = vpack.c.b16 %v389, %v388
        %v454 = vpack.c.b16 %v391, %v390
        %v455 = vpack.c.b16 %v393, %v392
        %v456 = vpack.c.b16 %v395, %v394
        %v457 = vpack.c.b16 %v397, %v396
        %v458 = vpack.c.b16 %v399, %v398
        %v459 = vpack.c.b16 %v401, %v400
        %v460 = vpack.c.b16 %v403, %v402
        %v461 = vpack.c.b16 %v405, %v404
        %v462 = vpack.c.b16 %v407, %v406
        %v463 = vpack.c.b16 %v409, %v408
        %v464 = vpack.c.b16 %v411, %v410
        %v465 = vpack.c.b16 %v413, %v412
        %v466 = vpack.c.b16 %v415, %v414
        %v467 = vpack.c.b16 %v417, %v416
        %v468 = vpack.c.b16 %v419, %v418
        %v469 = vpack.c.b16 %v421, %v420
        %v470 = vpack.c.b16 %v423, %v422
        %v471 = vpack.c.b16 %v425, %v424
        %v472 = vpack.c.b16 %v427, %v426
        %v473 = vpack.c.b16 %v429, %v428
        %v474 = vpack.c.b16 %v431, %v430
        %v475 = vpack.c.b16 %v433, %v432
        %v476 = vpack.c.b16 %v435, %v434
        %v477 = vpack.c.b16 %v437, %v436
        %v478 = vpack.c.b16 %v439, %v438
        %v479 = vpack.c.b16 %v441, %v440
        %v480 = vpack.c.b16 %v443, %v442
        %v481 = vpack.c.b16 %v445, %v444
        %vm518 = vcmask 523264
        %v520 = vsel %vm518, %v225, 0
        %522 = vmatpush.bf16.msra.mxu0 %v453
        %523 = vmatpush.bf16.msra.mxu0 %v452
        %524 = vmatpush.bf16.msra.mxu0 %v451
        %525 = vmatpush.bf16.msra.mxu0 %v450
        %526 = vmatpush.bf16.msra.mxu0 %v449
        %527 = vmatpush.bf16.msra.mxu0 %v448
        %528 = vmatpush.bf16.msra.mxu0 %v447
        %529 = vmatpush.bf16.msra.mxu0 %v446
        %530 = vmatmul.bf16.gmra.mxu0 %v221
        %v531 = vpop.f32.mrf.mxu0
        %v532 = vadd.f32 %v300, %v531
        %v533 = vpop.f32.mrf.mxu0
        %v534 = vadd.f32 %v300, %v533
        %535 = vdwg.mxu0
        %536 = vmatpush.bf16.msra.mxu0 %v461
        %537 = vmatpush.bf16.msra.mxu0 %v460
        %538 = vmatpush.bf16.msra.mxu0 %v459
        %539 = vmatpush.bf16.msra.mxu0 %v458
        %540 = vmatpush.bf16.msra.mxu0 %v457
        %541 = vmatpush.bf16.msra.mxu0 %v456
        %542 = vmatpush.bf16.msra.mxu0 %v455
        %543 = vmatpush.bf16.msra.mxu0 %v454
        %544 = vmatmul.bf16.gmra.mxu0 %v222
        %v545 = vpop.f32.mrf.mxu0
        %v546 = vadd.f32 %v532, %v545
        %v547 = vpop.f32.mrf.mxu0
        %v548 = vadd.f32 %v534, %v547
        %549 = vdwg.mxu0
        %550 = vmatpush.bf16.msra.mxu0 %v469
        %551 = vmatpush.bf16.msra.mxu0 %v468
        %552 = vmatpush.bf16.msra.mxu0 %v467
        %553 = vmatpush.bf16.msra.mxu0 %v466
        %554 = vmatpush.bf16.msra.mxu0 %v465
        %555 = vmatpush.bf16.msra.mxu0 %v464
        %556 = vmatpush.bf16.msra.mxu0 %v463
        %557 = vmatpush.bf16.msra.mxu0 %v462
        %558 = vmatmul.bf16.gmra.mxu0 %v223
        %v559 = vpop.f32.mrf.mxu0
        %v560 = vadd.f32 %v546, %v559
        %v561 = vpop.f32.mrf.mxu0
        %v562 = vadd.f32 %v548, %v561
        %563 = vdwg.mxu0
        %564 = vmatpush.bf16.msra.mxu0 %v477
        %565 = vmatpush.bf16.msra.mxu0 %v476
        %566 = vmatpush.bf16.msra.mxu0 %v475
        %567 = vmatpush.bf16.msra.mxu0 %v474
        %568 = vmatpush.bf16.msra.mxu0 %v473
        %569 = vmatpush.bf16.msra.mxu0 %v472
        %570 = vmatpush.bf16.msra.mxu0 %v471
        %571 = vmatpush.bf16.msra.mxu0 %v470
        %572 = vmatmul.bf16.gmra.mxu0 %v224
        %v573 = vpop.f32.mrf.mxu0
        %v574 = vadd.f32 %v560, %v573
        %v575 = vpop.f32.mrf.mxu0
        %v576 = vadd.f32 %v562, %v575
        %577 = vdwg.mxu0
        %578 = vmatpush.bf16.msra.mxu0 0
        %579 = vmatpush.bf16.msra.mxu0 0
        %580 = vmatpush.bf16.msra.mxu0 0
        %581 = vmatpush.bf16.msra.mxu0 0
        %582 = vmatpush.bf16.msra.mxu0 %v481
        %583 = vmatpush.bf16.msra.mxu0 %v480
        %584 = vmatpush.bf16.msra.mxu0 %v479
        %585 = vmatpush.bf16.msra.mxu0 %v478
        %586 = vmatmul.bf16.gmra.mxu0 %v520
        %v587 = vpop.f32.mrf.mxu0
        %v588 = vadd.f32 %v574, %v587
        %v589 = vpop.f32.mrf.mxu0
        %v590 = vadd.f32 %v576, %v589
        %591 = vdwg.mxu0
        %v592 = vmax.f32 %v588, 0.0
        %v593 = vmax.f32 %v590, 0.0
        %v594 = vpack.c.bf16 %v592, %v592
        %v595 = vpack.c.bf16 %v593, %v593
        %596 = vst [vmem:[%s192] sm:$0xf] %v594
        %597 = vst [vmem:[%s192 + $0x4] sm:$0xf] %v595
        %s598 = smul.u32 2, %s15
        %p599 = scmp.lt.s32.totalorder %s598, 3
        %s600 = scalar_select %p599, %s598, 3
        %s601 = smul.addr %s600, 4
        %s602 = scalar_lea.vmem %s3, %s601
        // Predicated region
        $region37: #{_lambda_.14} parent=31 // pred_check
          %p603 = pneg %p101
        $region38: #{_lambda_.14} parent=31 // pred_check_branch
          %605 = sbr.rel (%p603) target = $region40
        $region39: #{_lambda_.14} parent=31 // pred_region
          %s606 = smul.u32 2, %s15
        $region40: #{_lambda_.14} parent=31 // pred_fallthru
          _
      $region32: #{_lambda_.14} parent=5 // pred_fallthru
        _
      %p607 = scmp.le.s32.totalorder 2, %s10
      // Predicated region
      $region41: #{_lambda_.14} parent=5 // pred_check
        %p608 = pneg %p607
      $region42: #{_lambda_.14} parent=5 // pred_check_branch
        %610 = sbr.rel (%p608) target = $region44
      $region43: #{_lambda_.14} parent=5 // pred_region
        %s611 = ssub.s32 %s10, 2
        // Predicated region
        $region45: #{_lambda_.14} parent=43 // pred_check
          %p612 = pneg %p107
        $region46: #{_lambda_.14} parent=43 // pred_check_branch
          %614 = sbr.rel (%p612) target = $region48
        $region47: #{_lambda_.14} parent=43 // pred_region
          %s615 = smul.u32 2, %s16
          %p616 = scmp.lt.s32.totalorder %s615, 3
          %s617 = scalar_select %p616, %s615, 3
          %s618 = smul.addr %s617, 4
          %s619 = scalar_lea.vmem %s3, %s618
        $region48: #{_lambda_.14} parent=43 // pred_fallthru
          _
      $region44: #{_lambda_.14} parent=5 // pred_fallthru
        _
    $region6: #{_lambda_.14} parent=1 // loop_footer
      %s14 = sadd.s32 1, %s10
    $region7: #{_lambda_.14} parent=1 // loop_footer_branch
      %9 = sbr.rel target = $region3
    $region8: #{_lambda_.14} parent=1 // loop_exit
      _
    %620 = vsyncpa [#allocation3], 1
    %s621 = scalar_lea.sflag [#allocation3], 1
    %622 = vsyncpa %s621, 1

// kernel: _lambda_.15
$region0: #{_lambda_.15}
  #allocation0 [shape = 'u32[]', space=smem, size = 0x4, offset = 0x4, fixed_abs, tag = 'smem constant byte address 0x4 - core index']
  #allocation1 [shape = 'u32[72,128]{1,0:T(1,128)}', space=vmem, size = 0x9000, scoped, tag = 'internal scratch']
  %s0 = inlined_call_operand.vmem [shape: bf16[128,144], index: 0, kind: input, shape index: {}]
  %s1 = inlined_call_operand.vmem [shape: bf16[144,128], index: 1, kind: input, shape index: {}]
  %s2 = inlined_call_operand.vmem [shape: f32[1,128], index: 2, kind: input, shape index: {}]
  %s3 = inlined_call_operand.vmem [shape: f32[128,1], index: 3, kind: input, shape index: {}]
  %s4 = inlined_call_operand.vmem [shape: f32[1,128], index: 4, kind: input, shape index: {}]
  %s5 = inlined_call_operand.vmem [shape: bf16[128,128], index: 5, kind: output, shape index: {}]
  %s6 = sld [smem:[#allocation0]]
  $region53: #{_lambda_.15} parent=0
    _
  %s8 = ssub.s32 1, %s6
  %s9 = scalar_select 0, %s8, %s6
  loop: start=0, step=1, limit=4
  $region2: #{_lambda_.15} parent=0 // loop_pre_header
    _
  $region3: #{_lambda_.15} parent=0 // loop_header
    %s11 = sphi 0, %s15
    %p12 = scmp.ge.s32.totalorder %s11, 4
    %s21 = sphi 0, %s23
    %s24 = sphi 0, %s21
    %s25 = sphi 0, %s24
    %s41 = sphi 0, %s25
    %s45 = sphi 0, %s45
    %s47 = sphi 0, %s45
    %s48 = sphi 0, %s47
    %s62 = sphi 0, %s48
    %s66 = sphi 0, %s66
    %s68 = sphi 0, %s66
    %s69 = sphi 0, %s68
    %s83 = sphi 0, %s69
    %s89 = sphi 0, %s91
    %s92 = sphi 0, %s89
    %s93 = sphi 0, %s92
    %s109 = sphi 0, %s93
    %s113 = sphi 0, %s113
    %s115 = sphi 0, %s113
    %s116 = sphi 0, %s115
    %s130 = sphi 0, %s116
    %s136 = sphi 0, %s138
    %s139 = sphi 0, %s136
    %s140 = sphi 0, %s139
    %s156 = sphi 0, %s140
  $region4: #{_lambda_.15} parent=0 // loop_header_branch
    %14 = sbr.rel (%p12) target = $region8
  $region5: #{_lambda_.15} parent=0 // loop_body
    %s16 = ssub.s32 %s11, 1
    %s17 = ssub.s32 %s11, 2
    %s18 = sadd.s32 %s11, 1
    %s19 = ssub.s32 %s11, %s18
    %p20 = scmp.eq.s32.totalorder %s19, 0
    %s22 = sadd.s32 %s21, 1
    %s23 = scalar_select %p20, %s21, %s22
    %p26 = pneg %p20
    %p27 = scmp.eq.s32.totalorder %s11, 1
    %p28 = por %p26, %p27
    %p29 = scmp.ne.s32.totalorder %s21, %s24
    %p30 = scmp.eq.s32.totalorder %s11, 0
    %p31 = por %p29, %p30
    %p32 = scmp.ne.s32.totalorder %s21, %s24
    %p33 = scmp.eq.s32.totalorder %s16, 1
    %p34 = por %p32, %p33
    %p35 = scmp.ne.s32.totalorder %s24, %s25
    %p36 = scmp.eq.s32.totalorder %s16, 0
    %p37 = por %p35, %p36
    %p38 = scmp.ne.s32.totalorder %s24, %s25
    %p39 = scmp.eq.s32.totalorder %s17, 1
    %p40 = por %p38, %p39
    %p42 = scmp.ne.s32.totalorder %s25, %s41
    %p43 = scmp.eq.s32.totalorder %s17, 0
    %p44 = por %p42, %p43
    %s46 = sadd.s32 %s45, 1
    %p49 = scmp.eq.s32.totalorder %s11, 1
    %p50 = scmp.ne.s32.totalorder %s45, %s47
    %p51 = scmp.eq.s32.totalorder %s11, 0
    %p52 = por %p50, %p51
    %p53 = scmp.ne.s32.totalorder %s45, %s47
    %p54 = scmp.eq.s32.totalorder %s16, 1
    %p55 = por %p53, %p54
    %p56 = scmp.ne.s32.totalorder %s47, %s48
    %p57 = scmp.eq.s32.totalorder %s16, 0
    %p58 = por %p56, %p57
    %p59 = scmp.ne.s32.totalorder %s47, %s48
    %p60 = scmp.eq.s32.totalorder %s17, 1
    %p61 = por %p59, %p60
    %p63 = scmp.ne.s32.totalorder %s48, %s62
    %p64 = scmp.eq.s32.totalorder %s17, 0
    %p65 = por %p63, %p64
    %s67 = sadd.s32 %s66, 1
    %p70 = scmp.eq.s32.totalorder %s11, 1
    %p71 = scmp.ne.s32.totalorder %s66, %s68
    %p72 = scmp.eq.s32.totalorder %s11, 0
    %p73 = por %p71, %p72
    %p74 = scmp.ne.s32.totalorder %s66, %s68
    %p75 = scmp.eq.s32.totalorder %s16, 1
    %p76 = por %p74, %p75
    %p77 = scmp.ne.s32.totalorder %s68, %s69
    %p78 = scmp.eq.s32.totalorder %s16, 0
    %p79 = por %p77, %p78
    %p80 = scmp.ne.s32.totalorder %s68, %s69
    %p81 = scmp.eq.s32.totalorder %s17, 1
    %p82 = por %p80, %p81
    %p84 = scmp.ne.s32.totalorder %s69, %s83
    %p85 = scmp.eq.s32.totalorder %s17, 0
    %p86 = por %p84, %p85
    %s87 = ssub.s32 %s11, %s18
    %p88 = scmp.eq.s32.totalorder %s87, 0
    %s90 = sadd.s32 %s89, 1
    %s91 = scalar_select %p88, %s89, %s90
    %p94 = pneg %p88
    %p95 = scmp.eq.s32.totalorder %s11, 1
    %p96 = por %p94, %p95
    %p97 = scmp.ne.s32.totalorder %s89, %s92
    %p98 = scmp.eq.s32.totalorder %s11, 0
    %p99 = por %p97, %p98
    %p100 = scmp.ne.s32.totalorder %s89, %s92
    %p101 = scmp.eq.s32.totalorder %s16, 1
    %p102 = por %p100, %p101
    %p103 = scmp.ne.s32.totalorder %s92, %s93
    %p104 = scmp.eq.s32.totalorder %s16, 0
    %p105 = por %p103, %p104
    %p106 = scmp.ne.s32.totalorder %s92, %s93
    %p107 = scmp.eq.s32.totalorder %s17, 1
    %p108 = por %p106, %p107
    %p110 = scmp.ne.s32.totalorder %s93, %s109
    %p111 = scmp.eq.s32.totalorder %s17, 0
    %p112 = por %p110, %p111
    %s114 = sadd.s32 %s113, 1
    %p117 = scmp.eq.s32.totalorder %s11, 1
    %p118 = scmp.ne.s32.totalorder %s113, %s115
    %p119 = scmp.eq.s32.totalorder %s11, 0
    %p120 = por %p118, %p119
    %p121 = scmp.ne.s32.totalorder %s113, %s115
    %p122 = scmp.eq.s32.totalorder %s16, 1
    %p123 = por %p121, %p122
    %p124 = scmp.ne.s32.totalorder %s115, %s116
    %p125 = scmp.eq.s32.totalorder %s16, 0
    %p126 = por %p124, %p125
    %p127 = scmp.ne.s32.totalorder %s115, %s116
    %p128 = scmp.eq.s32.totalorder %s17, 1
    %p129 = por %p127, %p128
    %p131 = scmp.ne.s32.totalorder %s116, %s130
    %p132 = scmp.eq.s32.totalorder %s17, 0
    %p133 = por %p131, %p132
    %s134 = ssub.s32 %s11, %s18
    %p135 = scmp.eq.s32.totalorder %s134, 0
    %s137 = sadd.s32 %s136, 1
    %s138 = scalar_select %p135, %s136, %s137
    %p141 = pneg %p135
    %p142 = scmp.eq.s32.totalorder %s11, 1
    %p143 = por %p141, %p142
    %p144 = scmp.ne.s32.totalorder %s136, %s139
    %p145 = scmp.eq.s32.totalorder %s11, 0
    %p146 = por %p144, %p145
    %p147 = scmp.ne.s32.totalorder %s136, %s139
    %p148 = scmp.eq.s32.totalorder %s16, 1
    %p149 = por %p147, %p148
    %p150 = scmp.ne.s32.totalorder %s139, %s140
    %p151 = scmp.eq.s32.totalorder %s16, 0
    %p152 = por %p150, %p151
    %p153 = scmp.ne.s32.totalorder %s139, %s140
    %p154 = scmp.eq.s32.totalorder %s17, 1
    %p155 = por %p153, %p154
    %p157 = scmp.ne.s32.totalorder %s140, %s156
    %p158 = scmp.eq.s32.totalorder %s17, 0
    %p159 = por %p157, %p158
    %p160 = scmp.le.s32.totalorder 1, %s11
    %p161 = scmp.lt.s32.totalorder %s11, 3
    %p162 = pnand %p160, %p161
    %p163 = pneg %p162
    // Predicated region
    $region9: #{_lambda_.15} parent=5 // pred_check
      _
    $region10: #{_lambda_.15} parent=5 // pred_check_branch
      %165 = sbr.rel (%p162) target = $region12
    $region11: #{_lambda_.15} parent=5 // pred_region
      %s166 = ssub.s32 %s11, 1
      // Predicated region
      $region13: #{_lambda_.15} parent=11 // pred_check
        %p167 = pneg %p58
      $region14: #{_lambda_.15} parent=11 // pred_check_branch
        %169 = sbr.rel (%p167) target = $region16
      $region15: #{_lambda_.15} parent=11 // pred_region
        _
      $region16: #{_lambda_.15} parent=11 // pred_fallthru
        _
      // Predicated region
      $region17: #{_lambda_.15} parent=11 // pred_check
        %p170 = pneg %p79
      $region18: #{_lambda_.15} parent=11 // pred_check_branch
        %172 = sbr.rel (%p170) target = $region20
      $region19: #{_lambda_.15} parent=11 // pred_region
        _
      $region20: #{_lambda_.15} parent=11 // pred_fallthru
        _
      // Predicated region
      $region21: #{_lambda_.15} parent=11 // pred_check
        %p173 = pneg %p126
      $region22: #{_lambda_.15} parent=11 // pred_check_branch
        %175 = sbr.rel (%p173) target = $region24
      $region23: #{_lambda_.15} parent=11 // pred_region
        _
      $region24: #{_lambda_.15} parent=11 // pred_fallthru
        _
    $region12: #{_lambda_.15} parent=5 // pred_fallthru
      _
    %p176 = scmp.lt.s32.totalorder %s11, 2
    // Predicated region
    $region25: #{_lambda_.15} parent=5 // pred_check
      %p177 = pneg %p176
    $region26: #{_lambda_.15} parent=5 // pred_check_branch
      %179 = sbr.rel (%p177) target = $region28
    $region27: #{_lambda_.15} parent=5 // pred_region
      // Predicated region
      $region29: #{_lambda_.15} parent=27 // pred_check
        %p180 = pneg %p31
      $region30: #{_lambda_.15} parent=27 // pred_check_branch
        %182 = sbr.rel (%p180) target = $region32
      $region31: #{_lambda_.15} parent=27 // pred_region
        %s183 = smul.u32 8, %s11
        %p184 = scmp.lt.s32.totalorder %s183, 15
        %s185 = scalar_select %p184, %s183, 15
        %s186 = smul.addr %s185, 2
        %s187 = smul.addr %s186, 4
        %s188 = scalar_lea.vmem %s0, %s187
        %s189 = smul.u32 8, %s11
      $region32: #{_lambda_.15} parent=27 // pred_fallthru
        _
      // Predicated region
      $region33: #{_lambda_.15} parent=27 // pred_check
        %p190 = pneg %p99
      $region34: #{_lambda_.15} parent=27 // pred_check_branch
        %192 = sbr.rel (%p190) target = $region36
      $region35: #{_lambda_.15} parent=27 // pred_region
        %s193 = smul.u32 8, %s11
        %p194 = scmp.lt.s32.totalorder %s193, 15
        %s195 = scalar_select %p194, %s193, 15
        %s196 = smul.addr %s195, 8
        %s197 = scalar_lea.vmem %s3, %s196
        %s198 = smul.u32 8, %s11
      $region36: #{_lambda_.15} parent=27 // pred_fallthru
        _
    $region28: #{_lambda_.15} parent=5 // pred_fallthru
      _
    %p199 = scmp.le.s32.totalorder 1, %s11
    %p200 = scmp.lt.s32.totalorder %s11, 3
    %p201 = pnand %p199, %p200
    %p202 = pneg %p201
    // Predicated region
    $region37: #{_lambda_.15} parent=5 // pred_check
      _
    $region38: #{_lambda_.15} parent=5 // pred_check_branch
      %204 = sbr.rel (%p201) target = $region40
    $region39: #{_lambda_.15} parent=5 // pred_region
      %s205 = ssub.s32 %s11, 1
      %s206 = smul.u32 8, %s16
      %p207 = scmp.lt.s32.totalorder %s206, 15
      %s208 = scalar_select %p207, %s206, 15
      %s209 = smul.addr %s208, 2
      %s210 = smul.addr %s209, 4
      %s211 = scalar_lea.vmem %s0, %s210
      %p212 = pneg %p37
      %p213 = pneg %p34
      %p214 = pneg %p58
      %p215 = pneg %p55
      %p216 = pneg %p79
      %p217 = pneg %p76
      %s218 = smul.u32 8, %s16
      %p219 = scmp.lt.s32.totalorder %s218, 15
      %s220 = scalar_select %p219, %s218, 15
      %s221 = smul.addr %s220, 8
      %s222 = scalar_lea.vmem %s3, %s221
      %p223 = pneg %p105
      %p224 = pneg %p102
      %p225 = pneg %p126
      %p226 = pneg %p123
      %p227 = pneg %p152
      %p228 = pneg %p149
      %s229 = smul.u32 8, %s16
      %p230 = scmp.lt.s32.totalorder %s229, 15
      %s231 = scalar_select %p230, %s229, 15
      %s232 = smul.addr %s231, 4
      %s233 = scalar_lea.vmem %s5, %s232
      %s234 = smul.u32 8, %s16
      %p235 = scmp.lt.s32.totalorder %s234, 15
      %s236 = scalar_select %p235, %s234, 15
      %s237 = smul.addr %s236, 2
      %s238 = smul.addr %s237, 4
      %s239 = scalar_lea.vmem %s0, %s238
      %s240 = smul.u32 8, %s16
      %s241 = smul.u32 8, %s16
      %p242 = scmp.lt.s32.totalorder %s241, 15
      %s243 = scalar_select %p242, %s241, 15
      %s244 = smul.addr %s243, 8
      %s245 = scalar_lea.vmem %s3, %s244
      %s246 = smul.u32 8, %s16
      %s247 = smul.u32 8, %s16
      %p248 = scmp.lt.s32.totalorder %s247, 15
      %s249 = scalar_select %p248, %s247, 15
      %s250 = smul.addr %s249, 4
      %s251 = scalar_lea.vmem %s5, %s250
      %s252 = smul.u32 8, %s16
      %v254 = vld [vmem:[%s239] sm:$0xff]
      %v255 = vld [vmem:[%s239 + $0x8] sm:$0xff]
      %v256 = vld [vmem:[%s239 + $0x10] sm:$0xff]
      %v257 = vld [vmem:[%s239 + $0x18] sm:$0xff]
      %v258 = vld [vmem:[%s239 + $0x20] sm:$0xff]
      %v259 = vld [vmem:[%s239 + $0x28] sm:$0xff]
      %v260 = vld [vmem:[%s239 + $0x30] sm:$0xff]
      %v261 = vld [vmem:[%s239 + $0x38] sm:$0xff]
      %v262 = vld [vmem:[%s1] sm:$0xf]
      %v263 = vld [vmem:[%s1 + $0x4] sm:$0xf]
      %v264 = vld [vmem:[%s1 + $0x8] sm:$0xf]
      %v265 = vld [vmem:[%s1 + $0xc] sm:$0xf]
      %v266 = vld [vmem:[%s1 + $0x10] sm:$0xf]
      %v267 = vld [vmem:[%s1 + $0x14] sm:$0xf]
      %v268 = vld [vmem:[%s1 + $0x18] sm:$0xf]
      %v269 = vld [vmem:[%s1 + $0x1c] sm:$0xf]
      %v270 = vld [vmem:[%s1 + $0x20] sm:$0xf]
      %v271 = vld [vmem:[%s1 + $0x24] sm:$0xf]
      %v272 = vld [vmem:[%s1 + $0x28] sm:$0xf]
      %v273 = vld [vmem:[%s1 + $0x2c] sm:$0xf]
      %v274 = vld [vmem:[%s1 + $0x30] sm:$0xf]
      %v275 = vld [vmem:[%s1 + $0x34] sm:$0xf]
      %v276 = vld [vmem:[%s1 + $0x38] sm:$0xf]
      %v277 = vld [vmem:[%s1 + $0x3c] sm:$0xf]
      %v278 = vld [vmem:[%s1 + $0x40] sm:$0xf]
      %v279 = vld [vmem:[%s1 + $0x44] sm:$0xf]
      %v280 = vld [vmem:[%s2] sm:$0x1]
      %v282 = vperm.slane %v280, 0
      %v292 = vunpack.c.l.b16 %v254
      %v293 = vunpack.c.h.b16 %v254
      %v294 = vunpack.c.l.b16 %v255
      %v295 = vunpack.c.h.b16 %v255
      %v296 = vunpack.c.l.b16 %v256
      %v297 = vunpack.c.h.b16 %v256
      %v298 = vunpack.c.l.b16 %v257
      %v299 = vunpack.c.h.b16 %v257
      %v300 = vunpack.c.l.b16 %v258
      %v301 = vunpack.c.h.b16 %v258
      %v302 = vunpack.c.l.b16 %v259
      %v303 = vunpack.c.h.b16 %v259
      %v304 = vunpack.c.l.b16 %v260
      %v305 = vunpack.c.h.b16 %v260
      %v306 = vunpack.c.l.b16 %v261
      %v307 = vunpack.c.h.b16 %v261
      %v308 = vpack.c.b16 %v294, %v292
      %v309 = vpack.c.b16 %v295, %v293
      %v310 = vpack.c.b16 %v298, %v296
      %v311 = vpack.c.b16 %v299, %v297
      %v312 = vpack.c.b16 %v302, %v300
      %v313 = vpack.c.b16 %v303, %v301
      %v314 = vpack.c.b16 %v306, %v304
      %v315 = vpack.c.b16 %v307, %v305
      %v338 = vunpack.c.l.b16 %v262
      %v339 = vunpack.c.l.b16 %v263
      %v340 = vunpack.c.l.b16 %v264
      %v341 = vunpack.c.l.b16 %v265
      %v342 = vunpack.c.l.b16 %v266
      %v343 = vunpack.c.l.b16 %v267
      %v344 = vunpack.c.l.b16 %v268
      %v345 = vunpack.c.l.b16 %v269
      %v346 = vunpack.c.l.b16 %v270
      %v347 = vunpack.c.l.b16 %v271
      %v348 = vunpack.c.l.b16 %v272
      %v349 = vunpack.c.l.b16 %v273
      %v350 = vunpack.c.l.b16 %v274
      %v351 = vunpack.c.l.b16 %v275
      %v352 = vunpack.c.l.b16 %v276
      %v353 = vunpack.c.l.b16 %v277
      %v354 = vunpack.c.l.b16 %v278
      %v355 = vunpack.c.l.b16 %v279
      %v356 = vpack.c.b16 %v339, %v338
      %v357 = vpack.c.b16 %v341, %v340
      %v358 = vpack.c.b16 %v343, %v342
      %v359 = vpack.c.b16 %v345, %v344
      %v360 = vpack.c.b16 %v347, %v346
      %v361 = vpack.c.b16 %v349, %v348
      %v362 = vpack.c.b16 %v351, %v350
      %v363 = vpack.c.b16 %v353, %v352
      %v364 = vpack.c.b16 %v355, %v354
      %vm374 = vcmask 130048
      %v376 = vsel %vm374, %v309, 0
      %v379 = vsel %vm374, %v311, 0
      %v382 = vsel %vm374, %v313, 0
      %v385 = vsel %vm374, %v315, 0
      %387 = vmatpush.bf16.msra.mxu0 %v363
      %388 = vmatpush.bf16.msra.mxu0 %v362
      %389 = vmatpush.bf16.msra.mxu0 %v361
      %390 = vmatpush.bf16.msra.mxu0 %v360
      %391 = vmatpush.bf16.msra.mxu0 %v359
      %392 = vmatpush.bf16.msra.mxu0 %v358
      %393 = vmatpush.bf16.msra.mxu0 %v357
      %394 = vmatpush.bf16.msra.mxu0 %v356
      %395 = vmatmul.bf16.gmra.mxu0 %v308
      %v396 = vpop.f32.mrf.mxu0
      %v397 = vadd.f32 %v282, %v396
      %v398 = vpop.f32.mrf.mxu0
      %v399 = vadd.f32 %v282, %v398
      %400 = vmatmul.bf16.gmra.mxu0 %v310
      %v401 = vpop.f32.mrf.mxu0
      %v402 = vadd.f32 %v282, %v401
      %v403 = vpop.f32.mrf.mxu0
      %v404 = vadd.f32 %v282, %v403
      %405 = vmatmul.bf16.gmra.mxu0 %v312
      %v406 = vpop.f32.mrf.mxu0
      %v407 = vadd.f32 %v282, %v406
      %v408 = vpop.f32.mrf.mxu0
      %v409 = vadd.f32 %v282, %v408
      %410 = vmatmul.bf16.gmra.mxu0 %v314
      %v411 = vpop.f32.mrf.mxu0
      %v412 = vadd.f32 %v282, %v411
      %v413 = vpop.f32.mrf.mxu0
      %v414 = vadd.f32 %v282, %v413
      %415 = vdwg.mxu0
      %416 = vmatpush.bf16.msra.mxu0 0
      %417 = vmatpush.bf16.msra.mxu0 0
      %418 = vmatpush.bf16.msra.mxu0 0
      %419 = vmatpush.bf16.msra.mxu0 0
      %420 = vmatpush.bf16.msra.mxu0 0
      %421 = vmatpush.bf16.msra.mxu0 0
      %422 = vmatpush.bf16.msra.mxu0 0
      %423 = vmatpush.bf16.msra.mxu0 %v364
      %424 = vmatmul.bf16.gmra.mxu0 %v376
      %v425 = vpop.f32.mrf.mxu0
      %v426 = vadd.f32 %v397, %v425
      %v427 = vpop.f32.mrf.mxu0
      %v428 = vadd.f32 %v399, %v427
      %429 = vmatmul.bf16.gmra.mxu0 %v379
      %v430 = vpop.f32.mrf.mxu0
      %v431 = vadd.f32 %v402, %v430
      %v432 = vpop.f32.mrf.mxu0
      %v433 = vadd.f32 %v404, %v432
      %434 = vmatmul.bf16.gmra.mxu0 %v382
      %v435 = vpop.f32.mrf.mxu0
      %v436 = vadd.f32 %v407, %v435
      %v437 = vpop.f32.mrf.mxu0
      %v438 = vadd.f32 %v409, %v437
      %439 = vmatmul.bf16.gmra.mxu0 %v385
      %v440 = vpop.f32.mrf.mxu0
      %v441 = vadd.f32 %v412, %v440
      %v442 = vpop.f32.mrf.mxu0
      %v443 = vadd.f32 %v414, %v442
      %444 = vdwg.mxu0
      %v445 = vld [vmem:[%s245] sm:$0xff]
      %v446 = vld [vmem:[%s245 + $0x8] sm:$0xff]
      %v447 = vld [vmem:[%s245 + $0x10] sm:$0xff]
      %v448 = vld [vmem:[%s245 + $0x18] sm:$0xff]
      %v449 = vld [vmem:[%s245 + $0x20] sm:$0xff]
      %v450 = vld [vmem:[%s245 + $0x28] sm:$0xff]
      %v451 = vld [vmem:[%s245 + $0x30] sm:$0xff]
      %v452 = vld [vmem:[%s245 + $0x38] sm:$0xff]
      %v453 = vld [vmem:[%s4] sm:$0x1]
      %455 = vset.pattern.permute.xlu0 0
      %456 = vperm.xlu0 %455, %v445
      %v457 = vpop.permute.xlu0 %456
      %460 = vset.pattern.permute.xlu0 0
      %461 = vperm.xlu0 %460, %v446
      %v462 = vpop.permute.xlu0 %461
      %465 = vset.pattern.permute.xlu0 0
      %466 = vperm.xlu0 %465, %v447
      %v467 = vpop.permute.xlu0 %466
      %470 = vset.pattern.permute.xlu0 0
      %471 = vperm.xlu0 %470, %v448
      %v472 = vpop.permute.xlu0 %471
      %475 = vset.pattern.permute.xlu0 0
      %476 = vperm.xlu0 %475, %v449
      %v477 = vpop.permute.xlu0 %476
      %480 = vset.pattern.permute.xlu0 0
      %481 = vperm.xlu0 %480, %v450
      %v482 = vpop.permute.xlu0 %481
      %485 = vset.pattern.permute.xlu0 0
      %486 = vperm.xlu0 %485, %v451
      %v487 = vpop.permute.xlu0 %486
      %490 = vset.pattern.permute.xlu0 0
      %491 = vperm.xlu0 %490, %v452
      %v492 = vpop.permute.xlu0 %491
      %v495 = vperm.slane %v453, 0
      %v497 = vmul.f32 %v457, %v495
      %v498 = vmul.f32 %v462, %v495
      %v499 = vmul.f32 %v467, %v495
      %v500 = vmul.f32 %v472, %v495
      %v501 = vmul.f32 %v477, %v495
      %v502 = vmul.f32 %v482, %v495
      %v503 = vmul.f32 %v487, %v495
      %v504 = vmul.f32 %v492, %v495
      %v505 = vadd.f32 %v426, %v497
      %v506 = vadd.f32 %v428, %v498
      %v507 = vadd.f32 %v431, %v499
      %v508 = vadd.f32 %v433, %v500
      %v509 = vadd.f32 %v436, %v501
      %v510 = vadd.f32 %v438, %v502
      %v511 = vadd.f32 %v441, %v503
      %v512 = vadd.f32 %v443, %v504
      %v513 = vpack.c.bf16 %v505, %v505
      %v514 = vpack.c.bf16 %v506, %v506
      %v515 = vpack.c.bf16 %v507, %v507
      %v516 = vpack.c.bf16 %v508, %v508
      %v517 = vpack.c.bf16 %v509, %v509
      %v518 = vpack.c.bf16 %v510, %v510
      %v519 = vpack.c.bf16 %v511, %v511
      %v520 = vpack.c.bf16 %v512, %v512
      %521 = vst [vmem:[%s251] sm:$0xf] %v513
      %522 = vst [vmem:[%s251 + $0x4] sm:$0xf] %v514
      %523 = vst [vmem:[%s251 + $0x8] sm:$0xf] %v515
      %524 = vst [vmem:[%s251 + $0xc] sm:$0xf] %v516
      %525 = vst [vmem:[%s251 + $0x10] sm:$0xf] %v517
      %526 = vst [vmem:[%s251 + $0x14] sm:$0xf] %v518
      %527 = vst [vmem:[%s251 + $0x18] sm:$0xf] %v519
      %528 = vst [vmem:[%s251 + $0x1c] sm:$0xf] %v520
      %s529 = smul.u32 8, %s16
      %p530 = scmp.lt.s32.totalorder %s529, 15
      %s531 = scalar_select %p530, %s529, 15
      %s532 = smul.addr %s531, 4
      %s533 = scalar_lea.vmem %s5, %s532
      // Predicated region
      $region41: #{_lambda_.15} parent=39 // pred_check
        %p534 = pneg %p149
      $region42: #{_lambda_.15} parent=39 // pred_check_branch
        %536 = sbr.rel (%p534) target = $region44
      $region43: #{_lambda_.15} parent=39 // pred_region
        %s537 = smul.u32 8, %s16
      $region44: #{_lambda_.15} parent=39 // pred_fallthru
        _
    $region40: #{_lambda_.15} parent=5 // pred_fallthru
      _
    %p538 = scmp.le.s32.totalorder 2, %s11
    // Predicated region
    $region45: #{_lambda_.15} parent=5 // pred_check
      %p539 = pneg %p538
    $region46: #{_lambda_.15} parent=5 // pred_check_branch
      %541 = sbr.rel (%p539) target = $region48
    $region47: #{_lambda_.15} parent=5 // pred_region
      %s542 = ssub.s32 %s11, 2
      // Predicated region
      $region49: #{_lambda_.15} parent=47 // pred_check
        %p543 = pneg %p155
      $region50: #{_lambda_.15} parent=47 // pred_check_branch
        %545 = sbr.rel (%p543) target = $region52
      $region51: #{_lambda_.15} parent=47 // pred_region
        %s546 = smul.u32 8, %s17
        %p547 = scmp.lt.s32.totalorder %s546, 15
        %s548 = scalar_select %p547, %s546, 15
        %s549 = smul.addr %s548, 4
        %s550 = scalar_lea.vmem %s5, %s549
      $region52: #{_lambda_.15} parent=47 // pred_fallthru
        _
    $region48: #{_lambda_.15} parent=5 // pred_fallthru
      _
  $region6: #{_lambda_.15} parent=0 // loop_footer
    %s15 = sadd.s32 1, %s11
  $region7: #{_lambda_.15} parent=0 // loop_footer_branch
    %10 = sbr.rel target = $region3
  $region8: #{_lambda_.15} parent=0 // loop_exit
    _

// kernel: _lambda_.16
$region0: #{_lambda_.16}
  #allocation0 [shape = 'u32[]', space=smem, size = 0x4, offset = 0x4, fixed_abs, tag = 'smem constant byte address 0x4 - core index']
  #allocation1 [shape = 'u32[72,128]{1,0:T(1,128)}', space=vmem, size = 0x9000, scoped, tag = 'internal scratch']
  %s0 = inlined_call_operand.vmem [shape: bf16[128,288], index: 0, kind: input, shape index: {}]
  %s1 = inlined_call_operand.vmem [shape: bf16[288,128], index: 1, kind: input, shape index: {}]
  %s2 = inlined_call_operand.vmem [shape: f32[1,128], index: 2, kind: input, shape index: {}]
  %s3 = inlined_call_operand.vmem [shape: bf16[128,128], index: 3, kind: output, shape index: {}]
  %s4 = sld [smem:[#allocation0]]
  $region45: #{_lambda_.16} parent=0
    _
  %s6 = ssub.s32 1, %s4
  %s7 = scalar_select 0, %s6, %s4
  loop: start=0, step=1, limit=4
  $region2: #{_lambda_.16} parent=0 // loop_pre_header
    _
  $region3: #{_lambda_.16} parent=0 // loop_header
    %s9 = sphi 0, %s13
    %p10 = scmp.ge.s32.totalorder %s9, 4
    %s19 = sphi 0, %s21
    %s22 = sphi 0, %s19
    %s23 = sphi 0, %s22
    %s39 = sphi 0, %s23
    %s43 = sphi 0, %s43
    %s45 = sphi 0, %s43
    %s46 = sphi 0, %s45
    %s60 = sphi 0, %s46
    %s64 = sphi 0, %s64
    %s66 = sphi 0, %s64
    %s67 = sphi 0, %s66
    %s81 = sphi 0, %s67
    %s87 = sphi 0, %s89
    %s90 = sphi 0, %s87
    %s91 = sphi 0, %s90
    %s107 = sphi 0, %s91
  $region4: #{_lambda_.16} parent=0 // loop_header_branch
    %12 = sbr.rel (%p10) target = $region8
  $region5: #{_lambda_.16} parent=0 // loop_body
    %s14 = ssub.s32 %s9, 1
    %s15 = ssub.s32 %s9, 2
    %s16 = sadd.s32 %s9, 1
    %s17 = ssub.s32 %s9, %s16
    %p18 = scmp.eq.s32.totalorder %s17, 0
    %s20 = sadd.s32 %s19, 1
    %s21 = scalar_select %p18, %s19, %s20
    %p24 = pneg %p18
    %p25 = scmp.eq.s32.totalorder %s9, 1
    %p26 = por %p24, %p25
    %p27 = scmp.ne.s32.totalorder %s19, %s22
    %p28 = scmp.eq.s32.totalorder %s9, 0
    %p29 = por %p27, %p28
    %p30 = scmp.ne.s32.totalorder %s19, %s22
    %p31 = scmp.eq.s32.totalorder %s14, 1
    %p32 = por %p30, %p31
    %p33 = scmp.ne.s32.totalorder %s22, %s23
    %p34 = scmp.eq.s32.totalorder %s14, 0
    %p35 = por %p33, %p34
    %p36 = scmp.ne.s32.totalorder %s22, %s23
    %p37 = scmp.eq.s32.totalorder %s15, 1
    %p38 = por %p36, %p37
    %p40 = scmp.ne.s32.totalorder %s23, %s39
    %p41 = scmp.eq.s32.totalorder %s15, 0
    %p42 = por %p40, %p41
    %s44 = sadd.s32 %s43, 1
    %p47 = scmp.eq.s32.totalorder %s9, 1
    %p48 = scmp.ne.s32.totalorder %s43, %s45
    %p49 = scmp.eq.s32.totalorder %s9, 0
    %p50 = por %p48, %p49
    %p51 = scmp.ne.s32.totalorder %s43, %s45
    %p52 = scmp.eq.s32.totalorder %s14, 1
    %p53 = por %p51, %p52
    %p54 = scmp.ne.s32.totalorder %s45, %s46
    %p55 = scmp.eq.s32.totalorder %s14, 0
    %p56 = por %p54, %p55
    %p57 = scmp.ne.s32.totalorder %s45, %s46
    %p58 = scmp.eq.s32.totalorder %s15, 1
    %p59 = por %p57, %p58
    %p61 = scmp.ne.s32.totalorder %s46, %s60
    %p62 = scmp.eq.s32.totalorder %s15, 0
    %p63 = por %p61, %p62
    %s65 = sadd.s32 %s64, 1
    %p68 = scmp.eq.s32.totalorder %s9, 1
    %p69 = scmp.ne.s32.totalorder %s64, %s66
    %p70 = scmp.eq.s32.totalorder %s9, 0
    %p71 = por %p69, %p70
    %p72 = scmp.ne.s32.totalorder %s64, %s66
    %p73 = scmp.eq.s32.totalorder %s14, 1
    %p74 = por %p72, %p73
    %p75 = scmp.ne.s32.totalorder %s66, %s67
    %p76 = scmp.eq.s32.totalorder %s14, 0
    %p77 = por %p75, %p76
    %p78 = scmp.ne.s32.totalorder %s66, %s67
    %p79 = scmp.eq.s32.totalorder %s15, 1
    %p80 = por %p78, %p79
    %p82 = scmp.ne.s32.totalorder %s67, %s81
    %p83 = scmp.eq.s32.totalorder %s15, 0
    %p84 = por %p82, %p83
    %s85 = ssub.s32 %s9, %s16
    %p86 = scmp.eq.s32.totalorder %s85, 0
    %s88 = sadd.s32 %s87, 1
    %s89 = scalar_select %p86, %s87, %s88
    %p92 = pneg %p86
    %p93 = scmp.eq.s32.totalorder %s9, 1
    %p94 = por %p92, %p93
    %p95 = scmp.ne.s32.totalorder %s87, %s90
    %p96 = scmp.eq.s32.totalorder %s9, 0
    %p97 = por %p95, %p96
    %p98 = scmp.ne.s32.totalorder %s87, %s90
    %p99 = scmp.eq.s32.totalorder %s14, 1
    %p100 = por %p98, %p99
    %p101 = scmp.ne.s32.totalorder %s90, %s91
    %p102 = scmp.eq.s32.totalorder %s14, 0
    %p103 = por %p101, %p102
    %p104 = scmp.ne.s32.totalorder %s90, %s91
    %p105 = scmp.eq.s32.totalorder %s15, 1
    %p106 = por %p104, %p105
    %p108 = scmp.ne.s32.totalorder %s91, %s107
    %p109 = scmp.eq.s32.totalorder %s15, 0
    %p110 = por %p108, %p109
    %p111 = scmp.le.s32.totalorder 1, %s9
    %p112 = scmp.lt.s32.totalorder %s9, 3
    %p113 = pnand %p111, %p112
    %p114 = pneg %p113
    // Predicated region
    $region9: #{_lambda_.16} parent=5 // pred_check
      _
    $region10: #{_lambda_.16} parent=5 // pred_check_branch
      %116 = sbr.rel (%p113) target = $region12
    $region11: #{_lambda_.16} parent=5 // pred_region
      %s117 = ssub.s32 %s9, 1
      // Predicated region
      $region13: #{_lambda_.16} parent=11 // pred_check
        %p118 = pneg %p56
      $region14: #{_lambda_.16} parent=11 // pred_check_branch
        %120 = sbr.rel (%p118) target = $region16
      $region15: #{_lambda_.16} parent=11 // pred_region
        _
      $region16: #{_lambda_.16} parent=11 // pred_fallthru
        _
      // Predicated region
      $region17: #{_lambda_.16} parent=11 // pred_check
        %p121 = pneg %p77
      $region18: #{_lambda_.16} parent=11 // pred_check_branch
        %123 = sbr.rel (%p121) target = $region20
      $region19: #{_lambda_.16} parent=11 // pred_region
        _
      $region20: #{_lambda_.16} parent=11 // pred_fallthru
        _
    $region12: #{_lambda_.16} parent=5 // pred_fallthru
      _
    %p124 = scmp.lt.s32.totalorder %s9, 2
    // Predicated region
    $region21: #{_lambda_.16} parent=5 // pred_check
      %p125 = pneg %p124
    $region22: #{_lambda_.16} parent=5 // pred_check_branch
      %127 = sbr.rel (%p125) target = $region24
    $region23: #{_lambda_.16} parent=5 // pred_region
      // Predicated region
      $region25: #{_lambda_.16} parent=23 // pred_check
        %p128 = pneg %p29
      $region26: #{_lambda_.16} parent=23 // pred_check_branch
        %130 = sbr.rel (%p128) target = $region28
      $region27: #{_lambda_.16} parent=23 // pred_region
        %s131 = smul.u32 8, %s9
        %p132 = scmp.lt.s32.totalorder %s131, 15
        %s133 = scalar_select %p132, %s131, 15
        %s134 = smul.addr %s133, 3
        %s135 = smul.addr %s134, 4
        %s136 = scalar_lea.vmem %s0, %s135
        %s137 = smul.u32 8, %s9
      $region28: #{_lambda_.16} parent=23 // pred_fallthru
        _
    $region24: #{_lambda_.16} parent=5 // pred_fallthru
      _
    %p138 = scmp.le.s32.totalorder 1, %s9
    %p139 = scmp.lt.s32.totalorder %s9, 3
    %p140 = pnand %p138, %p139
    %p141 = pneg %p140
    // Predicated region
    $region29: #{_lambda_.16} parent=5 // pred_check
      _
    $region30: #{_lambda_.16} parent=5 // pred_check_branch
      %143 = sbr.rel (%p140) target = $region32
    $region31: #{_lambda_.16} parent=5 // pred_region
      %s144 = ssub.s32 %s9, 1
      %s145 = smul.u32 8, %s14
      %p146 = scmp.lt.s32.totalorder %s145, 15
      %s147 = scalar_select %p146, %s145, 15
      %s148 = smul.addr %s147, 3
      %s149 = smul.addr %s148, 4
      %s150 = scalar_lea.vmem %s0, %s149
      %p151 = pneg %p35
      %p152 = pneg %p32
      %p153 = pneg %p56
      %p154 = pneg %p53
      %p155 = pneg %p77
      %p156 = pneg %p74
      %p157 = pneg %p103
      %p158 = pneg %p100
      %s159 = smul.u32 8, %s14
      %p160 = scmp.lt.s32.totalorder %s159, 15
      %s161 = scalar_select %p160, %s159, 15
      %s162 = smul.addr %s161, 4
      %s163 = scalar_lea.vmem %s3, %s162
      %s164 = smul.u32 8, %s14
      %p165 = scmp.lt.s32.totalorder %s164, 15
      %s166 = scalar_select %p165, %s164, 15
      %s167 = smul.addr %s166, 3
      %s168 = smul.addr %s167, 4
      %s169 = scalar_lea.vmem %s0, %s168
      %s170 = smul.u32 8, %s14
      %s171 = smul.u32 8, %s14
      %p172 = scmp.lt.s32.totalorder %s171, 15
      %s173 = scalar_select %p172, %s171, 15
      %s174 = smul.addr %s173, 4
      %s175 = scalar_lea.vmem %s3, %s174
      %s176 = smul.u32 8, %s14
      %v178 = vld [vmem:[%s169] sm:$0xff]
      %v179 = vld [vmem:[%s169 + $0x8] sm:$0xf]
      %v180 = vld [vmem:[%s169 + $0xc] sm:$0xff]
      %v181 = vld [vmem:[%s169 + $0x14] sm:$0xf]
      %v182 = vld [vmem:[%s169 + $0x18] sm:$0xff]
      %v183 = vld [vmem:[%s169 + $0x20] sm:$0xf]
      %v184 = vld [vmem:[%s169 + $0x24] sm:$0xff]
      %v185 = vld [vmem:[%s169 + $0x2c] sm:$0xf]
      %v186 = vld [vmem:[%s169 + $0x30] sm:$0xff]
      %v187 = vld [vmem:[%s169 + $0x38] sm:$0xf]
      %v188 = vld [vmem:[%s169 + $0x3c] sm:$0xff]
      %v189 = vld [vmem:[%s169 + $0x44] sm:$0xf]
      %v190 = vld [vmem:[%s169 + $0x48] sm:$0xff]
      %v191 = vld [vmem:[%s169 + $0x50] sm:$0xf]
      %v192 = vld [vmem:[%s169 + $0x54] sm:$0xff]
      %v193 = vld [vmem:[%s169 + $0x5c] sm:$0xf]
      %v194 = vunpack.c.l.bf16 %v178
      %v195 = vunpack.c.h.bf16 %v178
      %v196 = vunpack.c.l.bf16 %v179
      %v197 = vunpack.c.l.bf16 %v180
      %v198 = vunpack.c.h.bf16 %v180
      %v199 = vunpack.c.l.bf16 %v181
      %v200 = vunpack.c.l.bf16 %v182
      %v201 = vunpack.c.h.bf16 %v182
      %v202 = vunpack.c.l.bf16 %v183
      %v203 = vunpack.c.l.bf16 %v184
      %v204 = vunpack.c.h.bf16 %v184
      %v205 = vunpack.c.l.bf16 %v185
      %v206 = vunpack.c.l.bf16 %v186
      %v207 = vunpack.c.h.bf16 %v186
      %v208 = vunpack.c.l.bf16 %v187
      %v209 = vunpack.c.l.bf16 %v188
      %v210 = vunpack.c.h.bf16 %v188
      %v211 = vunpack.c.l.bf16 %v189
      %v212 = vunpack.c.l.bf16 %v190
      %v213 = vunpack.c.h.bf16 %v190
      %v214 = vunpack.c.l.bf16 %v191
      %v215 = vunpack.c.l.bf16 %v192
      %v216 = vunpack.c.h.bf16 %v192
      %v217 = vunpack.c.l.bf16 %v193
      %v218 = vmax.f32 %v194, 0.0
      %v219 = vmax.f32 %v195, 0.0
      %v220 = vmax.f32 %v196, 0.0
      %v221 = vmax.f32 %v197, 0.0
      %v222 = vmax.f32 %v198, 0.0
      %v223 = vmax.f32 %v199, 0.0
      %v224 = vmax.f32 %v200, 0.0
      %v225 = vmax.f32 %v201, 0.0
      %v226 = vmax.f32 %v202, 0.0
      %v227 = vmax.f32 %v203, 0.0
      %v228 = vmax.f32 %v204, 0.0
      %v229 = vmax.f32 %v205, 0.0
      %v230 = vmax.f32 %v206, 0.0
      %v231 = vmax.f32 %v207, 0.0
      %v232 = vmax.f32 %v208, 0.0
      %v233 = vmax.f32 %v209, 0.0
      %v234 = vmax.f32 %v210, 0.0
      %v235 = vmax.f32 %v211, 0.0
      %v236 = vmax.f32 %v212, 0.0
      %v237 = vmax.f32 %v213, 0.0
      %v238 = vmax.f32 %v214, 0.0
      %v239 = vmax.f32 %v215, 0.0
      %v240 = vmax.f32 %v216, 0.0
      %v241 = vmax.f32 %v217, 0.0
      %v242 = vpack.c.bf16 %v221, %v218
      %v243 = vpack.c.bf16 %v222, %v219
      %v244 = vpack.c.bf16 %v223, %v220
      %v245 = vpack.c.bf16 %v227, %v224
      %v246 = vpack.c.bf16 %v228, %v225
      %v247 = vpack.c.bf16 %v229, %v226
      %v248 = vpack.c.bf16 %v233, %v230
      %v249 = vpack.c.bf16 %v234, %v231
      %v250 = vpack.c.bf16 %v235, %v232
      %v251 = vpack.c.bf16 %v239, %v236
      %v252 = vpack.c.bf16 %v240, %v237
      %v253 = vpack.c.bf16 %v241, %v238
      %v254 = vld [vmem:[%s1] sm:$0xf]
      %v255 = vld [vmem:[%s1 + $0x4] sm:$0xf]
      %v256 = vld [vmem:[%s1 + $0x8] sm:$0xf]
      %v257 = vld [vmem:[%s1 + $0xc] sm:$0xf]
      %v258 = vld [vmem:[%s1 + $0x10] sm:$0xf]
      %v259 = vld [vmem:[%s1 + $0x14] sm:$0xf]
      %v260 = vld [vmem:[%s1 + $0x18] sm:$0xf]
      %v261 = vld [vmem:[%s1 + $0x1c] sm:$0xf]
      %v262 = vld [vmem:[%s1 + $0x20] sm:$0xf]
      %v263 = vld [vmem:[%s1 + $0x24] sm:$0xf]
      %v264 = vld [vmem:[%s1 + $0x28] sm:$0xf]
      %v265 = vld [vmem:[%s1 + $0x2c] sm:$0xf]
      %v266 = vld [vmem:[%s1 + $0x30] sm:$0xf]
      %v267 = vld [vmem:[%s1 + $0x34] sm:$0xf]
      %v268 = vld [vmem:[%s1 + $0x38] sm:$0xf]
      %v269 = vld [vmem:[%s1 + $0x3c] sm:$0xf]
      %v270 = vld [vmem:[%s1 + $0x40] sm:$0xf]
      %v271 = vld [vmem:[%s1 + $0x44] sm:$0xf]
      %v272 = vld [vmem:[%s1 + $0x48] sm:$0xf]
      %v273 = vld [vmem:[%s1 + $0x4c] sm:$0xf]
      %v274 = vld [vmem:[%s1 + $0x50] sm:$0xf]
      %v275 = vld [vmem:[%s1 + $0x54] sm:$0xf]
      %v276 = vld [vmem:[%s1 + $0x58] sm:$0xf]
      %v277 = vld [vmem:[%s1 + $0x5c] sm:$0xf]
      %v278 = vld [vmem:[%s1 + $0x60] sm:$0xf]
      %v279 = vld [vmem:[%s1 + $0x64] sm:$0xf]
      %v280 = vld [vmem:[%s1 + $0x68] sm:$0xf]
      %v281 = vld [vmem:[%s1 + $0x6c] sm:$0xf]
      %v282 = vld [vmem:[%s1 + $0x70] sm:$0xf]
      %v283 = vld [vmem:[%s1 + $0x74] sm:$0xf]
      %v284 = vld [vmem:[%s1 + $0x78] sm:$0xf]
      %v285 = vld [vmem:[%s1 + $0x7c] sm:$0xf]
      %v286 = vld [vmem:[%s1 + $0x80] sm:$0xf]
      %v287 = vld [vmem:[%s1 + $0x84] sm:$0xf]
      %v288 = vld [vmem:[%s1 + $0x88] sm:$0xf]
      %v289 = vld [vmem:[%s1 + $0x8c] sm:$0xf]
      %v290 = vld [vmem:[%s2] sm:$0x1]
      %v292 = vperm.slane %v290, 0
      %v330 = vunpack.c.l.b16 %v254
      %v331 = vunpack.c.l.b16 %v255
      %v332 = vunpack.c.l.b16 %v256
      %v333 = vunpack.c.l.b16 %v257
      %v334 = vunpack.c.l.b16 %v258
      %v335 = vunpack.c.l.b16 %v259
      %v336 = vunpack.c.l.b16 %v260
      %v337 = vunpack.c.l.b16 %v261
      %v338 = vunpack.c.l.b16 %v262
      %v339 = vunpack.c.l.b16 %v263
      %v340 = vunpack.c.l.b16 %v264
      %v341 = vunpack.c.l.b16 %v265
      %v342 = vunpack.c.l.b16 %v266
      %v343 = vunpack.c.l.b16 %v267
      %v344 = vunpack.c.l.b16 %v268
      %v345 = vunpack.c.l.b16 %v269
      %v346 = vunpack.c.l.b16 %v270
      %v347 = vunpack.c.l.b16 %v271
      %v348 = vunpack.c.l.b16 %v272
      %v349 = vunpack.c.l.b16 %v273
      %v350 = vunpack.c.l.b16 %v274
      %v351 = vunpack.c.l.b16 %v275
      %v352 = vunpack.c.l.b16 %v276
      %v353 = vunpack.c.l.b16 %v277
      %v354 = vunpack.c.l.b16 %v278
      %v355 = vunpack.c.l.b16 %v279
      %v356 = vunpack.c.l.b16 %v280
      %v357 = vunpack.c.l.b16 %v281
      %v358 = vunpack.c.l.b16 %v282
      %v359 = vunpack.c.l.b16 %v283
      %v360 = vunpack.c.l.b16 %v284
      %v361 = vunpack.c.l.b16 %v285
      %v362 = vunpack.c.l.b16 %v286
      %v363 = vunpack.c.l.b16 %v287
      %v364 = vunpack.c.l.b16 %v288
      %v365 = vunpack.c.l.b16 %v289
      %v366 = vpack.c.b16 %v331, %v330
      %v367 = vpack.c.b16 %v333, %v332
      %v368 = vpack.c.b16 %v335, %v334
      %v369 = vpack.c.b16 %v337, %v336
      %v370 = vpack.c.b16 %v339, %v338
      %v371 = vpack.c.b16 %v341, %v340
      %v372 = vpack.c.b16 %v343, %v342
      %v373 = vpack.c.b16 %v345, %v344
      %v374 = vpack.c.b16 %v347, %v346
      %v375 = vpack.c.b16 %v349, %v348
      %v376 = vpack.c.b16 %v351, %v350
      %v377 = vpack.c.b16 %v353, %v352
      %v378 = vpack.c.b16 %v355, %v354
      %v379 = vpack.c.b16 %v357, %v356
      %v380 = vpack.c.b16 %v359, %v358
      %v381 = vpack.c.b16 %v361, %v360
      %v382 = vpack.c.b16 %v363, %v362
      %v383 = vpack.c.b16 %v365, %v364
      %vm402 = vcmask 261120
      %v404 = vsel %vm402, %v244, 0
      %v407 = vsel %vm402, %v247, 0
      %v410 = vsel %vm402, %v250, 0
      %v413 = vsel %vm402, %v253, 0
      %415 = vmatpush.bf16.msra.mxu0 %v373
      %416 = vmatpush.bf16.msra.mxu0 %v372
      %417 = vmatpush.bf16.msra.mxu0 %v371
      %418 = vmatpush.bf16.msra.mxu0 %v370
      %419 = vmatpush.bf16.msra.mxu0 %v369
      %420 = vmatpush.bf16.msra.mxu0 %v368
      %421 = vmatpush.bf16.msra.mxu0 %v367
      %422 = vmatpush.bf16.msra.mxu0 %v366
      %423 = vmatmul.bf16.gmra.mxu0 %v242
      %v424 = vpop.f32.mrf.mxu0
      %v425 = vadd.f32 %v292, %v424
      %v426 = vpop.f32.mrf.mxu0
      %v427 = vadd.f32 %v292, %v426
      %428 = vmatmul.bf16.gmra.mxu0 %v245
      %v429 = vpop.f32.mrf.mxu0
      %v430 = vadd.f32 %v292, %v429
      %v431 = vpop.f32.mrf.mxu0
      %v432 = vadd.f32 %v292, %v431
      %433 = vmatmul.bf16.gmra.mxu0 %v248
      %v434 = vpop.f32.mrf.mxu0
      %v435 = vadd.f32 %v292, %v434
      %v436 = vpop.f32.mrf.mxu0
      %v437 = vadd.f32 %v292, %v436
      %438 = vmatmul.bf16.gmra.mxu0 %v251
      %v439 = vpop.f32.mrf.mxu0
      %v440 = vadd.f32 %v292, %v439
      %v441 = vpop.f32.mrf.mxu0
      %v442 = vadd.f32 %v292, %v441
      %443 = vdwg.mxu0
      %444 = vmatpush.bf16.msra.mxu0 %v381
      %445 = vmatpush.bf16.msra.mxu0 %v380
      %446 = vmatpush.bf16.msra.mxu0 %v379
      %447 = vmatpush.bf16.msra.mxu0 %v378
      %448 = vmatpush.bf16.msra.mxu0 %v377
      %449 = vmatpush.bf16.msra.mxu0 %v376
      %450 = vmatpush.bf16.msra.mxu0 %v375
      %451 = vmatpush.bf16.msra.mxu0 %v374
      %452 = vmatmul.bf16.gmra.mxu0 %v243
      %v453 = vpop.f32.mrf.mxu0
      %v454 = vadd.f32 %v425, %v453
      %v455 = vpop.f32.mrf.mxu0
      %v456 = vadd.f32 %v427, %v455
      %457 = vmatmul.bf16.gmra.mxu0 %v246
      %v458 = vpop.f32.mrf.mxu0
      %v459 = vadd.f32 %v430, %v458
      %v460 = vpop.f32.mrf.mxu0
      %v461 = vadd.f32 %v432, %v460
      %462 = vmatmul.bf16.gmra.mxu0 %v249
      %v463 = vpop.f32.mrf.mxu0
      %v464 = vadd.f32 %v435, %v463
      %v465 = vpop.f32.mrf.mxu0
      %v466 = vadd.f32 %v437, %v465
      %467 = vmatmul.bf16.gmra.mxu0 %v252
      %v468 = vpop.f32.mrf.mxu0
      %v469 = vadd.f32 %v440, %v468
      %v470 = vpop.f32.mrf.mxu0
      %v471 = vadd.f32 %v442, %v470
      %472 = vdwg.mxu0
      %473 = vmatpush.bf16.msra.mxu0 0
      %474 = vmatpush.bf16.msra.mxu0 0
      %475 = vmatpush.bf16.msra.mxu0 0
      %476 = vmatpush.bf16.msra.mxu0 0
      %477 = vmatpush.bf16.msra.mxu0 0
      %478 = vmatpush.bf16.msra.mxu0 0
      %479 = vmatpush.bf16.msra.mxu0 %v383
      %480 = vmatpush.bf16.msra.mxu0 %v382
      %481 = vmatmul.bf16.gmra.mxu0 %v404
      %v482 = vpop.f32.mrf.mxu0
      %v483 = vadd.f32 %v454, %v482
      %v484 = vpop.f32.mrf.mxu0
      %v485 = vadd.f32 %v456, %v484
      %486 = vmatmul.bf16.gmra.mxu0 %v407
      %v487 = vpop.f32.mrf.mxu0
      %v488 = vadd.f32 %v459, %v487
      %v489 = vpop.f32.mrf.mxu0
      %v490 = vadd.f32 %v461, %v489
      %491 = vmatmul.bf16.gmra.mxu0 %v410
      %v492 = vpop.f32.mrf.mxu0
      %v493 = vadd.f32 %v464, %v492
      %v494 = vpop.f32.mrf.mxu0
      %v495 = vadd.f32 %v466, %v494
      %496 = vmatmul.bf16.gmra.mxu0 %v413
      %v497 = vpop.f32.mrf.mxu0
      %v498 = vadd.f32 %v469, %v497
      %v499 = vpop.f32.mrf.mxu0
      %v500 = vadd.f32 %v471, %v499
      %501 = vdwg.mxu0
      %v502 = vmax.f32 %v483, 0.0
      %v503 = vmax.f32 %v485, 0.0
      %v504 = vmax.f32 %v488, 0.0
      %v505 = vmax.f32 %v490, 0.0
      %v506 = vmax.f32 %v493, 0.0
      %v507 = vmax.f32 %v495, 0.0
      %v508 = vmax.f32 %v498, 0.0
      %v509 = vmax.f32 %v500, 0.0
      %v510 = vpack.c.bf16 %v502, %v502
      %v511 = vpack.c.bf16 %v503, %v503
      %v512 = vpack.c.bf16 %v504, %v504
      %v513 = vpack.c.bf16 %v505, %v505
      %v514 = vpack.c.bf16 %v506, %v506
      %v515 = vpack.c.bf16 %v507, %v507
      %v516 = vpack.c.bf16 %v508, %v508
      %v517 = vpack.c.bf16 %v509, %v509
      %518 = vst [vmem:[%s175] sm:$0xf] %v510
      %519 = vst [vmem:[%s175 + $0x4] sm:$0xf] %v511
      %520 = vst [vmem:[%s175 + $0x8] sm:$0xf] %v512
      %521 = vst [vmem:[%s175 + $0xc] sm:$0xf] %v513
      %522 = vst [vmem:[%s175 + $0x10] sm:$0xf] %v514
      %523 = vst [vmem:[%s175 + $0x14] sm:$0xf] %v515
      %524 = vst [vmem:[%s175 + $0x18] sm:$0xf] %v516
      %525 = vst [vmem:[%s175 + $0x1c] sm:$0xf] %v517
      %s526 = smul.u32 8, %s14
      %p527 = scmp.lt.s32.totalorder %s526, 15
      %s528 = scalar_select %p527, %s526, 15
      %s529 = smul.addr %s528, 4
      %s530 = scalar_lea.vmem %s3, %s529
      // Predicated region
      $region33: #{_lambda_.16} parent=31 // pred_check
        %p531 = pneg %p100
      $region34: #{_lambda_.16} parent=31 // pred_check_branch
        %533 = sbr.rel (%p531) target = $region36
      $region35: #{_lambda_.16} parent=31 // pred_region
        %s534 = smul.u32 8, %s14
      $region36: #{_lambda_.16} parent=31 // pred_fallthru
        _
    $region32: #{_lambda_.16} parent=5 // pred_fallthru
      _
    %p535 = scmp.le.s32.totalorder 2, %s9
    // Predicated region
    $region37: #{_lambda_.16} parent=5 // pred_check
      %p536 = pneg %p535
    $region38: #{_lambda_.16} parent=5 // pred_check_branch
      %538 = sbr.rel (%p536) target = $region40
    $region39: #{_lambda_.16} parent=5 // pred_region
      %s539 = ssub.s32 %s9, 2
      // Predicated region
      $region41: #{_lambda_.16} parent=39 // pred_check
        %p540 = pneg %p106
      $region42: #{_lambda_.16} parent=39 // pred_check_branch
        %542 = sbr.rel (%p540) target = $region44
      $region43: #{_lambda_.16} parent=39 // pred_region
        %s543 = smul.u32 8, %s15
        %p544 = scmp.lt.s32.totalorder %s543, 15
        %s545 = scalar_select %p544, %s543, 15
        %s546 = smul.addr %s545, 4
        %s547 = scalar_lea.vmem %s3, %s546
      $region44: #{_lambda_.16} parent=39 // pred_fallthru
        _
    $region40: #{_lambda_.16} parent=5 // pred_fallthru
      _
  $region6: #{_lambda_.16} parent=0 // loop_footer
    %s13 = sadd.s32 1, %s9
  $region7: #{_lambda_.16} parent=0 // loop_footer_branch
    %8 = sbr.rel target = $region3
  $region8: #{_lambda_.16} parent=0 // loop_exit
    _

// kernel: _lambda_.17
$region0: #{_lambda_.17}
  #allocation0 [shape = 'u32[]', space=smem, size = 0x4, offset = 0x4, fixed_abs, tag = 'smem constant byte address 0x4 - core index']
  #allocation1 [shape = 'u32[72,128]{1,0:T(1,128)}', space=vmem, size = 0x9000, scoped, tag = 'internal scratch']
  %s0 = inlined_call_operand.vmem [shape: bf16[512,784], index: 0, kind: input, shape index: {}]
  %s1 = inlined_call_operand.vmem [shape: bf16[784,128], index: 1, kind: input, shape index: {}]
  %s2 = inlined_call_operand.vmem [shape: f32[1,128], index: 2, kind: input, shape index: {}]
  %s3 = inlined_call_operand.vmem [shape: f32[512,128], index: 3, kind: output, shape index: {}]
  %s4 = sld [smem:[#allocation0]]
  $region45: #{_lambda_.17} parent=0
    _
  %s6 = ssub.s32 1, %s4
  %s7 = scalar_select 0, %s6, %s4
  loop: start=0, step=1, limit=4
  $region2: #{_lambda_.17} parent=0 // loop_pre_header
    _
  $region3: #{_lambda_.17} parent=0 // loop_header
    %s9 = sphi 0, %s13
    %p10 = scmp.ge.s32.totalorder %s9, 4
    %s19 = sphi 0, %s21
    %s22 = sphi 0, %s19
    %s23 = sphi 0, %s22
    %s39 = sphi 0, %s23
    %s43 = sphi 0, %s43
    %s45 = sphi 0, %s43
    %s46 = sphi 0, %s45
    %s60 = sphi 0, %s46
    %s64 = sphi 0, %s64
    %s66 = sphi 0, %s64
    %s67 = sphi 0, %s66
    %s81 = sphi 0, %s67
    %s87 = sphi 0, %s89
    %s90 = sphi 0, %s87
    %s91 = sphi 0, %s90
    %s107 = sphi 0, %s91
  $region4: #{_lambda_.17} parent=0 // loop_header_branch
    %12 = sbr.rel (%p10) target = $region8
  $region5: #{_lambda_.17} parent=0 // loop_body
    %s14 = ssub.s32 %s9, 1
    %s15 = ssub.s32 %s9, 2
    %s16 = sadd.s32 %s9, 1
    %s17 = ssub.s32 %s9, %s16
    %p18 = scmp.eq.s32.totalorder %s17, 0
    %s20 = sadd.s32 %s19, 1
    %s21 = scalar_select %p18, %s19, %s20
    %p24 = pneg %p18
    %p25 = scmp.eq.s32.totalorder %s9, 1
    %p26 = por %p24, %p25
    %p27 = scmp.ne.s32.totalorder %s19, %s22
    %p28 = scmp.eq.s32.totalorder %s9, 0
    %p29 = por %p27, %p28
    %p30 = scmp.ne.s32.totalorder %s19, %s22
    %p31 = scmp.eq.s32.totalorder %s14, 1
    %p32 = por %p30, %p31
    %p33 = scmp.ne.s32.totalorder %s22, %s23
    %p34 = scmp.eq.s32.totalorder %s14, 0
    %p35 = por %p33, %p34
    %p36 = scmp.ne.s32.totalorder %s22, %s23
    %p37 = scmp.eq.s32.totalorder %s15, 1
    %p38 = por %p36, %p37
    %p40 = scmp.ne.s32.totalorder %s23, %s39
    %p41 = scmp.eq.s32.totalorder %s15, 0
    %p42 = por %p40, %p41
    %s44 = sadd.s32 %s43, 1
    %p47 = scmp.eq.s32.totalorder %s9, 1
    %p48 = scmp.ne.s32.totalorder %s43, %s45
    %p49 = scmp.eq.s32.totalorder %s9, 0
    %p50 = por %p48, %p49
    %p51 = scmp.ne.s32.totalorder %s43, %s45
    %p52 = scmp.eq.s32.totalorder %s14, 1
    %p53 = por %p51, %p52
    %p54 = scmp.ne.s32.totalorder %s45, %s46
    %p55 = scmp.eq.s32.totalorder %s14, 0
    %p56 = por %p54, %p55
    %p57 = scmp.ne.s32.totalorder %s45, %s46
    %p58 = scmp.eq.s32.totalorder %s15, 1
    %p59 = por %p57, %p58
    %p61 = scmp.ne.s32.totalorder %s46, %s60
    %p62 = scmp.eq.s32.totalorder %s15, 0
    %p63 = por %p61, %p62
    %s65 = sadd.s32 %s64, 1
    %p68 = scmp.eq.s32.totalorder %s9, 1
    %p69 = scmp.ne.s32.totalorder %s64, %s66
    %p70 = scmp.eq.s32.totalorder %s9, 0
    %p71 = por %p69, %p70
    %p72 = scmp.ne.s32.totalorder %s64, %s66
    %p73 = scmp.eq.s32.totalorder %s14, 1
    %p74 = por %p72, %p73
    %p75 = scmp.ne.s32.totalorder %s66, %s67
    %p76 = scmp.eq.s32.totalorder %s14, 0
    %p77 = por %p75, %p76
    %p78 = scmp.ne.s32.totalorder %s66, %s67
    %p79 = scmp.eq.s32.totalorder %s15, 1
    %p80 = por %p78, %p79
    %p82 = scmp.ne.s32.totalorder %s67, %s81
    %p83 = scmp.eq.s32.totalorder %s15, 0
    %p84 = por %p82, %p83
    %s85 = ssub.s32 %s9, %s16
    %p86 = scmp.eq.s32.totalorder %s85, 0
    %s88 = sadd.s32 %s87, 1
    %s89 = scalar_select %p86, %s87, %s88
    %p92 = pneg %p86
    %p93 = scmp.eq.s32.totalorder %s9, 1
    %p94 = por %p92, %p93
    %p95 = scmp.ne.s32.totalorder %s87, %s90
    %p96 = scmp.eq.s32.totalorder %s9, 0
    %p97 = por %p95, %p96
    %p98 = scmp.ne.s32.totalorder %s87, %s90
    %p99 = scmp.eq.s32.totalorder %s14, 1
    %p100 = por %p98, %p99
    %p101 = scmp.ne.s32.totalorder %s90, %s91
    %p102 = scmp.eq.s32.totalorder %s14, 0
    %p103 = por %p101, %p102
    %p104 = scmp.ne.s32.totalorder %s90, %s91
    %p105 = scmp.eq.s32.totalorder %s15, 1
    %p106 = por %p104, %p105
    %p108 = scmp.ne.s32.totalorder %s91, %s107
    %p109 = scmp.eq.s32.totalorder %s15, 0
    %p110 = por %p108, %p109
    %p111 = scmp.le.s32.totalorder 1, %s9
    %p112 = scmp.lt.s32.totalorder %s9, 3
    %p113 = pnand %p111, %p112
    %p114 = pneg %p113
    // Predicated region
    $region9: #{_lambda_.17} parent=5 // pred_check
      _
    $region10: #{_lambda_.17} parent=5 // pred_check_branch
      %116 = sbr.rel (%p113) target = $region12
    $region11: #{_lambda_.17} parent=5 // pred_region
      %s117 = ssub.s32 %s9, 1
      // Predicated region
      $region13: #{_lambda_.17} parent=11 // pred_check
        %p118 = pneg %p56
      $region14: #{_lambda_.17} parent=11 // pred_check_branch
        %120 = sbr.rel (%p118) target = $region16
      $region15: #{_lambda_.17} parent=11 // pred_region
        _
      $region16: #{_lambda_.17} parent=11 // pred_fallthru
        _
      // Predicated region
      $region17: #{_lambda_.17} parent=11 // pred_check
        %p121 = pneg %p77
      $region18: #{_lambda_.17} parent=11 // pred_check_branch
        %123 = sbr.rel (%p121) target = $region20
      $region19: #{_lambda_.17} parent=11 // pred_region
        _
      $region20: #{_lambda_.17} parent=11 // pred_fallthru
        _
    $region12: #{_lambda_.17} parent=5 // pred_fallthru
      _
    %p124 = scmp.lt.s32.totalorder %s9, 2
    // Predicated region
    $region21: #{_lambda_.17} parent=5 // pred_check
      %p125 = pneg %p124
    $region22: #{_lambda_.17} parent=5 // pred_check_branch
      %127 = sbr.rel (%p125) target = $region24
    $region23: #{_lambda_.17} parent=5 // pred_region
      // Predicated region
      $region25: #{_lambda_.17} parent=23 // pred_check
        %p128 = pneg %p29
      $region26: #{_lambda_.17} parent=23 // pred_check_branch
        %130 = sbr.rel (%p128) target = $region28
      $region27: #{_lambda_.17} parent=23 // pred_region
        %s131 = smul.u32 32, %s9
        %p132 = scmp.lt.s32.totalorder %s131, 63
        %s133 = scalar_select %p132, %s131, 63
        %s134 = smul.addr %s133, 7
        %s135 = smul.addr %s134, 4
        %s136 = scalar_lea.vmem %s0, %s135
        %s137 = smul.u32 32, %s9
      $region28: #{_lambda_.17} parent=23 // pred_fallthru
        _
    $region24: #{_lambda_.17} parent=5 // pred_fallthru
      _
    %p138 = scmp.le.s32.totalorder 1, %s9
    %p139 = scmp.lt.s32.totalorder %s9, 3
    %p140 = pnand %p138, %p139
    %p141 = pneg %p140
    // Predicated region
    $region29: #{_lambda_.17} parent=5 // pred_check
      _
    $region30: #{_lambda_.17} parent=5 // pred_check_branch
      %143 = sbr.rel (%p140) target = $region32
    $region31: #{_lambda_.17} parent=5 // pred_region
      %s144 = ssub.s32 %s9, 1
      %s145 = smul.u32 32, %s14
      %p146 = scmp.lt.s32.totalorder %s145, 63
      %s147 = scalar_select %p146, %s145, 63
      %s148 = smul.addr %s147, 7
      %s149 = smul.addr %s148, 4
      %s150 = scalar_lea.vmem %s0, %s149
      %p151 = pneg %p35
      %p152 = pneg %p32
      %p153 = pneg %p56
      %p154 = pneg %p53
      %p155 = pneg %p77
      %p156 = pneg %p74
      %p157 = pneg %p103
      %p158 = pneg %p100
      %s159 = smul.u32 32, %s14
      %p160 = scmp.lt.s32.totalorder %s159, 63
      %s161 = scalar_select %p160, %s159, 63
      %s162 = smul.addr %s161, 8
      %s163 = scalar_lea.vmem %s3, %s162
      %s164 = smul.u32 32, %s14
      %p165 = scmp.lt.s32.totalorder %s164, 63
      %s166 = scalar_select %p165, %s164, 63
      %s167 = smul.addr %s166, 7
      %s168 = smul.addr %s167, 4
      %s169 = scalar_lea.vmem %s0, %s168
      %s170 = smul.u32 32, %s14
      %s171 = smul.u32 32, %s14
      %p172 = scmp.lt.s32.totalorder %s171, 63
      %s173 = scalar_select %p172, %s171, 63
      %s174 = smul.addr %s173, 8
      %s175 = scalar_lea.vmem %s3, %s174
      %s176 = smul.u32 32, %s14
      %v178 = vld [vmem:[%s169] sm:$0xff]
      %v179 = vld [vmem:[%s169 + $0x8] sm:$0xff]
      %v180 = vld [vmem:[%s169 + $0x10] sm:$0xff]
      %v181 = vld [vmem:[%s169 + $0x18] sm:$0xf]
      %v182 = vld [vmem:[%s169 + $0x1c] sm:$0xff]
      %v183 = vld [vmem:[%s169 + $0x24] sm:$0xff]
      %v184 = vld [vmem:[%s169 + $0x2c] sm:$0xff]
      %v185 = vld [vmem:[%s169 + $0x34] sm:$0xf]
      %v186 = vld [vmem:[%s169 + $0x38] sm:$0xff]
      %v187 = vld [vmem:[%s169 + $0x40] sm:$0xff]
      %v188 = vld [vmem:[%s169 + $0x48] sm:$0xff]
      %v189 = vld [vmem:[%s169 + $0x50] sm:$0xf]
      %v190 = vld [vmem:[%s169 + $0x54] sm:$0xff]
      %v191 = vld [vmem:[%s169 + $0x5c] sm:$0xff]
      %v192 = vld [vmem:[%s169 + $0x64] sm:$0xff]
      %v193 = vld [vmem:[%s169 + $0x6c] sm:$0xf]
      %v194 = vld [vmem:[%s169 + $0x70] sm:$0xff]
      %v195 = vld [vmem:[%s169 + $0x78] sm:$0xff]
      %v196 = vld [vmem:[%s169 + $0x80] sm:$0xff]
      %v197 = vld [vmem:[%s169 + $0x88] sm:$0xf]
      %v198 = vld [vmem:[%s169 + $0x8c] sm:$0xff]
      %v199 = vld [vmem:[%s169 + $0x94] sm:$0xff]
      %v200 = vld [vmem:[%s169 + $0x9c] sm:$0xff]
      %v201 = vld [vmem:[%s169 + $0xa4] sm:$0xf]
      %v202 = vld [vmem:[%s169 + $0xa8] sm:$0xff]
      %v203 = vld [vmem:[%s169 + $0xb0] sm:$0xff]
      %v204 = vld [vmem:[%s169 + $0xb8] sm:$0xff]
      %v205 = vld [vmem:[%s169 + $0xc0] sm:$0xf]
      %v206 = vld [vmem:[%s169 + $0xc4] sm:$0xff]
      %v207 = vld [vmem:[%s169 + $0xcc] sm:$0xff]
      %v208 = vld [vmem:[%s169 + $0xd4] sm:$0xff]
      %v209 = vld [vmem:[%s169 + $0xdc] sm:$0xf]
      %v210 = vld [vmem:[%s169 + $0xe0] sm:$0xff]
      %v211 = vld [vmem:[%s169 + $0xe8] sm:$0xff]
      %v212 = vld [vmem:[%s169 + $0xf0] sm:$0xff]
      %v213 = vld [vmem:[%s169 + $0xf8] sm:$0xf]
      %v214 = vld [vmem:[%s169 + $0xfc] sm:$0xff]
      %v215 = vld [vmem:[%s169 + $0x104] sm:$0xff]
      %v216 = vld [vmem:[%s169 + $0x10c] sm:$0xff]
      %v217 = vld [vmem:[%s169 + $0x114] sm:$0xf]
      %v218 = vld [vmem:[%s169 + $0x118] sm:$0xff]
      %v219 = vld [vmem:[%s169 + $0x120] sm:$0xff]
      %v220 = vld [vmem:[%s169 + $0x128] sm:$0xff]
      %v221 = vld [vmem:[%s169 + $0x130] sm:$0xf]
      %v222 = vld [vmem:[%s169 + $0x134] sm:$0xff]
      %v223 = vld [vmem:[%s169 + $0x13c] sm:$0xff]
      %v224 = vld [vmem:[%s169 + $0x144] sm:$0xff]
      %v225 = vld [vmem:[%s169 + $0x14c] sm:$0xf]
      %v226 = vld [vmem:[%s169 + $0x150] sm:$0xff]
      %v227 = vld [vmem:[%s169 + $0x158] sm:$0xff]
      %v228 = vld [vmem:[%s169 + $0x160] sm:$0xff]
      %v229 = vld [vmem:[%s169 + $0x168] sm:$0xf]
      %v230 = vld [vmem:[%s169 + $0x16c] sm:$0xff]
      %v231 = vld [vmem:[%s169 + $0x174] sm:$0xff]
      %v232 = vld [vmem:[%s169 + $0x17c] sm:$0xff]
      %v233 = vld [vmem:[%s169 + $0x184] sm:$0xf]
      %v234 = vld [vmem:[%s169 + $0x188] sm:$0xff]
      %v235 = vld [vmem:[%s169 + $0x190] sm:$0xff]
      %v236 = vld [vmem:[%s169 + $0x198] sm:$0xff]
      %v237 = vld [vmem:[%s169 + $0x1a0] sm:$0xf]
      %v238 = vld [vmem:[%s169 + $0x1a4] sm:$0xff]
      %v239 = vld [vmem:[%s169 + $0x1ac] sm:$0xff]
      %v240 = vld [vmem:[%s169 + $0x1b4] sm:$0xff]
      %v241 = vld [vmem:[%s169 + $0x1bc] sm:$0xf]
      %v242 = vld [vmem:[%s169 + $0x1c0] sm:$0xff]
      %v243 = vld [vmem:[%s169 + $0x1c8] sm:$0xff]
      %v244 = vld [vmem:[%s169 + $0x1d0] sm:$0xff]
      %v245 = vld [vmem:[%s169 + $0x1d8] sm:$0xf]
      %v246 = vld [vmem:[%s169 + $0x1dc] sm:$0xff]
      %v247 = vld [vmem:[%s169 + $0x1e4] sm:$0xff]
      %v248 = vld [vmem:[%s169 + $0x1ec] sm:$0xff]
      %v249 = vld [vmem:[%s169 + $0x1f4] sm:$0xf]
      %v250 = vld [vmem:[%s169 + $0x1f8] sm:$0xff]
      %v251 = vld [vmem:[%s169 + $0x200] sm:$0xff]
      %v252 = vld [vmem:[%s169 + $0x208] sm:$0xff]
      %v253 = vld [vmem:[%s169 + $0x210] sm:$0xf]
      %v254 = vld [vmem:[%s169 + $0x214] sm:$0xff]
      %v255 = vld [vmem:[%s169 + $0x21c] sm:$0xff]
      %v256 = vld [vmem:[%s169 + $0x224] sm:$0xff]
      %v257 = vld [vmem:[%s169 + $0x22c] sm:$0xf]
      %v258 = vld [vmem:[%s169 + $0x230] sm:$0xff]
      %v259 = vld [vmem:[%s169 + $0x238] sm:$0xff]
      %v260 = vld [vmem:[%s169 + $0x240] sm:$0xff]
      %v261 = vld [vmem:[%s169 + $0x248] sm:$0xf]
      %v262 = vld [vmem:[%s169 + $0x24c] sm:$0xff]
      %v263 = vld [vmem:[%s169 + $0x254] sm:$0xff]
      %v264 = vld [vmem:[%s169 + $0x25c] sm:$0xff]
      %v265 = vld [vmem:[%s169 + $0x264] sm:$0xf]
      %v266 = vld [vmem:[%s169 + $0x268] sm:$0xff]
      %v267 = vld [vmem:[%s169 + $0x270] sm:$0xff]
      %v268 = vld [vmem:[%s169 + $0x278] sm:$0xff]
      %v269 = vld [vmem:[%s169 + $0x280] sm:$0xf]
      %v270 = vld [vmem:[%s169 + $0x284] sm:$0xff]
      %v271 = vld [vmem:[%s169 + $0x28c] sm:$0xff]
      %v272 = vld [vmem:[%s169 + $0x294] sm:$0xff]
      %v273 = vld [vmem:[%s169 + $0x29c] sm:$0xf]
      %v274 = vld [vmem:[%s169 + $0x2a0] sm:$0xff]
      %v275 = vld [vmem:[%s169 + $0x2a8] sm:$0xff]
      %v276 = vld [vmem:[%s169 + $0x2b0] sm:$0xff]
      %v277 = vld [vmem:[%s169 + $0x2b8] sm:$0xf]
      %v278 = vld [vmem:[%s169 + $0x2bc] sm:$0xff]
      %v279 = vld [vmem:[%s169 + $0x2c4] sm:$0xff]
      %v280 = vld [vmem:[%s169 + $0x2cc] sm:$0xff]
      %v281 = vld [vmem:[%s169 + $0x2d4] sm:$0xf]
      %v282 = vld [vmem:[%s169 + $0x2d8] sm:$0xff]
      %v283 = vld [vmem:[%s169 + $0x2e0] sm:$0xff]
      %v284 = vld [vmem:[%s169 + $0x2e8] sm:$0xff]
      %v285 = vld [vmem:[%s169 + $0x2f0] sm:$0xf]
      %v286 = vld [vmem:[%s169 + $0x2f4] sm:$0xff]
      %v287 = vld [vmem:[%s169 + $0x2fc] sm:$0xff]
      %v288 = vld [vmem:[%s169 + $0x304] sm:$0xff]
      %v289 = vld [vmem:[%s169 + $0x30c] sm:$0xf]
      %v290 = vld [vmem:[%s169 + $0x310] sm:$0xff]
      %v291 = vld [vmem:[%s169 + $0x318] sm:$0xff]
      %v292 = vld [vmem:[%s169 + $0x320] sm:$0xff]
      %v293 = vld [vmem:[%s169 + $0x328] sm:$0xf]
      %v294 = vld [vmem:[%s169 + $0x32c] sm:$0xff]
      %v295 = vld [vmem:[%s169 + $0x334] sm:$0xff]
      %v296 = vld [vmem:[%s169 + $0x33c] sm:$0xff]
      %v297 = vld [vmem:[%s169 + $0x344] sm:$0xf]
      %v298 = vld [vmem:[%s169 + $0x348] sm:$0xff]
      %v299 = vld [vmem:[%s169 + $0x350] sm:$0xff]
      %v300 = vld [vmem:[%s169 + $0x358] sm:$0xff]
      %v301 = vld [vmem:[%s169 + $0x360] sm:$0xf]
      %v302 = vld [vmem:[%s169 + $0x364] sm:$0xff]
      %v303 = vld [vmem:[%s169 + $0x36c] sm:$0xff]
      %v304 = vld [vmem:[%s169 + $0x374] sm:$0xff]
      %v305 = vld [vmem:[%s169 + $0x37c] sm:$0xf]
      %v306 = vld [vmem:[%s1] sm:$0xf]
      %v307 = vld [vmem:[%s1 + $0x4] sm:$0xf]
      %v308 = vld [vmem:[%s1 + $0x8] sm:$0xf]
      %v309 = vld [vmem:[%s1 + $0xc] sm:$0xf]
      %v310 = vld [vmem:[%s1 + $0x10] sm:$0xf]
      %v311 = vld [vmem:[%s1 + $0x14] sm:$0xf]
      %v312 = vld [vmem:[%s1 + $0x18] sm:$0xf]
      %v313 = vld [vmem:[%s1 + $0x1c] sm:$0xf]
      %v314 = vld [vmem:[%s1 + $0x20] sm:$0xf]
      %v315 = vld [vmem:[%s1 + $0x24] sm:$0xf]
      %v316 = vld [vmem:[%s1 + $0x28] sm:$0xf]
      %v317 = vld [vmem:[%s1 + $0x2c] sm:$0xf]
      %v318 = vld [vmem:[%s1 + $0x30] sm:$0xf]
      %v319 = vld [vmem:[%s1 + $0x34] sm:$0xf]
      %v320 = vld [vmem:[%s1 + $0x38] sm:$0xf]
      %v321 = vld [vmem:[%s1 + $0x3c] sm:$0xf]
      %v322 = vld [vmem:[%s1 + $0x40] sm:$0xf]
      %v323 = vld [vmem:[%s1 + $0x44] sm:$0xf]
      %v324 = vld [vmem:[%s1 + $0x48] sm:$0xf]
      %v325 = vld [vmem:[%s1 + $0x4c] sm:$0xf]
      %v326 = vld [vmem:[%s1 + $0x50] sm:$0xf]
      %v327 = vld [vmem:[%s1 + $0x54] sm:$0xf]
      %v328 = vld [vmem:[%s1 + $0x58] sm:$0xf]
      %v329 = vld [vmem:[%s1 + $0x5c] sm:$0xf]
      %v330 = vld [vmem:[%s1 + $0x60] sm:$0xf]
      %v331 = vld [vmem:[%s1 + $0x64] sm:$0xf]
      %v332 = vld [vmem:[%s1 + $0x68] sm:$0xf]
      %v333 = vld [vmem:[%s1 + $0x6c] sm:$0xf]
      %v334 = vld [vmem:[%s1 + $0x70] sm:$0xf]
      %v335 = vld [vmem:[%s1 + $0x74] sm:$0xf]
      %v336 = vld [vmem:[%s1 + $0x78] sm:$0xf]
      %v337 = vld [vmem:[%s1 + $0x7c] sm:$0xf]
      %v338 = vld [vmem:[%s1 + $0x80] sm:$0xf]
      %v339 = vld [vmem:[%s1 + $0x84] sm:$0xf]
      %v340 = vld [vmem:[%s1 + $0x88] sm:$0xf]
      %v341 = vld [vmem:[%s1 + $0x8c] sm:$0xf]
      %v342 = vld [vmem:[%s1 + $0x90] sm:$0xf]
      %v343 = vld [vmem:[%s1 + $0x94] sm:$0xf]
      %v344 = vld [vmem:[%s1 + $0x98] sm:$0xf]
      %v345 = vld [vmem:[%s1 + $0x9c] sm:$0xf]
      %v346 = vld [vmem:[%s1 + $0xa0] sm:$0xf]
      %v347 = vld [vmem:[%s1 + $0xa4] sm:$0xf]
      %v348 = vld [vmem:[%s1 + $0xa8] sm:$0xf]
      %v349 = vld [vmem:[%s1 + $0xac] sm:$0xf]
      %v350 = vld [vmem:[%s1 + $0xb0] sm:$0xf]
      %v351 = vld [vmem:[%s1 + $0xb4] sm:$0xf]
      %v352 = vld [vmem:[%s1 + $0xb8] sm:$0xf]
      %v353 = vld [vmem:[%s1 + $0xbc] sm:$0xf]
      %v354 = vld [vmem:[%s1 + $0xc0] sm:$0xf]
      %v355 = vld [vmem:[%s1 + $0xc4] sm:$0xf]
      %v356 = vld [vmem:[%s1 + $0xc8] sm:$0xf]
      %v357 = vld [vmem:[%s1 + $0xcc] sm:$0xf]
      %v358 = vld [vmem:[%s1 + $0xd0] sm:$0xf]
      %v359 = vld [vmem:[%s1 + $0xd4] sm:$0xf]
      %v360 = vld [vmem:[%s1 + $0xd8] sm:$0xf]
      %v361 = vld [vmem:[%s1 + $0xdc] sm:$0xf]
      %v362 = vld [vmem:[%s1 + $0xe0] sm:$0xf]
      %v363 = vld [vmem:[%s1 + $0xe4] sm:$0xf]
      %v364 = vld [vmem:[%s1 + $0xe8] sm:$0xf]
      %v365 = vld [vmem:[%s1 + $0xec] sm:$0xf]
      %v366 = vld [vmem:[%s1 + $0xf0] sm:$0xf]
      %v367 = vld [vmem:[%s1 + $0xf4] sm:$0xf]
      %v368 = vld [vmem:[%s1 + $0xf8] sm:$0xf]
      %v369 = vld [vmem:[%s1 + $0xfc] sm:$0xf]
      %v370 = vld [vmem:[%s1 + $0x100] sm:$0xf]
      %v371 = vld [vmem:[%s1 + $0x104] sm:$0xf]
      %v372 = vld [vmem:[%s1 + $0x108] sm:$0xf]
      %v373 = vld [vmem:[%s1 + $0x10c] sm:$0xf]
      %v374 = vld [vmem:[%s1 + $0x110] sm:$0xf]
      %v375 = vld [vmem:[%s1 + $0x114] sm:$0xf]
      %v376 = vld [vmem:[%s1 + $0x118] sm:$0xf]
      %v377 = vld [vmem:[%s1 + $0x11c] sm:$0xf]
      %v378 = vld [vmem:[%s1 + $0x120] sm:$0xf]
      %v379 = vld [vmem:[%s1 + $0x124] sm:$0xf]
      %v380 = vld [vmem:[%s1 + $0x128] sm:$0xf]
      %v381 = vld [vmem:[%s1 + $0x12c] sm:$0xf]
      %v382 = vld [vmem:[%s1 + $0x130] sm:$0xf]
      %v383 = vld [vmem:[%s1 + $0x134] sm:$0xf]
      %v384 = vld [vmem:[%s1 + $0x138] sm:$0xf]
      %v385 = vld [vmem:[%s1 + $0x13c] sm:$0xf]
      %v386 = vld [vmem:[%s1 + $0x140] sm:$0xf]
      %v387 = vld [vmem:[%s1 + $0x144] sm:$0xf]
      %v388 = vld [vmem:[%s1 + $0x148] sm:$0xf]
      %v389 = vld [vmem:[%s1 + $0x14c] sm:$0xf]
      %v390 = vld [vmem:[%s1 + $0x150] sm:$0xf]
      %v391 = vld [vmem:[%s1 + $0x154] sm:$0xf]
      %v392 = vld [vmem:[%s1 + $0x158] sm:$0xf]
      %v393 = vld [vmem:[%s1 + $0x15c] sm:$0xf]
      %v394 = vld [vmem:[%s1 + $0x160] sm:$0xf]
      %v395 = vld [vmem:[%s1 + $0x164] sm:$0xf]
      %v396 = vld [vmem:[%s1 + $0x168] sm:$0xf]
      %v397 = vld [vmem:[%s1 + $0x16c] sm:$0xf]
      %v398 = vld [vmem:[%s1 + $0x170] sm:$0xf]
      %v399 = vld [vmem:[%s1 + $0x174] sm:$0xf]
      %v400 = vld [vmem:[%s1 + $0x178] sm:$0xf]
      %v401 = vld [vmem:[%s1 + $0x17c] sm:$0xf]
      %v402 = vld [vmem:[%s1 + $0x180] sm:$0xf]
      %v403 = vld [vmem:[%s1 + $0x184] sm:$0xf]
      %v404 = vld [vmem:[%s2] sm:$0x1]
      %v406 = vperm.slane %v404, 0
      %v536 = vunpack.c.l.b16 %v178
      %v537 = vunpack.c.h.b16 %v178
      %v538 = vunpack.c.l.b16 %v179
      %v539 = vunpack.c.h.b16 %v179
      %v540 = vunpack.c.l.b16 %v180
      %v541 = vunpack.c.h.b16 %v180
      %v542 = vunpack.c.l.b16 %v181
      %v543 = vunpack.c.l.b16 %v182
      %v544 = vunpack.c.h.b16 %v182
      %v545 = vunpack.c.l.b16 %v183
      %v546 = vunpack.c.h.b16 %v183
      %v547 = vunpack.c.l.b16 %v184
      %v548 = vunpack.c.h.b16 %v184
      %v549 = vunpack.c.l.b16 %v185
      %v550 = vunpack.c.l.b16 %v186
      %v551 = vunpack.c.h.b16 %v186
      %v552 = vunpack.c.l.b16 %v187
      %v553 = vunpack.c.h.b16 %v187
      %v554 = vunpack.c.l.b16 %v188
      %v555 = vunpack.c.h.b16 %v188
      %v556 = vunpack.c.l.b16 %v189
      %v557 = vunpack.c.l.b16 %v190
      %v558 = vunpack.c.h.b16 %v190
      %v559 = vunpack.c.l.b16 %v191
      %v560 = vunpack.c.h.b16 %v191
      %v561 = vunpack.c.l.b16 %v192
      %v562 = vunpack.c.h.b16 %v192
      %v563 = vunpack.c.l.b16 %v193
      %v564 = vunpack.c.l.b16 %v194
      %v565 = vunpack.c.h.b16 %v194
      %v566 = vunpack.c.l.b16 %v195
      %v567 = vunpack.c.h.b16 %v195
      %v568 = vunpack.c.l.b16 %v196
      %v569 = vunpack.c.h.b16 %v196
      %v570 = vunpack.c.l.b16 %v197
      %v571 = vunpack.c.l.b16 %v198
      %v572 = vunpack.c.h.b16 %v198
      %v573 = vunpack.c.l.b16 %v199
      %v574 = vunpack.c.h.b16 %v199
      %v575 = vunpack.c.l.b16 %v200
      %v576 = vunpack.c.h.b16 %v200
      %v577 = vunpack.c.l.b16 %v201
      %v578 = vunpack.c.l.b16 %v202
      %v579 = vunpack.c.h.b16 %v202
      %v580 = vunpack.c.l.b16 %v203
      %v581 = vunpack.c.h.b16 %v203
      %v582 = vunpack.c.l.b16 %v204
      %v583 = vunpack.c.h.b16 %v204
      %v584 = vunpack.c.l.b16 %v205
      %v585 = vunpack.c.l.b16 %v206
      %v586 = vunpack.c.h.b16 %v206
      %v587 = vunpack.c.l.b16 %v207
      %v588 = vunpack.c.h.b16 %v207
      %v589 = vunpack.c.l.b16 %v208
      %v590 = vunpack.c.h.b16 %v208
      %v591 = vunpack.c.l.b16 %v209
      %v592 = vunpack.c.l.b16 %v210
      %v593 = vunpack.c.h.b16 %v210
      %v594 = vunpack.c.l.b16 %v211
      %v595 = vunpack.c.h.b16 %v211
      %v596 = vunpack.c.l.b16 %v212
      %v597 = vunpack.c.h.b16 %v212
      %v598 = vunpack.c.l.b16 %v213
      %v599 = vunpack.c.l.b16 %v214
      %v600 = vunpack.c.h.b16 %v214
      %v601 = vunpack.c.l.b16 %v215
      %v602 = vunpack.c.h.b16 %v215
      %v603 = vunpack.c.l.b16 %v216
      %v604 = vunpack.c.h.b16 %v216
      %v605 = vunpack.c.l.b16 %v217
      %v606 = vunpack.c.l.b16 %v218
      %v607 = vunpack.c.h.b16 %v218
      %v608 = vunpack.c.l.b16 %v219
      %v609 = vunpack.c.h.b16 %v219
      %v610 = vunpack.c.l.b16 %v220
      %v611 = vunpack.c.h.b16 %v220
      %v612 = vunpack.c.l.b16 %v221
      %v613 = vunpack.c.l.b16 %v222
      %v614 = vunpack.c.h.b16 %v222
      %v615 = vunpack.c.l.b16 %v223
      %v616 = vunpack.c.h.b16 %v223
      %v617 = vunpack.c.l.b16 %v224
      %v618 = vunpack.c.h.b16 %v224
      %v619 = vunpack.c.l.b16 %v225
      %v620 = vunpack.c.l.b16 %v226
      %v621 = vunpack.c.h.b16 %v226
      %v622 = vunpack.c.l.b16 %v227
      %v623 = vunpack.c.h.b16 %v227
      %v624 = vunpack.c.l.b16 %v228
      %v625 = vunpack.c.h.b16 %v228
      %v626 = vunpack.c.l.b16 %v229
      %v627 = vunpack.c.l.b16 %v230
      %v628 = vunpack.c.h.b16 %v230
      %v629 = vunpack.c.l.b16 %v231
      %v630 = vunpack.c.h.b16 %v231
      %v631 = vunpack.c.l.b16 %v232
      %v632 = vunpack.c.h.b16 %v232
      %v633 = vunpack.c.l.b16 %v233
      %v634 = vunpack.c.l.b16 %v234
      %v635 = vunpack.c.h.b16 %v234
      %v636 = vunpack.c.l.b16 %v235
      %v637 = vunpack.c.h.b16 %v235
      %v638 = vunpack.c.l.b16 %v236
      %v639 = vunpack.c.h.b16 %v236
      %v640 = vunpack.c.l.b16 %v237
      %v641 = vunpack.c.l.b16 %v238
      %v642 = vunpack.c.h.b16 %v238
      %v643 = vunpack.c.l.b16 %v239
      %v644 = vunpack.c.h.b16 %v239
      %v645 = vunpack.c.l.b16 %v240
      %v646 = vunpack.c.h.b16 %v240
      %v647 = vunpack.c.l.b16 %v241
      %v648 = vunpack.c.l.b16 %v242
      %v649 = vunpack.c.h.b16 %v242
      %v650 = vunpack.c.l.b16 %v243
      %v651 = vunpack.c.h.b16 %v243
      %v652 = vunpack.c.l.b16 %v244
      %v653 = vunpack.c.h.b16 %v244
      %v654 = vunpack.c.l.b16 %v245
      %v655 = vunpack.c.l.b16 %v246
      %v656 = vunpack.c.h.b16 %v246
      %v657 = vunpack.c.l.b16 %v247
      %v658 = vunpack.c.h.b16 %v247
      %v659 = vunpack.c.l.b16 %v248
      %v660 = vunpack.c.h.b16 %v248
      %v661 = vunpack.c.l.b16 %v249
      %v662 = vunpack.c.l.b16 %v250
      %v663 = vunpack.c.h.b16 %v250
      %v664 = vunpack.c.l.b16 %v251
      %v665 = vunpack.c.h.b16 %v251
      %v666 = vunpack.c.l.b16 %v252
      %v667 = vunpack.c.h.b16 %v252
      %v668 = vunpack.c.l.b16 %v253
      %v669 = vunpack.c.l.b16 %v254
      %v670 = vunpack.c.h.b16 %v254
      %v671 = vunpack.c.l.b16 %v255
      %v672 = vunpack.c.h.b16 %v255
      %v673 = vunpack.c.l.b16 %v256
      %v674 = vunpack.c.h.b16 %v256
      %v675 = vunpack.c.l.b16 %v257
      %v676 = vunpack.c.l.b16 %v258
      %v677 = vunpack.c.h.b16 %v258
      %v678 = vunpack.c.l.b16 %v259
      %v679 = vunpack.c.h.b16 %v259
      %v680 = vunpack.c.l.b16 %v260
      %v681 = vunpack.c.h.b16 %v260
      %v682 = vunpack.c.l.b16 %v261
      %v683 = vunpack.c.l.b16 %v262
      %v684 = vunpack.c.h.b16 %v262
      %v685 = vunpack.c.l.b16 %v263
      %v686 = vunpack.c.h.b16 %v263
      %v687 = vunpack.c.l.b16 %v264
      %v688 = vunpack.c.h.b16 %v264
      %v689 = vunpack.c.l.b16 %v265
      %v690 = vunpack.c.l.b16 %v266
      %v691 = vunpack.c.h.b16 %v266
      %v692 = vunpack.c.l.b16 %v267
      %v693 = vunpack.c.h.b16 %v267
      %v694 = vunpack.c.l.b16 %v268
      %v695 = vunpack.c.h.b16 %v268
      %v696 = vunpack.c.l.b16 %v269
      %v697 = vunpack.c.l.b16 %v270
      %v698 = vunpack.c.h.b16 %v270
      %v699 = vunpack.c.l.b16 %v271
      %v700 = vunpack.c.h.b16 %v271
      %v701 = vunpack.c.l.b16 %v272
      %v702 = vunpack.c.h.b16 %v272
      %v703 = vunpack.c.l.b16 %v273
      %v704 = vunpack.c.l.b16 %v274
      %v705 = vunpack.c.h.b16 %v274
      %v706 = vunpack.c.l.b16 %v275
      %v707 = vunpack.c.h.b16 %v275
      %v708 = vunpack.c.l.b16 %v276
      %v709 = vunpack.c.h.b16 %v276
      %v710 = vunpack.c.l.b16 %v277
      %v711 = vunpack.c.l.b16 %v278
      %v712 = vunpack.c.h.b16 %v278
      %v713 = vunpack.c.l.b16 %v279
      %v714 = vunpack.c.h.b16 %v279
      %v715 = vunpack.c.l.b16 %v280
      %v716 = vunpack.c.h.b16 %v280
      %v717 = vunpack.c.l.b16 %v281
      %v718 = vunpack.c.l.b16 %v282
      %v719 = vunpack.c.h.b16 %v282
      %v720 = vunpack.c.l.b16 %v283
      %v721 = vunpack.c.h.b16 %v283
      %v722 = vunpack.c.l.b16 %v284
      %v723 = vunpack.c.h.b16 %v284
      %v724 = vunpack.c.l.b16 %v285
      %v725 = vunpack.c.l.b16 %v286
      %v726 = vunpack.c.h.b16 %v286
      %v727 = vunpack.c.l.b16 %v287
      %v728 = vunpack.c.h.b16 %v287
      %v729 = vunpack.c.l.b16 %v288
      %v730 = vunpack.c.h.b16 %v288
      %v731 = vunpack.c.l.b16 %v289
      %v732 = vunpack.c.l.b16 %v290
      %v733 = vunpack.c.h.b16 %v290
      %v734 = vunpack.c.l.b16 %v291
      %v735 = vunpack.c.h.b16 %v291
      %v736 = vunpack.c.l.b16 %v292
      %v737 = vunpack.c.h.b16 %v292
      %v738 = vunpack.c.l.b16 %v293
      %v739 = vunpack.c.l.b16 %v294
      %v740 = vunpack.c.h.b16 %v294
      %v741 = vunpack.c.l.b16 %v295
      %v742 = vunpack.c.h.b16 %v295
      %v743 = vunpack.c.l.b16 %v296
      %v744 = vunpack.c.h.b16 %v296
      %v745 = vunpack.c.l.b16 %v297
      %v746 = vunpack.c.l.b16 %v298
      %v747 = vunpack.c.h.b16 %v298
      %v748 = vunpack.c.l.b16 %v299
      %v749 = vunpack.c.h.b16 %v299
      %v750 = vunpack.c.l.b16 %v300
      %v751 = vunpack.c.h.b16 %v300
      %v752 = vunpack.c.l.b16 %v301
      %v753 = vunpack.c.l.b16 %v302
      %v754 = vunpack.c.h.b16 %v302
      %v755 = vunpack.c.l.b16 %v303
      %v756 = vunpack.c.h.b16 %v303
      %v757 = vunpack.c.l.b16 %v304
      %v758 = vunpack.c.h.b16 %v304
      %v759 = vunpack.c.l.b16 %v305
      %v760 = vpack.c.b16 %v543, %v536
      %v761 = vpack.c.b16 %v544, %v537
      %v762 = vpack.c.b16 %v545, %v538
      %v763 = vpack.c.b16 %v546, %v539
      %v764 = vpack.c.b16 %v547, %v540
      %v765 = vpack.c.b16 %v548, %v541
      %v766 = vpack.c.b16 %v549, %v542
      %v767 = vpack.c.b16 %v557, %v550
      %v768 = vpack.c.b16 %v558, %v551
      %v769 = vpack.c.b16 %v559, %v552
      %v770 = vpack.c.b16 %v560, %v553
      %v771 = vpack.c.b16 %v561, %v554
      %v772 = vpack.c.b16 %v562, %v555
      %v773 = vpack.c.b16 %v563, %v556
      %v774 = vpack.c.b16 %v571, %v564
      %v775 = vpack.c.b16 %v572, %v565
      %v776 = vpack.c.b16 %v573, %v566
      %v777 = vpack.c.b16 %v574, %v567
      %v778 = vpack.c.b16 %v575, %v568
      %v779 = vpack.c.b16 %v576, %v569
      %v780 = vpack.c.b16 %v577, %v570
      %v781 = vpack.c.b16 %v585, %v578
      %v782 = vpack.c.b16 %v586, %v579
      %v783 = vpack.c.b16 %v587, %v580
      %v784 = vpack.c.b16 %v588, %v581
      %v785 = vpack.c.b16 %v589, %v582
      %v786 = vpack.c.b16 %v590, %v583
      %v787 = vpack.c.b16 %v591, %v584
      %v788 = vpack.c.b16 %v599, %v592
      %v789 = vpack.c.b16 %v600, %v593
      %v790 = vpack.c.b16 %v601, %v594
      %v791 = vpack.c.b16 %v602, %v595
      %v792 = vpack.c.b16 %v603, %v596
      %v793 = vpack.c.b16 %v604, %v597
      %v794 = vpack.c.b16 %v605, %v598
      %v795 = vpack.c.b16 %v613, %v606
      %v796 = vpack.c.b16 %v614, %v607
      %v797 = vpack.c.b16 %v615, %v608
      %v798 = vpack.c.b16 %v616, %v609
      %v799 = vpack.c.b16 %v617, %v610
      %v800 = vpack.c.b16 %v618, %v611
      %v801 = vpack.c.b16 %v619, %v612
      %v802 = vpack.c.b16 %v627, %v620
      %v803 = vpack.c.b16 %v628, %v621
      %v804 = vpack.c.b16 %v629, %v622
      %v805 = vpack.c.b16 %v630, %v623
      %v806 = vpack.c.b16 %v631, %v624
      %v807 = vpack.c.b16 %v632, %v625
      %v808 = vpack.c.b16 %v633, %v626
      %v809 = vpack.c.b16 %v641, %v634
      %v810 = vpack.c.b16 %v642, %v635
      %v811 = vpack.c.b16 %v643, %v636
      %v812 = vpack.c.b16 %v644, %v637
      %v813 = vpack.c.b16 %v645, %v638
      %v814 = vpack.c.b16 %v646, %v639
      %v815 = vpack.c.b16 %v647, %v640
      %v816 = vpack.c.b16 %v655, %v648
      %v817 = vpack.c.b16 %v656, %v649
      %v818 = vpack.c.b16 %v657, %v650
      %v819 = vpack.c.b16 %v658, %v651
      %v820 = vpack.c.b16 %v659, %v652
      %v821 = vpack.c.b16 %v660, %v653
      %v822 = vpack.c.b16 %v661, %v654
      %v823 = vpack.c.b16 %v669, %v662
      %v824 = vpack.c.b16 %v670, %v663
      %v825 = vpack.c.b16 %v671, %v664
      %v826 = vpack.c.b16 %v672, %v665
      %v827 = vpack.c.b16 %v673, %v666
      %v828 = vpack.c.b16 %v674, %v667
      %v829 = vpack.c.b16 %v675, %v668
      %v830 = vpack.c.b16 %v683, %v676
      %v831 = vpack.c.b16 %v684, %v677
      %v832 = vpack.c.b16 %v685, %v678
      %v833 = vpack.c.b16 %v686, %v679
      %v834 = vpack.c.b16 %v687, %v680
      %v835 = vpack.c.b16 %v688, %v681
      %v836 = vpack.c.b16 %v689, %v682
      %v837 = vpack.c.b16 %v697, %v690
      %v838 = vpack.c.b16 %v698, %v691
      %v839 = vpack.c.b16 %v699, %v692
      %v840 = vpack.c.b16 %v700, %v693
      %v841 = vpack.c.b16 %v701, %v694
      %v842 = vpack.c.b16 %v702, %v695
      %v843 = vpack.c.b16 %v703, %v696
      %v844 = vpack.c.b16 %v711, %v704
      %v845 = vpack.c.b16 %v712, %v705
      %v846 = vpack.c.b16 %v713, %v706
      %v847 = vpack.c.b16 %v714, %v707
      %v848 = vpack.c.b16 %v715, %v708
      %v849 = vpack.c.b16 %v716, %v709
      %v850 = vpack.c.b16 %v717, %v710
      %v851 = vpack.c.b16 %v725, %v718
      %v852 = vpack.c.b16 %v726, %v719
      %v853 = vpack.c.b16 %v727, %v720
      %v854 = vpack.c.b16 %v728, %v721
      %v855 = vpack.c.b16 %v729, %v722
      %v856 = vpack.c.b16 %v730, %v723
      %v857 = vpack.c.b16 %v731, %v724
      %v858 = vpack.c.b16 %v739, %v732
      %v859 = vpack.c.b16 %v740, %v733
      %v860 = vpack.c.b16 %v741, %v734
      %v861 = vpack.c.b16 %v742, %v735
      %v862 = vpack.c.b16 %v743, %v736
      %v863 = vpack.c.b16 %v744, %v737
      %v864 = vpack.c.b16 %v745, %v738
      %v865 = vpack.c.b16 %v753, %v746
      %v866 = vpack.c.b16 %v754, %v747
      %v867 = vpack.c.b16 %v755, %v748
      %v868 = vpack.c.b16 %v756, %v749
      %v869 = vpack.c.b16 %v757, %v750
      %v870 = vpack.c.b16 %v758, %v751
      %v871 = vpack.c.b16 %v759, %v752
      %v1066 = vunpack.c.l.b16 %v306
      %v1067 = vunpack.c.l.b16 %v307
      %v1068 = vunpack.c.l.b16 %v308
      %v1069 = vunpack.c.l.b16 %v309
      %v1070 = vunpack.c.l.b16 %v310
      %v1071 = vunpack.c.l.b16 %v311
      %v1072 = vunpack.c.l.b16 %v312
      %v1073 = vunpack.c.l.b16 %v313
      %v1074 = vunpack.c.l.b16 %v314
      %v1075 = vunpack.c.l.b16 %v315
      %v1076 = vunpack.c.l.b16 %v316
      %v1077 = vunpack.c.l.b16 %v317
      %v1078 = vunpack.c.l.b16 %v318
      %v1079 = vunpack.c.l.b16 %v319
      %v1080 = vunpack.c.l.b16 %v320
      %v1081 = vunpack.c.l.b16 %v321
      %v1082 = vunpack.c.l.b16 %v322
      %v1083 = vunpack.c.l.b16 %v323
      %v1084 = vunpack.c.l.b16 %v324
      %v1085 = vunpack.c.l.b16 %v325
      %v1086 = vunpack.c.l.b16 %v326
      %v1087 = vunpack.c.l.b16 %v327
      %v1088 = vunpack.c.l.b16 %v328
      %v1089 = vunpack.c.l.b16 %v329
      %v1090 = vunpack.c.l.b16 %v330
      %v1091 = vunpack.c.l.b16 %v331
      %v1092 = vunpack.c.l.b16 %v332
      %v1093 = vunpack.c.l.b16 %v333
      %v1094 = vunpack.c.l.b16 %v334
      %v1095 = vunpack.c.l.b16 %v335
      %v1096 = vunpack.c.l.b16 %v336
      %v1097 = vunpack.c.l.b16 %v337
      %v1098 = vunpack.c.l.b16 %v338
      %v1099 = vunpack.c.l.b16 %v339
      %v1100 = vunpack.c.l.b16 %v340
      %v1101 = vunpack.c.l.b16 %v341
      %v1102 = vunpack.c.l.b16 %v342
      %v1103 = vunpack.c.l.b16 %v343
      %v1104 = vunpack.c.l.b16 %v344
      %v1105 = vunpack.c.l.b16 %v345
      %v1106 = vunpack.c.l.b16 %v346
      %v1107 = vunpack.c.l.b16 %v347
      %v1108 = vunpack.c.l.b16 %v348
      %v1109 = vunpack.c.l.b16 %v349
      %v1110 = vunpack.c.l.b16 %v350
      %v1111 = vunpack.c.l.b16 %v351
      %v1112 = vunpack.c.l.b16 %v352
      %v1113 = vunpack.c.l.b16 %v353
      %v1114 = vunpack.c.l.b16 %v354
      %v1115 = vunpack.c.l.b16 %v355
      %v1116 = vunpack.c.l.b16 %v356
      %v1117 = vunpack.c.l.b16 %v357
      %v1118 = vunpack.c.l.b16 %v358
      %v1119 = vunpack.c.l.b16 %v359
      %v1120 = vunpack.c.l.b16 %v360
      %v1121 = vunpack.c.l.b16 %v361
      %v1122 = vunpack.c.l.b16 %v362
      %v1123 = vunpack.c.l.b16 %v363
      %v1124 = vunpack.c.l.b16 %v364
      %v1125 = vunpack.c.l.b16 %v365
      %v1126 = vunpack.c.l.b16 %v366
      %v1127 = vunpack.c.l.b16 %v367
      %v1128 = vunpack.c.l.b16 %v368
      %v1129 = vunpack.c.l.b16 %v369
      %v1130 = vunpack.c.l.b16 %v370
      %v1131 = vunpack.c.l.b16 %v371
      %v1132 = vunpack.c.l.b16 %v372
      %v1133 = vunpack.c.l.b16 %v373
      %v1134 = vunpack.c.l.b16 %v374
      %v1135 = vunpack.c.l.b16 %v375
      %v1136 = vunpack.c.l.b16 %v376
      %v1137 = vunpack.c.l.b16 %v377
      %v1138 = vunpack.c.l.b16 %v378
      %v1139 = vunpack.c.l.b16 %v379
      %v1140 = vunpack.c.l.b16 %v380
      %v1141 = vunpack.c.l.b16 %v381
      %v1142 = vunpack.c.l.b16 %v382
      %v1143 = vunpack.c.l.b16 %v383
      %v1144 = vunpack.c.l.b16 %v384
      %v1145 = vunpack.c.l.b16 %v385
      %v1146 = vunpack.c.l.b16 %v386
      %v1147 = vunpack.c.l.b16 %v387
      %v1148 = vunpack.c.l.b16 %v388
      %v1149 = vunpack.c.l.b16 %v389
      %v1150 = vunpack.c.l.b16 %v390
      %v1151 = vunpack.c.l.b16 %v391
      %v1152 = vunpack.c.l.b16 %v392
      %v1153 = vunpack.c.l.b16 %v393
      %v1154 = vunpack.c.l.b16 %v394
      %v1155 = vunpack.c.l.b16 %v395
      %v1156 = vunpack.c.l.b16 %v396
      %v1157 = vunpack.c.l.b16 %v397
      %v1158 = vunpack.c.l.b16 %v398
      %v1159 = vunpack.c.l.b16 %v399
      %v1160 = vunpack.c.l.b16 %v400
      %v1161 = vunpack.c.l.b16 %v401
      %v1162 = vunpack.c.l.b16 %v402
      %v1163 = vunpack.c.l.b16 %v403
      %v1164 = vpack.c.b16 %v1067, %v1066
      %v1165 = vpack.c.b16 %v1069, %v1068
      %v1166 = vpack.c.b16 %v1071, %v1070
      %v1167 = vpack.c.b16 %v1073, %v1072
      %v1168 = vpack.c.b16 %v1075, %v1074
      %v1169 = vpack.c.b16 %v1077, %v1076
      %v1170 = vpack.c.b16 %v1079, %v1078
      %v1171 = vpack.c.b16 %v1081, %v1080
      %v1172 = vpack.c.b16 %v1083, %v1082
      %v1173 = vpack.c.b16 %v1085, %v1084
      %v1174 = vpack.c.b16 %v1087, %v1086
      %v1175 = vpack.c.b16 %v1089, %v1088
      %v1176 = vpack.c.b16 %v1091, %v1090
      %v1177 = vpack.c.b16 %v1093, %v1092
      %v1178 = vpack.c.b16 %v1095, %v1094
      %v1179 = vpack.c.b16 %v1097, %v1096
      %v1180 = vpack.c.b16 %v1099, %v1098
      %v1181 = vpack.c.b16 %v1101, %v1100
      %v1182 = vpack.c.b16 %v1103, %v1102
      %v1183 = vpack.c.b16 %v1105, %v1104
      %v1184 = vpack.c.b16 %v1107, %v1106
      %v1185 = vpack.c.b16 %v1109, %v1108
      %v1186 = vpack.c.b16 %v1111, %v1110
      %v1187 = vpack.c.b16 %v1113, %v1112
      %v1188 = vpack.c.b16 %v1115, %v1114
      %v1189 = vpack.c.b16 %v1117, %v1116
      %v1190 = vpack.c.b16 %v1119, %v1118
      %v1191 = vpack.c.b16 %v1121, %v1120
      %v1192 = vpack.c.b16 %v1123, %v1122
      %v1193 = vpack.c.b16 %v1125, %v1124
      %v1194 = vpack.c.b16 %v1127, %v1126
      %v1195 = vpack.c.b16 %v1129, %v1128
      %v1196 = vpack.c.b16 %v1131, %v1130
      %v1197 = vpack.c.b16 %v1133, %v1132
      %v1198 = vpack.c.b16 %v1135, %v1134
      %v1199 = vpack.c.b16 %v1137, %v1136
      %v1200 = vpack.c.b16 %v1139, %v1138
      %v1201 = vpack.c.b16 %v1141, %v1140
      %v1202 = vpack.c.b16 %v1143, %v1142
      %v1203 = vpack.c.b16 %v1145, %v1144
      %v1204 = vpack.c.b16 %v1147, %v1146
      %v1205 = vpack.c.b16 %v1149, %v1148
      %v1206 = vpack.c.b16 %v1151, %v1150
      %v1207 = vpack.c.b16 %v1153, %v1152
      %v1208 = vpack.c.b16 %v1155, %v1154
      %v1209 = vpack.c.b16 %v1157, %v1156
      %v1210 = vpack.c.b16 %v1159, %v1158
      %v1211 = vpack.c.b16 %v1161, %v1160
      %v1212 = vpack.c.b16 %v1163, %v1162
      %vm1262 = vcmask 130048
      %v1264 = vsel %vm1262, %v766, 0
      %v1267 = vsel %vm1262, %v773, 0
      %v1270 = vsel %vm1262, %v780, 0
      %v1273 = vsel %vm1262, %v787, 0
      %v1276 = vsel %vm1262, %v794, 0
      %v1279 = vsel %vm1262, %v801, 0
      %v1282 = vsel %vm1262, %v808, 0
      %v1285 = vsel %vm1262, %v815, 0
      %v1288 = vsel %vm1262, %v822, 0
      %v1291 = vsel %vm1262, %v829, 0
      %v1294 = vsel %vm1262, %v836, 0
      %v1297 = vsel %vm1262, %v843, 0
      %v1300 = vsel %vm1262, %v850, 0
      %v1303 = vsel %vm1262, %v857, 0
      %v1306 = vsel %vm1262, %v864, 0
      %v1309 = vsel %vm1262, %v871, 0
      %1311 = vmatpush.bf16.msra.mxu0 %v1171
      %1312 = vmatpush.bf16.msra.mxu0 %v1170
      %1313 = vmatpush.bf16.msra.mxu0 %v1169
      %1314 = vmatpush.bf16.msra.mxu0 %v1168
      %1315 = vmatpush.bf16.msra.mxu0 %v1167
      %1316 = vmatpush.bf16.msra.mxu0 %v1166
      %1317 = vmatpush.bf16.msra.mxu0 %v1165
      %1318 = vmatpush.bf16.msra.mxu0 %v1164
      %1319 = vmatmul.bf16.gmra.mxu0 %v760
      %v1320 = vpop.f32.mrf.mxu0
      %v1321 = vadd.f32 %v406, %v1320
      %v1322 = vpop.f32.mrf.mxu0
      %v1323 = vadd.f32 %v406, %v1322
      %1324 = vmatmul.bf16.gmra.mxu0 %v767
      %v1325 = vpop.f32.mrf.mxu0
      %v1326 = vadd.f32 %v406, %v1325
      %v1327 = vpop.f32.mrf.mxu0
      %v1328 = vadd.f32 %v406, %v1327
      %1329 = vmatmul.bf16.gmra.mxu0 %v774
      %v1330 = vpop.f32.mrf.mxu0
      %v1331 = vadd.f32 %v406, %v1330
      %v1332 = vpop.f32.mrf.mxu0
      %v1333 = vadd.f32 %v406, %v1332
      %1334 = vmatmul.bf16.gmra.mxu0 %v781
      %v1335 = vpop.f32.mrf.mxu0
      %v1336 = vadd.f32 %v406, %v1335
      %v1337 = vpop.f32.mrf.mxu0
      %v1338 = vadd.f32 %v406, %v1337
      %1339 = vmatmul.bf16.gmra.mxu0 %v788
      %v1340 = vpop.f32.mrf.mxu0
      %v1341 = vadd.f32 %v406, %v1340
      %v1342 = vpop.f32.mrf.mxu0
      %v1343 = vadd.f32 %v406, %v1342
      %1344 = vmatmul.bf16.gmra.mxu0 %v795
      %v1345 = vpop.f32.mrf.mxu0
      %v1346 = vadd.f32 %v406, %v1345
      %v1347 = vpop.f32.mrf.mxu0
      %v1348 = vadd.f32 %v406, %v1347
      %1349 = vmatmul.bf16.gmra.mxu0 %v802
      %v1350 = vpop.f32.mrf.mxu0
      %v1351 = vadd.f32 %v406, %v1350
      %v1352 = vpop.f32.mrf.mxu0
      %v1353 = vadd.f32 %v406, %v1352
      %1354 = vmatmul.bf16.gmra.mxu0 %v809
      %v1355 = vpop.f32.mrf.mxu0
      %v1356 = vadd.f32 %v406, %v1355
      %v1357 = vpop.f32.mrf.mxu0
      %v1358 = vadd.f32 %v406, %v1357
      %1359 = vmatmul.bf16.gmra.mxu0 %v816
      %v1360 = vpop.f32.mrf.mxu0
      %v1361 = vadd.f32 %v406, %v1360
      %v1362 = vpop.f32.mrf.mxu0
      %v1363 = vadd.f32 %v406, %v1362
      %1364 = vmatmul.bf16.gmra.mxu0 %v823
      %v1365 = vpop.f32.mrf.mxu0
      %v1366 = vadd.f32 %v406, %v1365
      %v1367 = vpop.f32.mrf.mxu0
      %v1368 = vadd.f32 %v406, %v1367
      %1369 = vmatmul.bf16.gmra.mxu0 %v830
      %v1370 = vpop.f32.mrf.mxu0
      %v1371 = vadd.f32 %v406, %v1370
      %v1372 = vpop.f32.mrf.mxu0
      %v1373 = vadd.f32 %v406, %v1372
      %1374 = vmatmul.bf16.gmra.mxu0 %v837
      %v1375 = vpop.f32.mrf.mxu0
      %v1376 = vadd.f32 %v406, %v1375
      %v1377 = vpop.f32.mrf.mxu0
      %v1378 = vadd.f32 %v406, %v1377
      %1379 = vmatmul.bf16.gmra.mxu0 %v844
      %v1380 = vpop.f32.mrf.mxu0
      %v1381 = vadd.f32 %v406, %v1380
      %v1382 = vpop.f32.mrf.mxu0
      %v1383 = vadd.f32 %v406, %v1382
      %1384 = vmatmul.bf16.gmra.mxu0 %v851
      %v1385 = vpop.f32.mrf.mxu0
      %v1386 = vadd.f32 %v406, %v1385
      %v1387 = vpop.f32.mrf.mxu0
      %v1388 = vadd.f32 %v406, %v1387
      %1389 = vmatmul.bf16.gmra.mxu0 %v858
      %v1390 = vpop.f32.mrf.mxu0
      %v1391 = vadd.f32 %v406, %v1390
      %v1392 = vpop.f32.mrf.mxu0
      %v1393 = vadd.f32 %v406, %v1392
      %1394 = vmatmul.bf16.gmra.mxu0 %v865
      %v1395 = vpop.f32.mrf.mxu0
      %v1396 = vadd.f32 %v406, %v1395
      %v1397 = vpop.f32.mrf.mxu0
      %v1398 = vadd.f32 %v406, %v1397
      %1399 = vdwg.mxu0
      %1400 = vmatpush.bf16.msra.mxu0 %v1179
      %1401 = vmatpush.bf16.msra.mxu0 %v1178
      %1402 = vmatpush.bf16.msra.mxu0 %v1177
      %1403 = vmatpush.bf16.msra.mxu0 %v1176
      %1404 = vmatpush.bf16.msra.mxu0 %v1175
      %1405 = vmatpush.bf16.msra.mxu0 %v1174
      %1406 = vmatpush.bf16.msra.mxu0 %v1173
      %1407 = vmatpush.bf16.msra.mxu0 %v1172
      %1408 = vmatmul.bf16.gmra.mxu0 %v761
      %v1409 = vpop.f32.mrf.mxu0
      %v1410 = vadd.f32 %v1321, %v1409
      %v1411 = vpop.f32.mrf.mxu0
      %v1412 = vadd.f32 %v1323, %v1411
      %1413 = vmatmul.bf16.gmra.mxu0 %v768
      %v1414 = vpop.f32.mrf.mxu0
      %v1415 = vadd.f32 %v1326, %v1414
      %v1416 = vpop.f32.mrf.mxu0
      %v1417 = vadd.f32 %v1328, %v1416
      %1418 = vmatmul.bf16.gmra.mxu0 %v775
      %v1419 = vpop.f32.mrf.mxu0
      %v1420 = vadd.f32 %v1331, %v1419
      %v1421 = vpop.f32.mrf.mxu0
      %v1422 = vadd.f32 %v1333, %v1421
      %1423 = vmatmul.bf16.gmra.mxu0 %v782
      %v1424 = vpop.f32.mrf.mxu0
      %v1425 = vadd.f32 %v1336, %v1424
      %v1426 = vpop.f32.mrf.mxu0
      %v1427 = vadd.f32 %v1338, %v1426
      %1428 = vmatmul.bf16.gmra.mxu0 %v789
      %v1429 = vpop.f32.mrf.mxu0
      %v1430 = vadd.f32 %v1341, %v1429
      %v1431 = vpop.f32.mrf.mxu0
      %v1432 = vadd.f32 %v1343, %v1431
      %1433 = vmatmul.bf16.gmra.mxu0 %v796
      %v1434 = vpop.f32.mrf.mxu0
      %v1435 = vadd.f32 %v1346, %v1434
      %v1436 = vpop.f32.mrf.mxu0
      %v1437 = vadd.f32 %v1348, %v1436
      %1438 = vmatmul.bf16.gmra.mxu0 %v803
      %v1439 = vpop.f32.mrf.mxu0
      %v1440 = vadd.f32 %v1351, %v1439
      %v1441 = vpop.f32.mrf.mxu0
      %v1442 = vadd.f32 %v1353, %v1441
      %1443 = vmatmul.bf16.gmra.mxu0 %v810
      %v1444 = vpop.f32.mrf.mxu0
      %v1445 = vadd.f32 %v1356, %v1444
      %v1446 = vpop.f32.mrf.mxu0
      %v1447 = vadd.f32 %v1358, %v1446
      %1448 = vmatmul.bf16.gmra.mxu0 %v817
      %v1449 = vpop.f32.mrf.mxu0
      %v1450 = vadd.f32 %v1361, %v1449
      %v1451 = vpop.f32.mrf.mxu0
      %v1452 = vadd.f32 %v1363, %v1451
      %1453 = vmatmul.bf16.gmra.mxu0 %v824
      %v1454 = vpop.f32.mrf.mxu0
      %v1455 = vadd.f32 %v1366, %v1454
      %v1456 = vpop.f32.mrf.mxu0
      %v1457 = vadd.f32 %v1368, %v1456
      %1458 = vmatmul.bf16.gmra.mxu0 %v831
      %v1459 = vpop.f32.mrf.mxu0
      %v1460 = vadd.f32 %v1371, %v1459
      %v1461 = vpop.f32.mrf.mxu0
      %v1462 = vadd.f32 %v1373, %v1461
      %1463 = vmatmul.bf16.gmra.mxu0 %v838
      %v1464 = vpop.f32.mrf.mxu0
      %v1465 = vadd.f32 %v1376, %v1464
      %v1466 = vpop.f32.mrf.mxu0
      %v1467 = vadd.f32 %v1378, %v1466
      %1468 = vmatmul.bf16.gmra.mxu0 %v845
      %v1469 = vpop.f32.mrf.mxu0
      %v1470 = vadd.f32 %v1381, %v1469
      %v1471 = vpop.f32.mrf.mxu0
      %v1472 = vadd.f32 %v1383, %v1471
      %1473 = vmatmul.bf16.gmra.mxu0 %v852
      %v1474 = vpop.f32.mrf.mxu0
      %v1475 = vadd.f32 %v1386, %v1474
      %v1476 = vpop.f32.mrf.mxu0
      %v1477 = vadd.f32 %v1388, %v1476
      %1478 = vmatmul.bf16.gmra.mxu0 %v859
      %v1479 = vpop.f32.mrf.mxu0
      %v1480 = vadd.f32 %v1391, %v1479
      %v1481 = vpop.f32.mrf.mxu0
      %v1482 = vadd.f32 %v1393, %v1481
      %1483 = vmatmul.bf16.gmra.mxu0 %v866
      %v1484 = vpop.f32.mrf.mxu0
      %v1485 = vadd.f32 %v1396, %v1484
      %v1486 = vpop.f32.mrf.mxu0
      %v1487 = vadd.f32 %v1398, %v1486
      %1488 = vdwg.mxu0
      %1489 = vmatpush.bf16.msra.mxu0 %v1187
      %1490 = vmatpush.bf16.msra.mxu0 %v1186
      %1491 = vmatpush.bf16.msra.mxu0 %v1185
      %1492 = vmatpush.bf16.msra.mxu0 %v1184
      %1493 = vmatpush.bf16.msra.mxu0 %v1183
      %1494 = vmatpush.bf16.msra.mxu0 %v1182
      %1495 = vmatpush.bf16.msra.mxu0 %v1181
      %1496 = vmatpush.bf16.msra.mxu0 %v1180
      %1497 = vmatmul.bf16.gmra.mxu0 %v762
      %v1498 = vpop.f32.mrf.mxu0
      %v1499 = vadd.f32 %v1410, %v1498
      %v1500 = vpop.f32.mrf.mxu0
      %v1501 = vadd.f32 %v1412, %v1500
      %1502 = vmatmul.bf16.gmra.mxu0 %v769
      %v1503 = vpop.f32.mrf.mxu0
      %v1504 = vadd.f32 %v1415, %v1503
      %v1505 = vpop.f32.mrf.mxu0
      %v1506 = vadd.f32 %v1417, %v1505
      %1507 = vmatmul.bf16.gmra.mxu0 %v776
      %v1508 = vpop.f32.mrf.mxu0
      %v1509 = vadd.f32 %v1420, %v1508
      %v1510 = vpop.f32.mrf.mxu0
      %v1511 = vadd.f32 %v1422, %v1510
      %1512 = vmatmul.bf16.gmra.mxu0 %v783
      %v1513 = vpop.f32.mrf.mxu0
      %v1514 = vadd.f32 %v1425, %v1513
      %v1515 = vpop.f32.mrf.mxu0
      %v1516 = vadd.f32 %v1427, %v1515
      %1517 = vmatmul.bf16.gmra.mxu0 %v790
      %v1518 = vpop.f32.mrf.mxu0
      %v1519 = vadd.f32 %v1430, %v1518
      %v1520 = vpop.f32.mrf.mxu0
      %v1521 = vadd.f32 %v1432, %v1520
      %1522 = vmatmul.bf16.gmra.mxu0 %v797
      %v1523 = vpop.f32.mrf.mxu0
      %v1524 = vadd.f32 %v1435, %v1523
      %v1525 = vpop.f32.mrf.mxu0
      %v1526 = vadd.f32 %v1437, %v1525
      %1527 = vmatmul.bf16.gmra.mxu0 %v804
      %v1528 = vpop.f32.mrf.mxu0
      %v1529 = vadd.f32 %v1440, %v1528
      %v1530 = vpop.f32.mrf.mxu0
      %v1531 = vadd.f32 %v1442, %v1530
      %1532 = vmatmul.bf16.gmra.mxu0 %v811
      %v1533 = vpop.f32.mrf.mxu0
      %v1534 = vadd.f32 %v1445, %v1533
      %v1535 = vpop.f32.mrf.mxu0
      %v1536 = vadd.f32 %v1447, %v1535
      %1537 = vmatmul.bf16.gmra.mxu0 %v818
      %v1538 = vpop.f32.mrf.mxu0
      %v1539 = vadd.f32 %v1450, %v1538
      %v1540 = vpop.f32.mrf.mxu0
      %v1541 = vadd.f32 %v1452, %v1540
      %1542 = vmatmul.bf16.gmra.mxu0 %v825
      %v1543 = vpop.f32.mrf.mxu0
      %v1544 = vadd.f32 %v1455, %v1543
      %v1545 = vpop.f32.mrf.mxu0
      %v1546 = vadd.f32 %v1457, %v1545
      %1547 = vmatmul.bf16.gmra.mxu0 %v832
      %v1548 = vpop.f32.mrf.mxu0
      %v1549 = vadd.f32 %v1460, %v1548
      %v1550 = vpop.f32.mrf.mxu0
      %v1551 = vadd.f32 %v1462, %v1550
      %1552 = vmatmul.bf16.gmra.mxu0 %v839
      %v1553 = vpop.f32.mrf.mxu0
      %v1554 = vadd.f32 %v1465, %v1553
      %v1555 = vpop.f32.mrf.mxu0
      %v1556 = vadd.f32 %v1467, %v1555
      %1557 = vmatmul.bf16.gmra.mxu0 %v846
      %v1558 = vpop.f32.mrf.mxu0
      %v1559 = vadd.f32 %v1470, %v1558
      %v1560 = vpop.f32.mrf.mxu0
      %v1561 = vadd.f32 %v1472, %v1560
      %1562 = vmatmul.bf16.gmra.mxu0 %v853
      %v1563 = vpop.f32.mrf.mxu0
      %v1564 = vadd.f32 %v1475, %v1563
      %v1565 = vpop.f32.mrf.mxu0
      %v1566 = vadd.f32 %v1477, %v1565
      %1567 = vmatmul.bf16.gmra.mxu0 %v860
      %v1568 = vpop.f32.mrf.mxu0
      %v1569 = vadd.f32 %v1480, %v1568
      %v1570 = vpop.f32.mrf.mxu0
      %v1571 = vadd.f32 %v1482, %v1570
      %1572 = vmatmul.bf16.gmra.mxu0 %v867
      %v1573 = vpop.f32.mrf.mxu0
      %v1574 = vadd.f32 %v1485, %v1573
      %v1575 = vpop.f32.mrf.mxu0
      %v1576 = vadd.f32 %v1487, %v1575
      %1577 = vdwg.mxu0
      %1578 = vmatpush.bf16.msra.mxu0 %v1195
      %1579 = vmatpush.bf16.msra.mxu0 %v1194
      %1580 = vmatpush.bf16.msra.mxu0 %v1193
      %1581 = vmatpush.bf16.msra.mxu0 %v1192
      %1582 = vmatpush.bf16.msra.mxu0 %v1191
      %1583 = vmatpush.bf16.msra.mxu0 %v1190
      %1584 = vmatpush.bf16.msra.mxu0 %v1189
      %1585 = vmatpush.bf16.msra.mxu0 %v1188
      %1586 = vmatmul.bf16.gmra.mxu0 %v763
      %v1587 = vpop.f32.mrf.mxu0
      %v1588 = vadd.f32 %v1499, %v1587
      %v1589 = vpop.f32.mrf.mxu0
      %v1590 = vadd.f32 %v1501, %v1589
      %1591 = vmatmul.bf16.gmra.mxu0 %v770
      %v1592 = vpop.f32.mrf.mxu0
      %v1593 = vadd.f32 %v1504, %v1592
      %v1594 = vpop.f32.mrf.mxu0
      %v1595 = vadd.f32 %v1506, %v1594
      %1596 = vmatmul.bf16.gmra.mxu0 %v777
      %v1597 = vpop.f32.mrf.mxu0
      %v1598 = vadd.f32 %v1509, %v1597
      %v1599 = vpop.f32.mrf.mxu0
      %v1600 = vadd.f32 %v1511, %v1599
      %1601 = vmatmul.bf16.gmra.mxu0 %v784
      %v1602 = vpop.f32.mrf.mxu0
      %v1603 = vadd.f32 %v1514, %v1602
      %v1604 = vpop.f32.mrf.mxu0
      %v1605 = vadd.f32 %v1516, %v1604
      %1606 = vmatmul.bf16.gmra.mxu0 %v791
      %v1607 = vpop.f32.mrf.mxu0
      %v1608 = vadd.f32 %v1519, %v1607
      %v1609 = vpop.f32.mrf.mxu0
      %v1610 = vadd.f32 %v1521, %v1609
      %1611 = vmatmul.bf16.gmra.mxu0 %v798
      %v1612 = vpop.f32.mrf.mxu0
      %v1613 = vadd.f32 %v1524, %v1612
      %v1614 = vpop.f32.mrf.mxu0
      %v1615 = vadd.f32 %v1526, %v1614
      %1616 = vmatmul.bf16.gmra.mxu0 %v805
      %v1617 = vpop.f32.mrf.mxu0
      %v1618 = vadd.f32 %v1529, %v1617
      %v1619 = vpop.f32.mrf.mxu0
      %v1620 = vadd.f32 %v1531, %v1619
      %1621 = vmatmul.bf16.gmra.mxu0 %v812
      %v1622 = vpop.f32.mrf.mxu0
      %v1623 = vadd.f32 %v1534, %v1622
      %v1624 = vpop.f32.mrf.mxu0
      %v1625 = vadd.f32 %v1536, %v1624
      %1626 = vmatmul.bf16.gmra.mxu0 %v819
      %v1627 = vpop.f32.mrf.mxu0
      %v1628 = vadd.f32 %v1539, %v1627
      %v1629 = vpop.f32.mrf.mxu0
      %v1630 = vadd.f32 %v1541, %v1629
      %1631 = vmatmul.bf16.gmra.mxu0 %v826
      %v1632 = vpop.f32.mrf.mxu0
      %v1633 = vadd.f32 %v1544, %v1632
      %v1634 = vpop.f32.mrf.mxu0
      %v1635 = vadd.f32 %v1546, %v1634
      %1636 = vmatmul.bf16.gmra.mxu0 %v833
      %v1637 = vpop.f32.mrf.mxu0
      %v1638 = vadd.f32 %v1549, %v1637
      %v1639 = vpop.f32.mrf.mxu0
      %v1640 = vadd.f32 %v1551, %v1639
      %1641 = vmatmul.bf16.gmra.mxu0 %v840
      %v1642 = vpop.f32.mrf.mxu0
      %v1643 = vadd.f32 %v1554, %v1642
      %v1644 = vpop.f32.mrf.mxu0
      %v1645 = vadd.f32 %v1556, %v1644
      %1646 = vmatmul.bf16.gmra.mxu0 %v847
      %v1647 = vpop.f32.mrf.mxu0
      %v1648 = vadd.f32 %v1559, %v1647
      %v1649 = vpop.f32.mrf.mxu0
      %v1650 = vadd.f32 %v1561, %v1649
      %1651 = vmatmul.bf16.gmra.mxu0 %v854
      %v1652 = vpop.f32.mrf.mxu0
      %v1653 = vadd.f32 %v1564, %v1652
      %v1654 = vpop.f32.mrf.mxu0
      %v1655 = vadd.f32 %v1566, %v1654
      %1656 = vmatmul.bf16.gmra.mxu0 %v861
      %v1657 = vpop.f32.mrf.mxu0
      %v1658 = vadd.f32 %v1569, %v1657
      %v1659 = vpop.f32.mrf.mxu0
      %v1660 = vadd.f32 %v1571, %v1659
      %1661 = vmatmul.bf16.gmra.mxu0 %v868
      %v1662 = vpop.f32.mrf.mxu0
      %v1663 = vadd.f32 %v1574, %v1662
      %v1664 = vpop.f32.mrf.mxu0
      %v1665 = vadd.f32 %v1576, %v1664
      %1666 = vdwg.mxu0
      %1667 = vmatpush.bf16.msra.mxu0 %v1203
      %1668 = vmatpush.bf16.msra.mxu0 %v1202
      %1669 = vmatpush.bf16.msra.mxu0 %v1201
      %1670 = vmatpush.bf16.msra.mxu0 %v1200
      %1671 = vmatpush.bf16.msra.mxu0 %v1199
      %1672 = vmatpush.bf16.msra.mxu0 %v1198
      %1673 = vmatpush.bf16.msra.mxu0 %v1197
      %1674 = vmatpush.bf16.msra.mxu0 %v1196
      %1675 = vmatmul.bf16.gmra.mxu0 %v764
      %v1676 = vpop.f32.mrf.mxu0
      %v1677 = vadd.f32 %v1588, %v1676
      %v1678 = vpop.f32.mrf.mxu0
      %v1679 = vadd.f32 %v1590, %v1678
      %1680 = vmatmul.bf16.gmra.mxu0 %v771
      %v1681 = vpop.f32.mrf.mxu0
      %v1682 = vadd.f32 %v1593, %v1681
      %v1683 = vpop.f32.mrf.mxu0
      %v1684 = vadd.f32 %v1595, %v1683
      %1685 = vmatmul.bf16.gmra.mxu0 %v778
      %v1686 = vpop.f32.mrf.mxu0
      %v1687 = vadd.f32 %v1598, %v1686
      %v1688 = vpop.f32.mrf.mxu0
      %v1689 = vadd.f32 %v1600, %v1688
      %1690 = vmatmul.bf16.gmra.mxu0 %v785
      %v1691 = vpop.f32.mrf.mxu0
      %v1692 = vadd.f32 %v1603, %v1691
      %v1693 = vpop.f32.mrf.mxu0
      %v1694 = vadd.f32 %v1605, %v1693
      %1695 = vmatmul.bf16.gmra.mxu0 %v792
      %v1696 = vpop.f32.mrf.mxu0
      %v1697 = vadd.f32 %v1608, %v1696
      %v1698 = vpop.f32.mrf.mxu0
      %v1699 = vadd.f32 %v1610, %v1698
      %1700 = vmatmul.bf16.gmra.mxu0 %v799
      %v1701 = vpop.f32.mrf.mxu0
      %v1702 = vadd.f32 %v1613, %v1701
      %v1703 = vpop.f32.mrf.mxu0
      %v1704 = vadd.f32 %v1615, %v1703
      %1705 = vmatmul.bf16.gmra.mxu0 %v806
      %v1706 = vpop.f32.mrf.mxu0
      %v1707 = vadd.f32 %v1618, %v1706
      %v1708 = vpop.f32.mrf.mxu0
      %v1709 = vadd.f32 %v1620, %v1708
      %1710 = vmatmul.bf16.gmra.mxu0 %v813
      %v1711 = vpop.f32.mrf.mxu0
      %v1712 = vadd.f32 %v1623, %v1711
      %v1713 = vpop.f32.mrf.mxu0
      %v1714 = vadd.f32 %v1625, %v1713
      %1715 = vmatmul.bf16.gmra.mxu0 %v820
      %v1716 = vpop.f32.mrf.mxu0
      %v1717 = vadd.f32 %v1628, %v1716
      %v1718 = vpop.f32.mrf.mxu0
      %v1719 = vadd.f32 %v1630, %v1718
      %1720 = vmatmul.bf16.gmra.mxu0 %v827
      %v1721 = vpop.f32.mrf.mxu0
      %v1722 = vadd.f32 %v1633, %v1721
      %v1723 = vpop.f32.mrf.mxu0
      %v1724 = vadd.f32 %v1635, %v1723
      %1725 = vmatmul.bf16.gmra.mxu0 %v834
      %v1726 = vpop.f32.mrf.mxu0
      %v1727 = vadd.f32 %v1638, %v1726
      %v1728 = vpop.f32.mrf.mxu0
      %v1729 = vadd.f32 %v1640, %v1728
      %1730 = vmatmul.bf16.gmra.mxu0 %v841
      %v1731 = vpop.f32.mrf.mxu0
      %v1732 = vadd.f32 %v1643, %v1731
      %v1733 = vpop.f32.mrf.mxu0
      %v1734 = vadd.f32 %v1645, %v1733
      %1735 = vmatmul.bf16.gmra.mxu0 %v848
      %v1736 = vpop.f32.mrf.mxu0
      %v1737 = vadd.f32 %v1648, %v1736
      %v1738 = vpop.f32.mrf.mxu0
      %v1739 = vadd.f32 %v1650, %v1738
      %1740 = vmatmul.bf16.gmra.mxu0 %v855
      %v1741 = vpop.f32.mrf.mxu0
      %v1742 = vadd.f32 %v1653, %v1741
      %v1743 = vpop.f32.mrf.mxu0
      %v1744 = vadd.f32 %v1655, %v1743
      %1745 = vmatmul.bf16.gmra.mxu0 %v862
      %v1746 = vpop.f32.mrf.mxu0
      %v1747 = vadd.f32 %v1658, %v1746
      %v1748 = vpop.f32.mrf.mxu0
      %v1749 = vadd.f32 %v1660, %v1748
      %1750 = vmatmul.bf16.gmra.mxu0 %v869
      %v1751 = vpop.f32.mrf.mxu0
      %v1752 = vadd.f32 %v1663, %v1751
      %v1753 = vpop.f32.mrf.mxu0
      %v1754 = vadd.f32 %v1665, %v1753
      %1755 = vdwg.mxu0
      %1756 = vmatpush.bf16.msra.mxu0 %v1211
      %1757 = vmatpush.bf16.msra.mxu0 %v1210
      %1758 = vmatpush.bf16.msra.mxu0 %v1209
      %1759 = vmatpush.bf16.msra.mxu0 %v1208
      %1760 = vmatpush.bf16.msra.mxu0 %v1207
      %1761 = vmatpush.bf16.msra.mxu0 %v1206
      %1762 = vmatpush.bf16.msra.mxu0 %v1205
      %1763 = vmatpush.bf16.msra.mxu0 %v1204
      %1764 = vmatmul.bf16.gmra.mxu0 %v765
      %v1765 = vpop.f32.mrf.mxu0
      %v1766 = vadd.f32 %v1677, %v1765
      %v1767 = vpop.f32.mrf.mxu0
      %v1768 = vadd.f32 %v1679, %v1767
      %1769 = vmatmul.bf16.gmra.mxu0 %v772
      %v1770 = vpop.f32.mrf.mxu0
      %v1771 = vadd.f32 %v1682, %v1770
      %v1772 = vpop.f32.mrf.mxu0
      %v1773 = vadd.f32 %v1684, %v1772
      %1774 = vmatmul.bf16.gmra.mxu0 %v779
      %v1775 = vpop.f32.mrf.mxu0
      %v1776 = vadd.f32 %v1687, %v1775
      %v1777 = vpop.f32.mrf.mxu0
      %v1778 = vadd.f32 %v1689, %v1777
      %1779 = vmatmul.bf16.gmra.mxu0 %v786
      %v1780 = vpop.f32.mrf.mxu0
      %v1781 = vadd.f32 %v1692, %v1780
      %v1782 = vpop.f32.mrf.mxu0
      %v1783 = vadd.f32 %v1694, %v1782
      %1784 = vmatmul.bf16.gmra.mxu0 %v793
      %v1785 = vpop.f32.mrf.mxu0
      %v1786 = vadd.f32 %v1697, %v1785
      %v1787 = vpop.f32.mrf.mxu0
      %v1788 = vadd.f32 %v1699, %v1787
      %1789 = vmatmul.bf16.gmra.mxu0 %v800
      %v1790 = vpop.f32.mrf.mxu0
      %v1791 = vadd.f32 %v1702, %v1790
      %v1792 = vpop.f32.mrf.mxu0
      %v1793 = vadd.f32 %v1704, %v1792
      %1794 = vmatmul.bf16.gmra.mxu0 %v807
      %v1795 = vpop.f32.mrf.mxu0
      %v1796 = vadd.f32 %v1707, %v1795
      %v1797 = vpop.f32.mrf.mxu0
      %v1798 = vadd.f32 %v1709, %v1797
      %1799 = vmatmul.bf16.gmra.mxu0 %v814
      %v1800 = vpop.f32.mrf.mxu0
      %v1801 = vadd.f32 %v1712, %v1800
      %v1802 = vpop.f32.mrf.mxu0
      %v1803 = vadd.f32 %v1714, %v1802
      %1804 = vmatmul.bf16.gmra.mxu0 %v821
      %v1805 = vpop.f32.mrf.mxu0
      %v1806 = vadd.f32 %v1717, %v1805
      %v1807 = vpop.f32.mrf.mxu0
      %v1808 = vadd.f32 %v1719, %v1807
      %1809 = vmatmul.bf16.gmra.mxu0 %v828
      %v1810 = vpop.f32.mrf.mxu0
      %v1811 = vadd.f32 %v1722, %v1810
      %v1812 = vpop.f32.mrf.mxu0
      %v1813 = vadd.f32 %v1724, %v1812
      %1814 = vmatmul.bf16.gmra.mxu0 %v835
      %v1815 = vpop.f32.mrf.mxu0
      %v1816 = vadd.f32 %v1727, %v1815
      %v1817 = vpop.f32.mrf.mxu0
      %v1818 = vadd.f32 %v1729, %v1817
      %1819 = vmatmul.bf16.gmra.mxu0 %v842
      %v1820 = vpop.f32.mrf.mxu0
      %v1821 = vadd.f32 %v1732, %v1820
      %v1822 = vpop.f32.mrf.mxu0
      %v1823 = vadd.f32 %v1734, %v1822
      %1824 = vmatmul.bf16.gmra.mxu0 %v849
      %v1825 = vpop.f32.mrf.mxu0
      %v1826 = vadd.f32 %v1737, %v1825
      %v1827 = vpop.f32.mrf.mxu0
      %v1828 = vadd.f32 %v1739, %v1827
      %1829 = vmatmul.bf16.gmra.mxu0 %v856
      %v1830 = vpop.f32.mrf.mxu0
      %v1831 = vadd.f32 %v1742, %v1830
      %v1832 = vpop.f32.mrf.mxu0
      %v1833 = vadd.f32 %v1744, %v1832
      %1834 = vmatmul.bf16.gmra.mxu0 %v863
      %v1835 = vpop.f32.mrf.mxu0
      %v1836 = vadd.f32 %v1747, %v1835
      %v1837 = vpop.f32.mrf.mxu0
      %v1838 = vadd.f32 %v1749, %v1837
      %1839 = vmatmul.bf16.gmra.mxu0 %v870
      %v1840 = vpop.f32.mrf.mxu0
      %v1841 = vadd.f32 %v1752, %v1840
      %v1842 = vpop.f32.mrf.mxu0
      %v1843 = vadd.f32 %v1754, %v1842
      %1844 = vdwg.mxu0
      %1845 = vmatpush.bf16.msra.mxu0 0
      %1846 = vmatpush.bf16.msra.mxu0 0
      %1847 = vmatpush.bf16.msra.mxu0 0
      %1848 = vmatpush.bf16.msra.mxu0 0
      %1849 = vmatpush.bf16.msra.mxu0 0
      %1850 = vmatpush.bf16.msra.mxu0 0
      %1851 = vmatpush.bf16.msra.mxu0 0
      %1852 = vmatpush.bf16.msra.mxu0 %v1212
      %1853 = vmatmul.bf16.gmra.mxu0 %v1264
      %v1854 = vpop.f32.mrf.mxu0
      %v1855 = vadd.f32 %v1766, %v1854
      %v1856 = vpop.f32.mrf.mxu0
      %v1857 = vadd.f32 %v1768, %v1856
      %1858 = vmatmul.bf16.gmra.mxu0 %v1267
      %v1859 = vpop.f32.mrf.mxu0
      %v1860 = vadd.f32 %v1771, %v1859
      %v1861 = vpop.f32.mrf.mxu0
      %v1862 = vadd.f32 %v1773, %v1861
      %1863 = vmatmul.bf16.gmra.mxu0 %v1270
      %v1864 = vpop.f32.mrf.mxu0
      %v1865 = vadd.f32 %v1776, %v1864
      %v1866 = vpop.f32.mrf.mxu0
      %v1867 = vadd.f32 %v1778, %v1866
      %1868 = vmatmul.bf16.gmra.mxu0 %v1273
      %v1869 = vpop.f32.mrf.mxu0
      %v1870 = vadd.f32 %v1781, %v1869
      %v1871 = vpop.f32.mrf.mxu0
      %v1872 = vadd.f32 %v1783, %v1871
      %1873 = vmatmul.bf16.gmra.mxu0 %v1276
      %v1874 = vpop.f32.mrf.mxu0
      %v1875 = vadd.f32 %v1786, %v1874
      %v1876 = vpop.f32.mrf.mxu0
      %v1877 = vadd.f32 %v1788, %v1876
      %1878 = vmatmul.bf16.gmra.mxu0 %v1279
      %v1879 = vpop.f32.mrf.mxu0
      %v1880 = vadd.f32 %v1791, %v1879
      %v1881 = vpop.f32.mrf.mxu0
      %v1882 = vadd.f32 %v1793, %v1881
      %1883 = vmatmul.bf16.gmra.mxu0 %v1282
      %v1884 = vpop.f32.mrf.mxu0
      %v1885 = vadd.f32 %v1796, %v1884
      %v1886 = vpop.f32.mrf.mxu0
      %v1887 = vadd.f32 %v1798, %v1886
      %1888 = vmatmul.bf16.gmra.mxu0 %v1285
      %v1889 = vpop.f32.mrf.mxu0
      %v1890 = vadd.f32 %v1801, %v1889
      %v1891 = vpop.f32.mrf.mxu0
      %v1892 = vadd.f32 %v1803, %v1891
      %1893 = vmatmul.bf16.gmra.mxu0 %v1288
      %v1894 = vpop.f32.mrf.mxu0
      %v1895 = vadd.f32 %v1806, %v1894
      %v1896 = vpop.f32.mrf.mxu0
      %v1897 = vadd.f32 %v1808, %v1896
      %1898 = vmatmul.bf16.gmra.mxu0 %v1291
      %v1899 = vpop.f32.mrf.mxu0
      %v1900 = vadd.f32 %v1811, %v1899
      %v1901 = vpop.f32.mrf.mxu0
      %v1902 = vadd.f32 %v1813, %v1901
      %1903 = vmatmul.bf16.gmra.mxu0 %v1294
      %v1904 = vpop.f32.mrf.mxu0
      %v1905 = vadd.f32 %v1816, %v1904
      %v1906 = vpop.f32.mrf.mxu0
      %v1907 = vadd.f32 %v1818, %v1906
      %1908 = vmatmul.bf16.gmra.mxu0 %v1297
      %v1909 = vpop.f32.mrf.mxu0
      %v1910 = vadd.f32 %v1821, %v1909
      %v1911 = vpop.f32.mrf.mxu0
      %v1912 = vadd.f32 %v1823, %v1911
      %1913 = vmatmul.bf16.gmra.mxu0 %v1300
      %v1914 = vpop.f32.mrf.mxu0
      %v1915 = vadd.f32 %v1826, %v1914
      %v1916 = vpop.f32.mrf.mxu0
      %v1917 = vadd.f32 %v1828, %v1916
      %1918 = vmatmul.bf16.gmra.mxu0 %v1303
      %v1919 = vpop.f32.mrf.mxu0
      %v1920 = vadd.f32 %v1831, %v1919
      %v1921 = vpop.f32.mrf.mxu0
      %v1922 = vadd.f32 %v1833, %v1921
      %1923 = vmatmul.bf16.gmra.mxu0 %v1306
      %v1924 = vpop.f32.mrf.mxu0
      %v1925 = vadd.f32 %v1836, %v1924
      %v1926 = vpop.f32.mrf.mxu0
      %v1927 = vadd.f32 %v1838, %v1926
      %1928 = vmatmul.bf16.gmra.mxu0 %v1309
      %v1929 = vpop.f32.mrf.mxu0
      %v1930 = vadd.f32 %v1841, %v1929
      %v1931 = vpop.f32.mrf.mxu0
      %v1932 = vadd.f32 %v1843, %v1931
      %1933 = vdwg.mxu0
      %1934 = vst [vmem:[%s175] sm:$0xff] %v1855
      %1935 = vst [vmem:[%s175 + $0x8] sm:$0xff] %v1857
      %1936 = vst [vmem:[%s175 + $0x10] sm:$0xff] %v1860
      %1937 = vst [vmem:[%s175 + $0x18] sm:$0xff] %v1862
      %1938 = vst [vmem:[%s175 + $0x20] sm:$0xff] %v1865
      %1939 = vst [vmem:[%s175 + $0x28] sm:$0xff] %v1867
      %1940 = vst [vmem:[%s175 + $0x30] sm:$0xff] %v1870
      %1941 = vst [vmem:[%s175 + $0x38] sm:$0xff] %v1872
      %1942 = vst [vmem:[%s175 + $0x40] sm:$0xff] %v1875
      %1943 = vst [vmem:[%s175 + $0x48] sm:$0xff] %v1877
      %1944 = vst [vmem:[%s175 + $0x50] sm:$0xff] %v1880
      %1945 = vst [vmem:[%s175 + $0x58] sm:$0xff] %v1882
      %1946 = vst [vmem:[%s175 + $0x60] sm:$0xff] %v1885
      %1947 = vst [vmem:[%s175 + $0x68] sm:$0xff] %v1887
      %1948 = vst [vmem:[%s175 + $0x70] sm:$0xff] %v1890
      %1949 = vst [vmem:[%s175 + $0x78] sm:$0xff] %v1892
      %1950 = vst [vmem:[%s175 + $0x80] sm:$0xff] %v1895
      %1951 = vst [vmem:[%s175 + $0x88] sm:$0xff] %v1897
      %1952 = vst [vmem:[%s175 + $0x90] sm:$0xff] %v1900
      %1953 = vst [vmem:[%s175 + $0x98] sm:$0xff] %v1902
      %1954 = vst [vmem:[%s175 + $0xa0] sm:$0xff] %v1905
      %1955 = vst [vmem:[%s175 + $0xa8] sm:$0xff] %v1907
      %1956 = vst [vmem:[%s175 + $0xb0] sm:$0xff] %v1910
      %1957 = vst [vmem:[%s175 + $0xb8] sm:$0xff] %v1912
      %1958 = vst [vmem:[%s175 + $0xc0] sm:$0xff] %v1915
      %1959 = vst [vmem:[%s175 + $0xc8] sm:$0xff] %v1917
      %1960 = vst [vmem:[%s175 + $0xd0] sm:$0xff] %v1920
      %1961 = vst [vmem:[%s175 + $0xd8] sm:$0xff] %v1922
      %1962 = vst [vmem:[%s175 + $0xe0] sm:$0xff] %v1925
      %1963 = vst [vmem:[%s175 + $0xe8] sm:$0xff] %v1927
      %1964 = vst [vmem:[%s175 + $0xf0] sm:$0xff] %v1930
      %1965 = vst [vmem:[%s175 + $0xf8] sm:$0xff] %v1932
      %s1966 = smul.u32 32, %s14
      %p1967 = scmp.lt.s32.totalorder %s1966, 63
      %s1968 = scalar_select %p1967, %s1966, 63
      %s1969 = smul.addr %s1968, 8
      %s1970 = scalar_lea.vmem %s3, %s1969
      // Predicated region
      $region33: #{_lambda_.17} parent=31 // pred_check
        %p1971 = pneg %p100
      $region34: #{_lambda_.17} parent=31 // pred_check_branch
        %1973 = sbr.rel (%p1971) target = $region36
      $region35: #{_lambda_.17} parent=31 // pred_region
        %s1974 = smul.u32 32, %s14
      $region36: #{_lambda_.17} parent=31 // pred_fallthru
        _
    $region32: #{_lambda_.17} parent=5 // pred_fallthru
      _
    %p1975 = scmp.le.s32.totalorder 2, %s9
    // Predicated region
    $region37: #{_lambda_.17} parent=5 // pred_check
      %p1976 = pneg %p1975
    $region38: #{_lambda_.17} parent=5 // pred_check_branch
      %1978 = sbr.rel (%p1976) target = $region40
    $region39: #{_lambda_.17} parent=5 // pred_region
      %s1979 = ssub.s32 %s9, 2
      // Predicated region
      $region41: #{_lambda_.17} parent=39 // pred_check
        %p1980 = pneg %p106
      $region42: #{_lambda_.17} parent=39 // pred_check_branch
        %1982 = sbr.rel (%p1980) target = $region44
      $region43: #{_lambda_.17} parent=39 // pred_region
        %s1983 = smul.u32 32, %s15
        %p1984 = scmp.lt.s32.totalorder %s1983, 63
        %s1985 = scalar_select %p1984, %s1983, 63
        %s1986 = smul.addr %s1985, 8
        %s1987 = scalar_lea.vmem %s3, %s1986
      $region44: #{_lambda_.17} parent=39 // pred_fallthru
        _
    $region40: #{_lambda_.17} parent=5 // pred_fallthru
      _
  $region6: #{_lambda_.17} parent=0 // loop_footer
    %s13 = sadd.s32 1, %s9
  $region7: #{_lambda_.17} parent=0 // loop_footer_branch
    %8 = sbr.rel target = $region3
  $region8: #{_lambda_.17} parent=0 // loop_exit
    _

</llo_original>
